<compile_context>
chip_gen: v7x
topology: tpu7x:2x2x1
jax: 0.10.0
libtpu: 0.0.40
codegen_flags: <defaults>
</compile_context>

<pallas_src>
import functools

import numpy as np
import jax
import jax.numpy as jnp
from jax.experimental import pallas as pl
from jax.experimental.pallas import tpu as pltpu


def _squeeze_kernel(C, H2, W2, sel_ref, x_ref, o_ref):
    """Space-to-depth for TB batch elements.

    sel_ref: (4, 2W, W2)         0/1 lane selectors, k = 2a + b
    x_ref:   (TB, C*H2, 2W)      row r = c*H2 + h2, lane l = a*W + w
    o_ref:   (TB, C, 4, H2, W2)  out[t, c, 2a+b, h2, w2]
    """
    tb = x_ref.shape[0]
    # Selectors are VMEM-resident (constant index_map); load each phase once.
    sels = [sel_ref[k] for k in range(4)]                    # 4 x (2W, W2)
    for t in range(tb):                                      # static unroll
        x = x_ref[t]                                         # (C*H2, 2W)
        for k in range(4):                                   # k = 2a + b
            # Exact 0/1 selection: s[r, w2] = x[r, a*W + 2*w2 + b].
            s = jnp.dot(x, sels[k],
                        precision=jax.lax.Precision.HIGHEST,
                        preferred_element_type=jnp.float32)  # (C*H2, W2)
            # (C*H2, W2) -> (C, H2, W2): layout-preserving when H2 % 8 == 0.
            o_ref[t, :, k, :, :] = s.reshape(C, H2, W2).astype(o_ref.dtype)


def _pick_batch_tile(n, per_batch_bytes, cap=8, budget=2 << 20):
    """Largest divisor of n (<= cap) whose input tile stays under `budget`."""
    tb = 1
    for d in range(2, min(n, cap) + 1):
        if n % d == 0 and d * per_batch_bytes <= budget:
            tb = d
    return tb


def squeeze(x):
    """Pallas TPU implementation of Squeeze.forward (NCHW -> NCHW)."""
    N, C, H, W = x.shape
    assert H % 2 == 0 and W % 2 == 0, "H and W must be even"
    assert jnp.issubdtype(x.dtype, jnp.floating), "floating dtypes only"
    H2, W2 = H // 2, W // 2

    # 0/1 lane selectors, built ONCE on host:  sel[k, a*W + 2*w2 + b, w2] = 1.
    sel_np = np.zeros((4, 2 * W, W2), dtype=np.float32)
    w2_idx = np.arange(W2)
    for k in range(4):
        a, b = divmod(k, 2)
        sel_np[k, a * W + 2 * w2_idx + b, w2_idx] = 1.0
    sel = jnp.asarray(sel_np, dtype=x.dtype)                 # exact in any float

    # Free, contiguous view: each row holds the (a=0, a=1) input-row pair.
    x3 = x.reshape(N, C * H2, 2 * W)

    itemsize = jnp.dtype(x.dtype).itemsize
    tb = _pick_batch_tile(N, C * H * W * itemsize)
    grid = (N // tb,)

    kernel = functools.partial(_squeeze_kernel, C, H2, W2)
    out5 = pl.pallas_call(
        kernel,
        out_shape=jax.ShapeDtypeStruct((N, C, 4, H2, W2), x.dtype),
        grid=grid,
        in_specs=[
            # Constant block index -> DMA'd once, stays VMEM-resident.
            pl.BlockSpec((4, 2 * W, W2), lambda g: (0, 0, 0)),
            pl.BlockSpec((tb, C * H2, 2 * W), lambda g: (g, 0, 0)),
        ],
        out_specs=pl.BlockSpec((tb, C, 4, H2, W2),
                               lambda g: (g, 0, 0, 0, 0)),
        compiler_params=pltpu.CompilerParams(
            dimension_semantics=("parallel",)),
    )(sel, x3)

    # Free, contiguous reshape: channel index becomes 4c + 2a + b.
    return out5.reshape(N, 4 * C, H2, W2)


def squeeze_ref(x):
    """Pure-JAX reference mirroring the PyTorch module exactly."""
    N, C, H, W = x.shape
    x = x.reshape(N, C, H // 2, 2, W // 2, 2)
    x = jnp.transpose(x, (0, 1, 3, 5, 2, 4))
    return x.reshape(N, 4 * C, H // 2, W // 2)


if __name__ == "__main__":
    key = jax.random.PRNGKey(0)
    x = jax.random.normal(key, (2, 4, 16, 16), jnp.float32)   # N, C, H, W

    out = jax.block_until_ready(squeeze(x))
    ref = jax.block_until_ready(squeeze_ref(x))

    assert out.shape == (2, 16, 8, 8), out.shape
    assert out.dtype == x.dtype
    max_err = float(jnp.max(jnp.abs(out - ref)))
    assert jnp.allclose(out, ref, rtol=1e-5, atol=1e-5), max_err

    print("KERNEL_OK")
</pallas_src>

<mosaic_0001>
module attributes {stable_mosaic.version = 11 : i64} {
  func.func @_squeeze_kernel(%arg0: i32, %arg1: memref<4x32x8xf32, #tpu.memory_space<vmem>>, %arg2: memref<2x32x32xf32, #tpu.memory_space<vmem>>, %arg3: memref<2x4x4x8x8xf32, #tpu.memory_space<vmem>>) attributes {dimension_semantics = [#tpu.dimension_semantics<parallel>], iteration_bounds = array<i64: 1>, scalar_prefetch = 0 : i64, scratch_operands = 0 : i64, tpu.core_type = #tpu.core_type<tc>, window_params = [{pipeline_mode = #tpu.pipeline_mode<synchronous>, transform_indices = @transform_0, window_bounds = array<i64: 4, 32, 8>}, {transform_indices = @transform_1, window_bounds = array<i64: 2, 32, 32>}, {transform_indices = @transform_2, window_bounds = array<i64: 2, 4, 4, 8, 8>}]} {
    %c0 = arith.constant 0 : index
    %c0_0 = arith.constant 0 : index
    %c0_1 = arith.constant 0 : index
    %0 = vector.load %arg1[%c0, %c0_0, %c0_1] : memref<4x32x8xf32, #tpu.memory_space<vmem>>, vector<1x32x8xf32>
    %1 = vector.shape_cast %0 : vector<1x32x8xf32> to vector<32x8xf32>
    %c1 = arith.constant 1 : index
    %c0_2 = arith.constant 0 : index
    %c0_3 = arith.constant 0 : index
    %2 = vector.load %arg1[%c1, %c0_2, %c0_3] : memref<4x32x8xf32, #tpu.memory_space<vmem>>, vector<1x32x8xf32>
    %3 = vector.shape_cast %2 : vector<1x32x8xf32> to vector<32x8xf32>
    %c2 = arith.constant 2 : index
    %c0_4 = arith.constant 0 : index
    %c0_5 = arith.constant 0 : index
    %4 = vector.load %arg1[%c2, %c0_4, %c0_5] : memref<4x32x8xf32, #tpu.memory_space<vmem>>, vector<1x32x8xf32>
    %5 = vector.shape_cast %4 : vector<1x32x8xf32> to vector<32x8xf32>
    %c3 = arith.constant 3 : index
    %c0_6 = arith.constant 0 : index
    %c0_7 = arith.constant 0 : index
    %6 = vector.load %arg1[%c3, %c0_6, %c0_7] : memref<4x32x8xf32, #tpu.memory_space<vmem>>, vector<1x32x8xf32>
    %7 = vector.shape_cast %6 : vector<1x32x8xf32> to vector<32x8xf32>
    %c0_8 = arith.constant 0 : index
    %c0_9 = arith.constant 0 : index
    %c0_10 = arith.constant 0 : index
    %8 = vector.load %arg2[%c0_8, %c0_9, %c0_10] : memref<2x32x32xf32, #tpu.memory_space<vmem>>, vector<1x32x32xf32>
    %9 = vector.shape_cast %8 : vector<1x32x32xf32> to vector<32x32xf32>
    %cst = arith.constant dense<0.000000e+00> : vector<32x8xf32>
    %10 = tpu.matmul %9, %1, %cst {dimension_numbers = #tpu.dot_dimension_numbers<[1], [0], [0], [1], [0, 0, 1, 1], [], []>, precision = #tpu.contract_precision<fp32>} : vector<32x32xf32>, vector<32x8xf32>, vector<32x8xf32> -> vector<32x8xf32>
    %11 = vector.shape_cast %10 : vector<32x8xf32> to vector<4x8x8xf32>
    %c0_11 = arith.constant 0 : index
    %c0_12 = arith.constant 0 : index
    %c0_13 = arith.constant 0 : index
    %c0_14 = arith.constant 0 : index
    %c0_15 = arith.constant 0 : index
    %12 = vector.load %arg3[%c0_11, %c0_12, %c0_13, %c0_14, %c0_15] : memref<2x4x4x8x8xf32, #tpu.memory_space<vmem>>, vector<1x4x1x8x8xf32>
    %13 = vector.shape_cast %12 : vector<1x4x1x8x8xf32> to vector<4x8x8xf32>
    %14 = vector.shape_cast %11 : vector<4x8x8xf32> to vector<1x4x1x8x8xf32>
    tpu.vector_store %arg3[%c0_11, %c0_12, %c0_13, %c0_14, %c0_15], %14 {strides = array<i32>} : memref<2x4x4x8x8xf32, #tpu.memory_space<vmem>>, vector<1x4x1x8x8xf32>,
    %cst_16 = arith.constant dense<0.000000e+00> : vector<32x8xf32>
    %15 = tpu.matmul %9, %3, %cst_16 {dimension_numbers = #tpu.dot_dimension_numbers<[1], [0], [0], [1], [0, 0, 1, 1], [], []>, precision = #tpu.contract_precision<fp32>} : vector<32x32xf32>, vector<32x8xf32>, vector<32x8xf32> -> vector<32x8xf32>
    %16 = vector.shape_cast %15 : vector<32x8xf32> to vector<4x8x8xf32>
    %c0_17 = arith.constant 0 : index
    %c0_18 = arith.constant 0 : index
    %c1_19 = arith.constant 1 : index
    %c0_20 = arith.constant 0 : index
    %c0_21 = arith.constant 0 : index
    %17 = vector.load %arg3[%c0_17, %c0_18, %c1_19, %c0_20, %c0_21] : memref<2x4x4x8x8xf32, #tpu.memory_space<vmem>>, vector<1x4x1x8x8xf32>
    %18 = vector.shape_cast %17 : vector<1x4x1x8x8xf32> to vector<4x8x8xf32>
    %19 = vector.shape_cast %16 : vector<4x8x8xf32> to vector<1x4x1x8x8xf32>
    tpu.vector_store %arg3[%c0_17, %c0_18, %c1_19, %c0_20, %c0_21], %19 {strides = array<i32>} : memref<2x4x4x8x8xf32, #tpu.memory_space<vmem>>, vector<1x4x1x8x8xf32>,
    %cst_22 = arith.constant dense<0.000000e+00> : vector<32x8xf32>
    %20 = tpu.matmul %9, %5, %cst_22 {dimension_numbers = #tpu.dot_dimension_numbers<[1], [0], [0], [1], [0, 0, 1, 1], [], []>, precision = #tpu.contract_precision<fp32>} : vector<32x32xf32>, vector<32x8xf32>, vector<32x8xf32> -> vector<32x8xf32>
    %21 = vector.shape_cast %20 : vector<32x8xf32> to vector<4x8x8xf32>
    %c0_23 = arith.constant 0 : index
    %c0_24 = arith.constant 0 : index
    %c2_25 = arith.constant 2 : index
    %c0_26 = arith.constant 0 : index
    %c0_27 = arith.constant 0 : index
    %22 = vector.load %arg3[%c0_23, %c0_24, %c2_25, %c0_26, %c0_27] : memref<2x4x4x8x8xf32, #tpu.memory_space<vmem>>, vector<1x4x1x8x8xf32>
    %23 = vector.shape_cast %22 : vector<1x4x1x8x8xf32> to vector<4x8x8xf32>
    %24 = vector.shape_cast %21 : vector<4x8x8xf32> to vector<1x4x1x8x8xf32>
    tpu.vector_store %arg3[%c0_23, %c0_24, %c2_25, %c0_26, %c0_27], %24 {strides = array<i32>} : memref<2x4x4x8x8xf32, #tpu.memory_space<vmem>>, vector<1x4x1x8x8xf32>,
    %cst_28 = arith.constant dense<0.000000e+00> : vector<32x8xf32>
    %25 = tpu.matmul %9, %7, %cst_28 {dimension_numbers = #tpu.dot_dimension_numbers<[1], [0], [0], [1], [0, 0, 1, 1], [], []>, precision = #tpu.contract_precision<fp32>} : vector<32x32xf32>, vector<32x8xf32>, vector<32x8xf32> -> vector<32x8xf32>
    %26 = vector.shape_cast %25 : vector<32x8xf32> to vector<4x8x8xf32>
    %c0_29 = arith.constant 0 : index
    %c0_30 = arith.constant 0 : index
    %c3_31 = arith.constant 3 : index
    %c0_32 = arith.constant 0 : index
    %c0_33 = arith.constant 0 : index
    %27 = vector.load %arg3[%c0_29, %c0_30, %c3_31, %c0_32, %c0_33] : memref<2x4x4x8x8xf32, #tpu.memory_space<vmem>>, vector<1x4x1x8x8xf32>
    %28 = vector.shape_cast %27 : vector<1x4x1x8x8xf32> to vector<4x8x8xf32>
    %29 = vector.shape_cast %26 : vector<4x8x8xf32> to vector<1x4x1x8x8xf32>
    tpu.vector_store %arg3[%c0_29, %c0_30, %c3_31, %c0_32, %c0_33], %29 {strides = array<i32>} : memref<2x4x4x8x8xf32, #tpu.memory_space<vmem>>, vector<1x4x1x8x8xf32>,
    %c1_34 = arith.constant 1 : index
    %c0_35 = arith.constant 0 : index
    %c0_36 = arith.constant 0 : index
    %30 = vector.load %arg2[%c1_34, %c0_35, %c0_36] : memref<2x32x32xf32, #tpu.memory_space<vmem>>, vector<1x32x32xf32>
    %31 = vector.shape_cast %30 : vector<1x32x32xf32> to vector<32x32xf32>
    %cst_37 = arith.constant dense<0.000000e+00> : vector<32x8xf32>
    %32 = tpu.matmul %31, %1, %cst_37 {dimension_numbers = #tpu.dot_dimension_numbers<[1], [0], [0], [1], [0, 0, 1, 1], [], []>, precision = #tpu.contract_precision<fp32>} : vector<32x32xf32>, vector<32x8xf32>, vector<32x8xf32> -> vector<32x8xf32>
    %33 = vector.shape_cast %32 : vector<32x8xf32> to vector<4x8x8xf32>
    %c1_38 = arith.constant 1 : index
    %c0_39 = arith.constant 0 : index
    %c0_40 = arith.constant 0 : index
    %c0_41 = arith.constant 0 : index
    %c0_42 = arith.constant 0 : index
    %34 = vector.load %arg3[%c1_38, %c0_39, %c0_40, %c0_41, %c0_42] : memref<2x4x4x8x8xf32, #tpu.memory_space<vmem>>, vector<1x4x1x8x8xf32>
    %35 = vector.shape_cast %34 : vector<1x4x1x8x8xf32> to vector<4x8x8xf32>
    %36 = vector.shape_cast %33 : vector<4x8x8xf32> to vector<1x4x1x8x8xf32>
    tpu.vector_store %arg3[%c1_38, %c0_39, %c0_40, %c0_41, %c0_42], %36 {strides = array<i32>} : memref<2x4x4x8x8xf32, #tpu.memory_space<vmem>>, vector<1x4x1x8x8xf32>,
    %cst_43 = arith.constant dense<0.000000e+00> : vector<32x8xf32>
    %37 = tpu.matmul %31, %3, %cst_43 {dimension_numbers = #tpu.dot_dimension_numbers<[1], [0], [0], [1], [0, 0, 1, 1], [], []>, precision = #tpu.contract_precision<fp32>} : vector<32x32xf32>, vector<32x8xf32>, vector<32x8xf32> -> vector<32x8xf32>
    %38 = vector.shape_cast %37 : vector<32x8xf32> to vector<4x8x8xf32>
    %c1_44 = arith.constant 1 : index
    %c0_45 = arith.constant 0 : index
    %c1_46 = arith.constant 1 : index
    %c0_47 = arith.constant 0 : index
    %c0_48 = arith.constant 0 : index
    %39 = vector.load %arg3[%c1_44, %c0_45, %c1_46, %c0_47, %c0_48] : memref<2x4x4x8x8xf32, #tpu.memory_space<vmem>>, vector<1x4x1x8x8xf32>
    %40 = vector.shape_cast %39 : vector<1x4x1x8x8xf32> to vector<4x8x8xf32>
    %41 = vector.shape_cast %38 : vector<4x8x8xf32> to vector<1x4x1x8x8xf32>
    tpu.vector_store %arg3[%c1_44, %c0_45, %c1_46, %c0_47, %c0_48], %41 {strides = array<i32>} : memref<2x4x4x8x8xf32, #tpu.memory_space<vmem>>, vector<1x4x1x8x8xf32>,
    %cst_49 = arith.constant dense<0.000000e+00> : vector<32x8xf32>
    %42 = tpu.matmul %31, %5, %cst_49 {dimension_numbers = #tpu.dot_dimension_numbers<[1], [0], [0], [1], [0, 0, 1, 1], [], []>, precision = #tpu.contract_precision<fp32>} : vector<32x32xf32>, vector<32x8xf32>, vector<32x8xf32> -> vector<32x8xf32>
    %43 = vector.shape_cast %42 : vector<32x8xf32> to vector<4x8x8xf32>
    %c1_50 = arith.constant 1 : index
    %c0_51 = arith.constant 0 : index
    %c2_52 = arith.constant 2 : index
    %c0_53 = arith.constant 0 : index
    %c0_54 = arith.constant 0 : index
    %44 = vector.load %arg3[%c1_50, %c0_51, %c2_52, %c0_53, %c0_54] : memref<2x4x4x8x8xf32, #tpu.memory_space<vmem>>, vector<1x4x1x8x8xf32>
    %45 = vector.shape_cast %44 : vector<1x4x1x8x8xf32> to vector<4x8x8xf32>
    %46 = vector.shape_cast %43 : vector<4x8x8xf32> to vector<1x4x1x8x8xf32>
    tpu.vector_store %arg3[%c1_50, %c0_51, %c2_52, %c0_53, %c0_54], %46 {strides = array<i32>} : memref<2x4x4x8x8xf32, #tpu.memory_space<vmem>>, vector<1x4x1x8x8xf32>,
    %cst_55 = arith.constant dense<0.000000e+00> : vector<32x8xf32>
    %47 = tpu.matmul %31, %7, %cst_55 {dimension_numbers = #tpu.dot_dimension_numbers<[1], [0], [0], [1], [0, 0, 1, 1], [], []>, precision = #tpu.contract_precision<fp32>} : vector<32x32xf32>, vector<32x8xf32>, vector<32x8xf32> -> vector<32x8xf32>
    %48 = vector.shape_cast %47 : vector<32x8xf32> to vector<4x8x8xf32>
    %c1_56 = arith.constant 1 : index
    %c0_57 = arith.constant 0 : index
    %c3_58 = arith.constant 3 : index
    %c0_59 = arith.constant 0 : index
    %c0_60 = arith.constant 0 : index
    %49 = vector.load %arg3[%c1_56, %c0_57, %c3_58, %c0_59, %c0_60] : memref<2x4x4x8x8xf32, #tpu.memory_space<vmem>>, vector<1x4x1x8x8xf32>
    %50 = vector.shape_cast %49 : vector<1x4x1x8x8xf32> to vector<4x8x8xf32>
    %51 = vector.shape_cast %48 : vector<4x8x8xf32> to vector<1x4x1x8x8xf32>
    tpu.vector_store %arg3[%c1_56, %c0_57, %c3_58, %c0_59, %c0_60], %51 {strides = array<i32>} : memref<2x4x4x8x8xf32, #tpu.memory_space<vmem>>, vector<1x4x1x8x8xf32>,
    return
  }
  func.func @transform_0(%arg0: i32) -> (i32, i32, i32) {
    %c0_i32 = arith.constant 0 : i32
    %c0_i32_0 = arith.constant 0 : i32
    %c0_i32_1 = arith.constant 0 : i32
    %c0_i32_2 = arith.constant 0 : i32
    return %c0_i32, %c0_i32_0, %c0_i32_1 : i32, i32, i32
  }
  func.func @transform_1(%arg0: i32) -> (i32, i32, i32) {
    %c0_i32 = arith.constant 0 : i32
    %c0_i32_0 = arith.constant 0 : i32
    %c0_i32_1 = arith.constant 0 : i32
    return %arg0, %c0_i32, %c0_i32_0 : i32, i32, i32
  }
  func.func @transform_2(%arg0: i32) -> (i32, i32, i32, i32, i32) {
    %c0_i32 = arith.constant 0 : i32
    %c0_i32_0 = arith.constant 0 : i32
    %c0_i32_1 = arith.constant 0 : i32
    %c0_i32_2 = arith.constant 0 : i32
    %c0_i32_3 = arith.constant 0 : i32
    return %arg0, %c0_i32, %c0_i32_0, %c0_i32_1, %c0_i32_2 : i32, i32, i32, i32, i32
  }
}

</mosaic_0001>

<llo_original>
// kernel: tpu_custom_call.1
$region0: #{tpu_custom_call.1}
  #allocation0 [shape = 'u32[]', space=smem, size = 0x4, offset = 0x4, fixed_abs, tag = 'smem constant byte address 0x4 - core index']
  #allocation1 [shape = 'u32[144,128]{1,0:T(1,128)}', space=vmem, size = 0x12000, scoped, tag = 'internal scratch']
  %s0 = inlined_call_operand.vmem [shape: f32[4,32,8], index: 0, kind: input, shape index: {}]
  %s1 = inlined_call_operand.vmem [shape: f32[2,32,32], index: 1, kind: input, shape index: {}]
  %s2 = inlined_call_operand.hbm [shape: f32[2,4,4,8,8], index: 2, kind: output, shape index: {}]
  %s3 = sld [smem:[#allocation0]]
  $region18: #{tpu_custom_call.1} parent=0
    _
  %s5 = ssub.s32 1, %s3
  %s6 = scalar_select 0, %s5, %s3
  $region1: #{tpu_custom_call.1} parent=0
    #allocation2 [shape = 'u8[131072]{0}', space=vmem, size = 0x20000, scoped, tag = 'output window, operand 0, single buffered']
    #allocation3 [shape = 's32[1]{0}', space=sflag, size = 0x4, scoped, tag = 'scoped memory for tpu_custom_call.1']
    %7 = vsyncpa [#allocation3], 0
    // Predicated region
    $region2: #{tpu_custom_call.1} parent=1 // pred_check
      _
    $region3: #{tpu_custom_call.1} parent=1 // pred_check_branch
      %9 = sbr.rel (0) target = $region5
    $region4: #{tpu_custom_call.1} parent=1 // pred_region
      _
    $region5: #{tpu_custom_call.1} parent=1 // pred_fallthru
      _
    // Predicated region
    $region6: #{tpu_custom_call.1} parent=1 // pred_check
      _
    $region7: #{tpu_custom_call.1} parent=1 // pred_check_branch
      %11 = sbr.rel (0) target = $region9
    $region8: #{tpu_custom_call.1} parent=1 // pred_region
      _
    $region9: #{tpu_custom_call.1} parent=1 // pred_fallthru
      _
    %v12 = vld [vmem:[%s0] sm:$0xff]
    %v13 = vld [vmem:[%s0 + $0x8] sm:$0xff]
    %v14 = vld [vmem:[%s0 + $0x10] sm:$0xff]
    %v15 = vld [vmem:[%s0 + $0x18] sm:$0xff]
    %s16 = scalar_lea.vmem %s0, 32
    %v17 = vld [vmem:[%s16] sm:$0xff]
    %v18 = vld [vmem:[%s16 + $0x8] sm:$0xff]
    %v19 = vld [vmem:[%s16 + $0x10] sm:$0xff]
    %v20 = vld [vmem:[%s16 + $0x18] sm:$0xff]
    %s21 = scalar_lea.vmem %s0, 64
    %v22 = vld [vmem:[%s21] sm:$0xff]
    %v23 = vld [vmem:[%s21 + $0x8] sm:$0xff]
    %v24 = vld [vmem:[%s21 + $0x10] sm:$0xff]
    %v25 = vld [vmem:[%s21 + $0x18] sm:$0xff]
    %s26 = scalar_lea.vmem %s0, 96
    %v27 = vld [vmem:[%s26] sm:$0xff]
    %v28 = vld [vmem:[%s26 + $0x8] sm:$0xff]
    %v29 = vld [vmem:[%s26 + $0x10] sm:$0xff]
    %v30 = vld [vmem:[%s26 + $0x18] sm:$0xff]
    %v31 = vld [vmem:[%s1] sm:$0xff]
    %v32 = vld [vmem:[%s1 + $0x8] sm:$0xff]
    %v33 = vld [vmem:[%s1 + $0x10] sm:$0xff]
    %v34 = vld [vmem:[%s1 + $0x18] sm:$0xff]
    %vm35 = vcmask 261120
    %v37 = vsel %vm35, %v31, 0
    %v40 = vsel %vm35, %v32, 0
    %v43 = vsel %vm35, %v33, 0
    %v46 = vsel %vm35, %v34, 0
    %48 = vmatprep.subr.mxu0 0.0
    %v49 = vand.u32 %v12, 4294901760
    %50 = vmatpush1.msra.mxu0 %v49
    %51 = vmatprep.subr.mxu0 0.0
    %v52 = vand.u32 %v13, 4294901760
    %53 = vmatpush1.msra.mxu0 %v52
    %54 = vmatprep.subr.mxu0 0.0
    %v55 = vand.u32 %v14, 4294901760
    %56 = vmatpush1.msra.mxu0 %v55
    %57 = vmatprep.subr.mxu0 0.0
    %v58 = vand.u32 %v15, 4294901760
    %59 = vmatpush1.msra.mxu0 %v58
    %60 = vmatprep.subr.mxu0 0.0
    %61 = vmatpush1.msra.mxu0 0.0
    %62 = vmatprep.subr.mxu0 0.0
    %63 = vmatpush1.msra.mxu0 0.0
    %64 = vmatprep.subr.mxu0 0.0
    %65 = vmatpush1.msra.mxu0 0.0
    %66 = vmatprep.subr.mxu0 0.0
    %67 = vmatpush1.msra.mxu0 0.0
    %68 = vmatprep.subr.mxu0 0.0
    %69 = vmatpush1.msra.mxu0 0.0
    %70 = vmatprep.subr.mxu0 0.0
    %71 = vmatpush1.msra.mxu0 0.0
    %72 = vmatprep.subr.mxu0 0.0
    %73 = vmatpush1.msra.mxu0 0.0
    %74 = vmatprep.subr.mxu0 0.0
    %75 = vmatpush1.msra.mxu0 0.0
    %76 = vmatprep.subr.mxu0 0.0
    %77 = vmatpush1.msra.mxu0 0.0
    %78 = vmatprep.subr.mxu0 0.0
    %79 = vmatpush1.msra.mxu0 0.0
    %80 = vmatprep.subr.mxu0 0.0
    %81 = vmatpush1.msra.mxu0 0.0
    %82 = vmatprep.subr.mxu0 0.0
    %83 = vmatpush1.msra.mxu0 0.0
    %84 = vmatprep.subr.mxu0 0.0
    %85 = vmatpush1.msra.mxu0 0.0
    %86 = vmatprep.subr.mxu0 0.0
    %87 = vmatpush1.msra.mxu0 0.0
    %88 = vmatprep.subr.mxu0 0.0
    %89 = vmatpush1.msra.mxu0 0.0
    %90 = vmatprep.subr.mxu0 0.0
    %91 = vmatpush1.msra.mxu0 0.0
    %92 = vmatprep.subr.mxu0 0.0
    %93 = vmatpush1.msra.mxu0 0.0
    %94 = vmatprep.subr.mxu0 0.0
    %95 = vmatpush1.msra.mxu0 0.0
    %96 = vmatprep.subr.mxu0 0.0
    %97 = vmatpush1.msra.mxu0 0.0
    %98 = vmatprep.subr.mxu0 0.0
    %99 = vmatpush1.msra.mxu0 0.0
    %100 = vmatprep.subr.mxu0 0.0
    %101 = vmatpush1.msra.mxu0 0.0
    %102 = vmatprep.subr.mxu0 0.0
    %103 = vmatpush1.msra.mxu0 0.0
    %104 = vmatprep.subr.mxu0 0.0
    %105 = vmatpush1.msra.mxu0 0.0
    %106 = vmatprep.subr.mxu0 0.0
    %107 = vmatpush1.msra.mxu0 0.0
    %108 = vmatprep.subr.mxu0 0.0
    %109 = vmatpush1.msra.mxu0 0.0
    %110 = vmatprep.subr.mxu0 0.0
    %111 = vmatpush1.msra.mxu0 0.0
    %112 = vmatprep.subr.mxu0 0.0
    %113 = vmatpush1.msra.mxu0 0.0
    %114 = vmatprep.subr.mxu0 0.0
    %115 = vmatpush1.msra.mxu0 0.0
    %116 = vmatprep.mubr.f32.mxu0 0.0
    %v117 = vand.u32 %v37, 4294901760
    %v118 = vsub.f32 %v37, %v117
    %v119 = vand.u32 %v118, 4294901760
    %v120 = vsub.f32 %v118, %v119
    %v121 = vand.u32 %v120, 4294901760
    %122 = vmatmul.mubr.f32.gmra.mrb[0].mxu0 %v121
    %v123 = vpop.f32.mrb[0].mxu0
    %v124 = vadd.f32 0.0, %v123
    %v125 = vpop.f32.mrb[0].mxu0
    %126 = vmatprep.mubr.f32.mxu0 0.0
    %v127 = vand.u32 %v40, 4294901760
    %v128 = vsub.f32 %v40, %v127
    %v129 = vand.u32 %v128, 4294901760
    %v130 = vsub.f32 %v128, %v129
    %v131 = vand.u32 %v130, 4294901760
    %132 = vmatmul.mubr.f32.gmra.mrb[0].mxu0 %v131
    %v133 = vpop.f32.mrb[0].mxu0
    %v134 = vadd.f32 0.0, %v133
    %v135 = vpop.f32.mrb[0].mxu0
    %136 = vmatprep.mubr.f32.mxu0 0.0
    %v137 = vand.u32 %v43, 4294901760
    %v138 = vsub.f32 %v43, %v137
    %v139 = vand.u32 %v138, 4294901760
    %v140 = vsub.f32 %v138, %v139
    %v141 = vand.u32 %v140, 4294901760
    %142 = vmatmul.mubr.f32.gmra.mrb[0].mxu0 %v141
    %v143 = vpop.f32.mrb[0].mxu0
    %v144 = vadd.f32 0.0, %v143
    %v145 = vpop.f32.mrb[0].mxu0
    %146 = vmatprep.mubr.f32.mxu0 0.0
    %v147 = vand.u32 %v46, 4294901760
    %v148 = vsub.f32 %v46, %v147
    %v149 = vand.u32 %v148, 4294901760
    %v150 = vsub.f32 %v148, %v149
    %v151 = vand.u32 %v150, 4294901760
    %152 = vmatmul.mubr.f32.gmra.mrb[0].mxu0 %v151
    %v153 = vpop.f32.mrb[0].mxu0
    %v154 = vadd.f32 0.0, %v153
    %v155 = vpop.f32.mrb[0].mxu0
    %156 = vdwg.mxu0
    %157 = vmatprep.subr.mxu0 0.0
    %v158 = vand.u32 %v12, 4294901760
    %v159 = vsub.f32 %v12, %v158
    %v160 = vand.u32 %v159, 4294901760
    %v161 = vsub.f32 %v159, %v160
    %v162 = vand.u32 %v161, 4294901760
    %163 = vmatpush1.msra.mxu0 %v162
    %164 = vmatprep.subr.mxu0 0.0
    %v165 = vand.u32 %v13, 4294901760
    %v166 = vsub.f32 %v13, %v165
    %v167 = vand.u32 %v166, 4294901760
    %v168 = vsub.f32 %v166, %v167
    %v169 = vand.u32 %v168, 4294901760
    %170 = vmatpush1.msra.mxu0 %v169
    %171 = vmatprep.subr.mxu0 0.0
    %v172 = vand.u32 %v14, 4294901760
    %v173 = vsub.f32 %v14, %v172
    %v174 = vand.u32 %v173, 4294901760
    %v175 = vsub.f32 %v173, %v174
    %v176 = vand.u32 %v175, 4294901760
    %177 = vmatpush1.msra.mxu0 %v176
    %178 = vmatprep.subr.mxu0 0.0
    %v179 = vand.u32 %v15, 4294901760
    %v180 = vsub.f32 %v15, %v179
    %v181 = vand.u32 %v180, 4294901760
    %v182 = vsub.f32 %v180, %v181
    %v183 = vand.u32 %v182, 4294901760
    %184 = vmatpush1.msra.mxu0 %v183
    %185 = vmatprep.subr.mxu0 0.0
    %186 = vmatpush1.msra.mxu0 0.0
    %187 = vmatprep.subr.mxu0 0.0
    %188 = vmatpush1.msra.mxu0 0.0
    %189 = vmatprep.subr.mxu0 0.0
    %190 = vmatpush1.msra.mxu0 0.0
    %191 = vmatprep.subr.mxu0 0.0
    %192 = vmatpush1.msra.mxu0 0.0
    %193 = vmatprep.subr.mxu0 0.0
    %194 = vmatpush1.msra.mxu0 0.0
    %195 = vmatprep.subr.mxu0 0.0
    %196 = vmatpush1.msra.mxu0 0.0
    %197 = vmatprep.subr.mxu0 0.0
    %198 = vmatpush1.msra.mxu0 0.0
    %199 = vmatprep.subr.mxu0 0.0
    %200 = vmatpush1.msra.mxu0 0.0
    %201 = vmatprep.subr.mxu0 0.0
    %202 = vmatpush1.msra.mxu0 0.0
    %203 = vmatprep.subr.mxu0 0.0
    %204 = vmatpush1.msra.mxu0 0.0
    %205 = vmatprep.subr.mxu0 0.0
    %206 = vmatpush1.msra.mxu0 0.0
    %207 = vmatprep.subr.mxu0 0.0
    %208 = vmatpush1.msra.mxu0 0.0
    %209 = vmatprep.subr.mxu0 0.0
    %210 = vmatpush1.msra.mxu0 0.0
    %211 = vmatprep.subr.mxu0 0.0
    %212 = vmatpush1.msra.mxu0 0.0
    %213 = vmatprep.subr.mxu0 0.0
    %214 = vmatpush1.msra.mxu0 0.0
    %215 = vmatprep.subr.mxu0 0.0
    %216 = vmatpush1.msra.mxu0 0.0
    %217 = vmatprep.subr.mxu0 0.0
    %218 = vmatpush1.msra.mxu0 0.0
    %219 = vmatprep.subr.mxu0 0.0
    %220 = vmatpush1.msra.mxu0 0.0
    %221 = vmatprep.subr.mxu0 0.0
    %222 = vmatpush1.msra.mxu0 0.0
    %223 = vmatprep.subr.mxu0 0.0
    %224 = vmatpush1.msra.mxu0 0.0
    %225 = vmatprep.subr.mxu0 0.0
    %226 = vmatpush1.msra.mxu0 0.0
    %227 = vmatprep.subr.mxu0 0.0
    %228 = vmatpush1.msra.mxu0 0.0
    %229 = vmatprep.subr.mxu0 0.0
    %230 = vmatpush1.msra.mxu0 0.0
    %231 = vmatprep.subr.mxu0 0.0
    %232 = vmatpush1.msra.mxu0 0.0
    %233 = vmatprep.subr.mxu0 0.0
    %234 = vmatpush1.msra.mxu0 0.0
    %235 = vmatprep.subr.mxu0 0.0
    %236 = vmatpush1.msra.mxu0 0.0
    %237 = vmatprep.subr.mxu0 0.0
    %238 = vmatpush1.msra.mxu0 0.0
    %239 = vmatprep.subr.mxu0 0.0
    %240 = vmatpush1.msra.mxu0 0.0
    %241 = vmatprep.mubr.f32.mxu0 0.0
    %v242 = vand.u32 %v37, 4294901760
    %243 = vmatmul.mubr.f32.gmra.mrb[0].mxu0 %v242
    %v244 = vpop.f32.mrb[0].mxu0
    %v245 = vadd.f32 %v124, %v244
    %v246 = vpop.f32.mrb[0].mxu0
    %247 = vmatprep.mubr.f32.mxu0 0.0
    %v248 = vand.u32 %v40, 4294901760
    %249 = vmatmul.mubr.f32.gmra.mrb[0].mxu0 %v248
    %v250 = vpop.f32.mrb[0].mxu0
    %v251 = vadd.f32 %v134, %v250
    %v252 = vpop.f32.mrb[0].mxu0
    %253 = vmatprep.mubr.f32.mxu0 0.0
    %v254 = vand.u32 %v43, 4294901760
    %255 = vmatmul.mubr.f32.gmra.mrb[0].mxu0 %v254
    %v256 = vpop.f32.mrb[0].mxu0
    %v257 = vadd.f32 %v144, %v256
    %v258 = vpop.f32.mrb[0].mxu0
    %259 = vmatprep.mubr.f32.mxu0 0.0
    %v260 = vand.u32 %v46, 4294901760
    %261 = vmatmul.mubr.f32.gmra.mrb[0].mxu0 %v260
    %v262 = vpop.f32.mrb[0].mxu0
    %v263 = vadd.f32 %v154, %v262
    %v264 = vpop.f32.mrb[0].mxu0
    %265 = vdwg.mxu0
    %266 = vmatprep.subr.mxu0 0.0
    %v267 = vand.u32 %v12, 4294901760
    %v268 = vsub.f32 %v12, %v267
    %269 = vmatpush1.msra.mxu0 %v268
    %270 = vmatprep.subr.mxu0 0.0
    %v271 = vand.u32 %v13, 4294901760
    %v272 = vsub.f32 %v13, %v271
    %273 = vmatpush1.msra.mxu0 %v272
    %274 = vmatprep.subr.mxu0 0.0
    %v275 = vand.u32 %v14, 4294901760
    %v276 = vsub.f32 %v14, %v275
    %277 = vmatpush1.msra.mxu0 %v276
    %278 = vmatprep.subr.mxu0 0.0
    %v279 = vand.u32 %v15, 4294901760
    %v280 = vsub.f32 %v15, %v279
    %281 = vmatpush1.msra.mxu0 %v280
    %282 = vmatprep.subr.mxu0 0.0
    %283 = vmatpush1.msra.mxu0 0.0
    %284 = vmatprep.subr.mxu0 0.0
    %285 = vmatpush1.msra.mxu0 0.0
    %286 = vmatprep.subr.mxu0 0.0
    %287 = vmatpush1.msra.mxu0 0.0
    %288 = vmatprep.subr.mxu0 0.0
    %289 = vmatpush1.msra.mxu0 0.0
    %290 = vmatprep.subr.mxu0 0.0
    %291 = vmatpush1.msra.mxu0 0.0
    %292 = vmatprep.subr.mxu0 0.0
    %293 = vmatpush1.msra.mxu0 0.0
    %294 = vmatprep.subr.mxu0 0.0
    %295 = vmatpush1.msra.mxu0 0.0
    %296 = vmatprep.subr.mxu0 0.0
    %297 = vmatpush1.msra.mxu0 0.0
    %298 = vmatprep.subr.mxu0 0.0
    %299 = vmatpush1.msra.mxu0 0.0
    %300 = vmatprep.subr.mxu0 0.0
    %301 = vmatpush1.msra.mxu0 0.0
    %302 = vmatprep.subr.mxu0 0.0
    %303 = vmatpush1.msra.mxu0 0.0
    %304 = vmatprep.subr.mxu0 0.0
    %305 = vmatpush1.msra.mxu0 0.0
    %306 = vmatprep.subr.mxu0 0.0
    %307 = vmatpush1.msra.mxu0 0.0
    %308 = vmatprep.subr.mxu0 0.0
    %309 = vmatpush1.msra.mxu0 0.0
    %310 = vmatprep.subr.mxu0 0.0
    %311 = vmatpush1.msra.mxu0 0.0
    %312 = vmatprep.subr.mxu0 0.0
    %313 = vmatpush1.msra.mxu0 0.0
    %314 = vmatprep.subr.mxu0 0.0
    %315 = vmatpush1.msra.mxu0 0.0
    %316 = vmatprep.subr.mxu0 0.0
    %317 = vmatpush1.msra.mxu0 0.0
    %318 = vmatprep.subr.mxu0 0.0
    %319 = vmatpush1.msra.mxu0 0.0
    %320 = vmatprep.subr.mxu0 0.0
    %321 = vmatpush1.msra.mxu0 0.0
    %322 = vmatprep.subr.mxu0 0.0
    %323 = vmatpush1.msra.mxu0 0.0
    %324 = vmatprep.subr.mxu0 0.0
    %325 = vmatpush1.msra.mxu0 0.0
    %326 = vmatprep.subr.mxu0 0.0
    %327 = vmatpush1.msra.mxu0 0.0
    %328 = vmatprep.subr.mxu0 0.0
    %329 = vmatpush1.msra.mxu0 0.0
    %330 = vmatprep.subr.mxu0 0.0
    %331 = vmatpush1.msra.mxu0 0.0
    %332 = vmatprep.subr.mxu0 0.0
    %333 = vmatpush1.msra.mxu0 0.0
    %334 = vmatprep.subr.mxu0 0.0
    %335 = vmatpush1.msra.mxu0 0.0
    %336 = vmatprep.subr.mxu0 0.0
    %337 = vmatpush1.msra.mxu0 0.0
    %338 = vmatprep.mubr.f32.mxu0 0.0
    %v339 = vand.u32 %v37, 4294901760
    %v340 = vsub.f32 %v37, %v339
    %341 = vmatmul.mubr.f32.gmra.mrb[0].mxu0 %v340
    %v342 = vpop.f32.mrb[0].mxu0
    %v343 = vadd.f32 %v245, %v342
    %v344 = vpop.f32.mrb[0].mxu0
    %345 = vmatprep.mubr.f32.mxu0 0.0
    %v346 = vand.u32 %v40, 4294901760
    %v347 = vsub.f32 %v40, %v346
    %348 = vmatmul.mubr.f32.gmra.mrb[0].mxu0 %v347
    %v349 = vpop.f32.mrb[0].mxu0
    %v350 = vadd.f32 %v251, %v349
    %v351 = vpop.f32.mrb[0].mxu0
    %352 = vmatprep.mubr.f32.mxu0 0.0
    %v353 = vand.u32 %v43, 4294901760
    %v354 = vsub.f32 %v43, %v353
    %355 = vmatmul.mubr.f32.gmra.mrb[0].mxu0 %v354
    %v356 = vpop.f32.mrb[0].mxu0
    %v357 = vadd.f32 %v257, %v356
    %v358 = vpop.f32.mrb[0].mxu0
    %359 = vmatprep.mubr.f32.mxu0 0.0
    %v360 = vand.u32 %v46, 4294901760
    %v361 = vsub.f32 %v46, %v360
    %362 = vmatmul.mubr.f32.gmra.mrb[0].mxu0 %v361
    %v363 = vpop.f32.mrb[0].mxu0
    %v364 = vadd.f32 %v263, %v363
    %v365 = vpop.f32.mrb[0].mxu0
    %366 = vdwg.mxu0
    %367 = vmatprep.subr.mxu0 0.0
    %v368 = vand.u32 %v12, 4294901760
    %369 = vmatpush1.msra.mxu0 %v368
    %370 = vmatprep.subr.mxu0 0.0
    %v371 = vand.u32 %v13, 4294901760
    %372 = vmatpush1.msra.mxu0 %v371
    %373 = vmatprep.subr.mxu0 0.0
    %v374 = vand.u32 %v14, 4294901760
    %375 = vmatpush1.msra.mxu0 %v374
    %376 = vmatprep.subr.mxu0 0.0
    %v377 = vand.u32 %v15, 4294901760
    %378 = vmatpush1.msra.mxu0 %v377
    %379 = vmatprep.subr.mxu0 0.0
    %380 = vmatpush1.msra.mxu0 0.0
    %381 = vmatprep.subr.mxu0 0.0
    %382 = vmatpush1.msra.mxu0 0.0
    %383 = vmatprep.subr.mxu0 0.0
    %384 = vmatpush1.msra.mxu0 0.0
    %385 = vmatprep.subr.mxu0 0.0
    %386 = vmatpush1.msra.mxu0 0.0
    %387 = vmatprep.subr.mxu0 0.0
    %388 = vmatpush1.msra.mxu0 0.0
    %389 = vmatprep.subr.mxu0 0.0
    %390 = vmatpush1.msra.mxu0 0.0
    %391 = vmatprep.subr.mxu0 0.0
    %392 = vmatpush1.msra.mxu0 0.0
    %393 = vmatprep.subr.mxu0 0.0
    %394 = vmatpush1.msra.mxu0 0.0
    %395 = vmatprep.subr.mxu0 0.0
    %396 = vmatpush1.msra.mxu0 0.0
    %397 = vmatprep.subr.mxu0 0.0
    %398 = vmatpush1.msra.mxu0 0.0
    %399 = vmatprep.subr.mxu0 0.0
    %400 = vmatpush1.msra.mxu0 0.0
    %401 = vmatprep.subr.mxu0 0.0
    %402 = vmatpush1.msra.mxu0 0.0
    %403 = vmatprep.subr.mxu0 0.0
    %404 = vmatpush1.msra.mxu0 0.0
    %405 = vmatprep.subr.mxu0 0.0
    %406 = vmatpush1.msra.mxu0 0.0
    %407 = vmatprep.subr.mxu0 0.0
    %408 = vmatpush1.msra.mxu0 0.0
    %409 = vmatprep.subr.mxu0 0.0
    %410 = vmatpush1.msra.mxu0 0.0
    %411 = vmatprep.subr.mxu0 0.0
    %412 = vmatpush1.msra.mxu0 0.0
    %413 = vmatprep.subr.mxu0 0.0
    %414 = vmatpush1.msra.mxu0 0.0
    %415 = vmatprep.subr.mxu0 0.0
    %416 = vmatpush1.msra.mxu0 0.0
    %417 = vmatprep.subr.mxu0 0.0
    %418 = vmatpush1.msra.mxu0 0.0
    %419 = vmatprep.subr.mxu0 0.0
    %420 = vmatpush1.msra.mxu0 0.0
    %421 = vmatprep.subr.mxu0 0.0
    %422 = vmatpush1.msra.mxu0 0.0
    %423 = vmatprep.subr.mxu0 0.0
    %424 = vmatpush1.msra.mxu0 0.0
    %425 = vmatprep.subr.mxu0 0.0
    %426 = vmatpush1.msra.mxu0 0.0
    %427 = vmatprep.subr.mxu0 0.0
    %428 = vmatpush1.msra.mxu0 0.0
    %429 = vmatprep.subr.mxu0 0.0
    %430 = vmatpush1.msra.mxu0 0.0
    %431 = vmatprep.subr.mxu0 0.0
    %432 = vmatpush1.msra.mxu0 0.0
    %433 = vmatprep.subr.mxu0 0.0
    %434 = vmatpush1.msra.mxu0 0.0
    %435 = vmatprep.mubr.f32.mxu0 0.0
    %v436 = vand.u32 %v37, 4294901760
    %v437 = vsub.f32 %v37, %v436
    %v438 = vand.u32 %v437, 4294901760
    %439 = vmatmul.mubr.f32.gmra.mrb[0].mxu0 %v438
    %v440 = vpop.f32.mrb[0].mxu0
    %v441 = vadd.f32 %v343, %v440
    %v442 = vpop.f32.mrb[0].mxu0
    %443 = vmatprep.mubr.f32.mxu0 0.0
    %v444 = vand.u32 %v40, 4294901760
    %v445 = vsub.f32 %v40, %v444
    %v446 = vand.u32 %v445, 4294901760
    %447 = vmatmul.mubr.f32.gmra.mrb[0].mxu0 %v446
    %v448 = vpop.f32.mrb[0].mxu0
    %v449 = vadd.f32 %v350, %v448
    %v450 = vpop.f32.mrb[0].mxu0
    %451 = vmatprep.mubr.f32.mxu0 0.0
    %v452 = vand.u32 %v43, 4294901760
    %v453 = vsub.f32 %v43, %v452
    %v454 = vand.u32 %v453, 4294901760
    %455 = vmatmul.mubr.f32.gmra.mrb[0].mxu0 %v454
    %v456 = vpop.f32.mrb[0].mxu0
    %v457 = vadd.f32 %v357, %v456
    %v458 = vpop.f32.mrb[0].mxu0
    %459 = vmatprep.mubr.f32.mxu0 0.0
    %v460 = vand.u32 %v46, 4294901760
    %v461 = vsub.f32 %v46, %v460
    %v462 = vand.u32 %v461, 4294901760
    %463 = vmatmul.mubr.f32.gmra.mrb[0].mxu0 %v462
    %v464 = vpop.f32.mrb[0].mxu0
    %v465 = vadd.f32 %v364, %v464
    %v466 = vpop.f32.mrb[0].mxu0
    %467 = vdwg.mxu0
    %468 = vmatprep.subr.mxu0 0.0
    %v469 = vand.u32 %v12, 4294901760
    %v470 = vsub.f32 %v12, %v469
    %v471 = vand.u32 %v470, 4294901760
    %472 = vmatpush1.msra.mxu0 %v471
    %473 = vmatprep.subr.mxu0 0.0
    %v474 = vand.u32 %v13, 4294901760
    %v475 = vsub.f32 %v13, %v474
    %v476 = vand.u32 %v475, 4294901760
    %477 = vmatpush1.msra.mxu0 %v476
    %478 = vmatprep.subr.mxu0 0.0
    %v479 = vand.u32 %v14, 4294901760
    %v480 = vsub.f32 %v14, %v479
    %v481 = vand.u32 %v480, 4294901760
    %482 = vmatpush1.msra.mxu0 %v481
    %483 = vmatprep.subr.mxu0 0.0
    %v484 = vand.u32 %v15, 4294901760
    %v485 = vsub.f32 %v15, %v484
    %v486 = vand.u32 %v485, 4294901760
    %487 = vmatpush1.msra.mxu0 %v486
    %488 = vmatprep.subr.mxu0 0.0
    %489 = vmatpush1.msra.mxu0 0.0
    %490 = vmatprep.subr.mxu0 0.0
    %491 = vmatpush1.msra.mxu0 0.0
    %492 = vmatprep.subr.mxu0 0.0
    %493 = vmatpush1.msra.mxu0 0.0
    %494 = vmatprep.subr.mxu0 0.0
    %495 = vmatpush1.msra.mxu0 0.0
    %496 = vmatprep.subr.mxu0 0.0
    %497 = vmatpush1.msra.mxu0 0.0
    %498 = vmatprep.subr.mxu0 0.0
    %499 = vmatpush1.msra.mxu0 0.0
    %500 = vmatprep.subr.mxu0 0.0
    %501 = vmatpush1.msra.mxu0 0.0
    %502 = vmatprep.subr.mxu0 0.0
    %503 = vmatpush1.msra.mxu0 0.0
    %504 = vmatprep.subr.mxu0 0.0
    %505 = vmatpush1.msra.mxu0 0.0
    %506 = vmatprep.subr.mxu0 0.0
    %507 = vmatpush1.msra.mxu0 0.0
    %508 = vmatprep.subr.mxu0 0.0
    %509 = vmatpush1.msra.mxu0 0.0
    %510 = vmatprep.subr.mxu0 0.0
    %511 = vmatpush1.msra.mxu0 0.0
    %512 = vmatprep.subr.mxu0 0.0
    %513 = vmatpush1.msra.mxu0 0.0
    %514 = vmatprep.subr.mxu0 0.0
    %515 = vmatpush1.msra.mxu0 0.0
    %516 = vmatprep.subr.mxu0 0.0
    %517 = vmatpush1.msra.mxu0 0.0
    %518 = vmatprep.subr.mxu0 0.0
    %519 = vmatpush1.msra.mxu0 0.0
    %520 = vmatprep.subr.mxu0 0.0
    %521 = vmatpush1.msra.mxu0 0.0
    %522 = vmatprep.subr.mxu0 0.0
    %523 = vmatpush1.msra.mxu0 0.0
    %524 = vmatprep.subr.mxu0 0.0
    %525 = vmatpush1.msra.mxu0 0.0
    %526 = vmatprep.subr.mxu0 0.0
    %527 = vmatpush1.msra.mxu0 0.0
    %528 = vmatprep.subr.mxu0 0.0
    %529 = vmatpush1.msra.mxu0 0.0
    %530 = vmatprep.subr.mxu0 0.0
    %531 = vmatpush1.msra.mxu0 0.0
    %532 = vmatprep.subr.mxu0 0.0
    %533 = vmatpush1.msra.mxu0 0.0
    %534 = vmatprep.subr.mxu0 0.0
    %535 = vmatpush1.msra.mxu0 0.0
    %536 = vmatprep.subr.mxu0 0.0
    %537 = vmatpush1.msra.mxu0 0.0
    %538 = vmatprep.subr.mxu0 0.0
    %539 = vmatpush1.msra.mxu0 0.0
    %540 = vmatprep.subr.mxu0 0.0
    %541 = vmatpush1.msra.mxu0 0.0
    %542 = vmatprep.subr.mxu0 0.0
    %543 = vmatpush1.msra.mxu0 0.0
    %544 = vmatprep.mubr.f32.mxu0 0.0
    %v545 = vand.u32 %v37, 4294901760
    %546 = vmatmul.mubr.f32.gmra.mrb[0].mxu0 %v545
    %v547 = vpop.f32.mrb[0].mxu0
    %v548 = vadd.f32 %v441, %v547
    %v549 = vpop.f32.mrb[0].mxu0
    %550 = vmatprep.mubr.f32.mxu0 0.0
    %v551 = vand.u32 %v40, 4294901760
    %552 = vmatmul.mubr.f32.gmra.mrb[0].mxu0 %v551
    %v553 = vpop.f32.mrb[0].mxu0
    %v554 = vadd.f32 %v449, %v553
    %v555 = vpop.f32.mrb[0].mxu0
    %556 = vmatprep.mubr.f32.mxu0 0.0
    %v557 = vand.u32 %v43, 4294901760
    %558 = vmatmul.mubr.f32.gmra.mrb[0].mxu0 %v557
    %v559 = vpop.f32.mrb[0].mxu0
    %v560 = vadd.f32 %v457, %v559
    %v561 = vpop.f32.mrb[0].mxu0
    %562 = vmatprep.mubr.f32.mxu0 0.0
    %v563 = vand.u32 %v46, 4294901760
    %564 = vmatmul.mubr.f32.gmra.mrb[0].mxu0 %v563
    %v565 = vpop.f32.mrb[0].mxu0
    %v566 = vadd.f32 %v465, %v565
    %v567 = vpop.f32.mrb[0].mxu0
    %568 = vdwg.mxu0
    %569 = vmatprep.subr.mxu0 0.0
    %v570 = vand.u32 %v12, 4294901760
    %571 = vmatpush1.msra.mxu0 %v570
    %572 = vmatprep.subr.mxu0 0.0
    %v573 = vand.u32 %v13, 4294901760
    %574 = vmatpush1.msra.mxu0 %v573
    %575 = vmatprep.subr.mxu0 0.0
    %v576 = vand.u32 %v14, 4294901760
    %577 = vmatpush1.msra.mxu0 %v576
    %578 = vmatprep.subr.mxu0 0.0
    %v579 = vand.u32 %v15, 4294901760
    %580 = vmatpush1.msra.mxu0 %v579
    %581 = vmatprep.subr.mxu0 0.0
    %582 = vmatpush1.msra.mxu0 0.0
    %583 = vmatprep.subr.mxu0 0.0
    %584 = vmatpush1.msra.mxu0 0.0
    %585 = vmatprep.subr.mxu0 0.0
    %586 = vmatpush1.msra.mxu0 0.0
    %587 = vmatprep.subr.mxu0 0.0
    %588 = vmatpush1.msra.mxu0 0.0
    %589 = vmatprep.subr.mxu0 0.0
    %590 = vmatpush1.msra.mxu0 0.0
    %591 = vmatprep.subr.mxu0 0.0
    %592 = vmatpush1.msra.mxu0 0.0
    %593 = vmatprep.subr.mxu0 0.0
    %594 = vmatpush1.msra.mxu0 0.0
    %595 = vmatprep.subr.mxu0 0.0
    %596 = vmatpush1.msra.mxu0 0.0
    %597 = vmatprep.subr.mxu0 0.0
    %598 = vmatpush1.msra.mxu0 0.0
    %599 = vmatprep.subr.mxu0 0.0
    %600 = vmatpush1.msra.mxu0 0.0
    %601 = vmatprep.subr.mxu0 0.0
    %602 = vmatpush1.msra.mxu0 0.0
    %603 = vmatprep.subr.mxu0 0.0
    %604 = vmatpush1.msra.mxu0 0.0
    %605 = vmatprep.subr.mxu0 0.0
    %606 = vmatpush1.msra.mxu0 0.0
    %607 = vmatprep.subr.mxu0 0.0
    %608 = vmatpush1.msra.mxu0 0.0
    %609 = vmatprep.subr.mxu0 0.0
    %610 = vmatpush1.msra.mxu0 0.0
    %611 = vmatprep.subr.mxu0 0.0
    %612 = vmatpush1.msra.mxu0 0.0
    %613 = vmatprep.subr.mxu0 0.0
    %614 = vmatpush1.msra.mxu0 0.0
    %615 = vmatprep.subr.mxu0 0.0
    %616 = vmatpush1.msra.mxu0 0.0
    %617 = vmatprep.subr.mxu0 0.0
    %618 = vmatpush1.msra.mxu0 0.0
    %619 = vmatprep.subr.mxu0 0.0
    %620 = vmatpush1.msra.mxu0 0.0
    %621 = vmatprep.subr.mxu0 0.0
    %622 = vmatpush1.msra.mxu0 0.0
    %623 = vmatprep.subr.mxu0 0.0
    %624 = vmatpush1.msra.mxu0 0.0
    %625 = vmatprep.subr.mxu0 0.0
    %626 = vmatpush1.msra.mxu0 0.0
    %627 = vmatprep.subr.mxu0 0.0
    %628 = vmatpush1.msra.mxu0 0.0
    %629 = vmatprep.subr.mxu0 0.0
    %630 = vmatpush1.msra.mxu0 0.0
    %631 = vmatprep.subr.mxu0 0.0
    %632 = vmatpush1.msra.mxu0 0.0
    %633 = vmatprep.subr.mxu0 0.0
    %634 = vmatpush1.msra.mxu0 0.0
    %635 = vmatprep.subr.mxu0 0.0
    %636 = vmatpush1.msra.mxu0 0.0
    %637 = vmatprep.mubr.f32.mxu0 0.0
    %v638 = vand.u32 %v37, 4294901760
    %639 = vmatmul.mubr.f32.gmra.mrb[0].mxu0 %v638
    %v640 = vpop.f32.mrb[0].mxu0
    %v641 = vadd.f32 %v548, %v640
    %v642 = vpop.f32.mrb[0].mxu0
    %643 = vmatprep.mubr.f32.mxu0 0.0
    %v644 = vand.u32 %v40, 4294901760
    %645 = vmatmul.mubr.f32.gmra.mrb[0].mxu0 %v644
    %v646 = vpop.f32.mrb[0].mxu0
    %v647 = vadd.f32 %v554, %v646
    %v648 = vpop.f32.mrb[0].mxu0
    %649 = vmatprep.mubr.f32.mxu0 0.0
    %v650 = vand.u32 %v43, 4294901760
    %651 = vmatmul.mubr.f32.gmra.mrb[0].mxu0 %v650
    %v652 = vpop.f32.mrb[0].mxu0
    %v653 = vadd.f32 %v560, %v652
    %v654 = vpop.f32.mrb[0].mxu0
    %655 = vmatprep.mubr.f32.mxu0 0.0
    %v656 = vand.u32 %v46, 4294901760
    %657 = vmatmul.mubr.f32.gmra.mrb[0].mxu0 %v656
    %v658 = vpop.f32.mrb[0].mxu0
    %v659 = vadd.f32 %v566, %v658
    %v660 = vpop.f32.mrb[0].mxu0
    %661 = vdwg.mxu0
    %vm662 = vcmask 64512
    %663 = vst.msk [vmem:[#allocation2] sm:$0xff] %vm662, %v641
    %664 = vst.msk [vmem:[#allocation2 + $0x20] sm:$0xff] %vm662, %v647
    %665 = vst.msk [vmem:[#allocation2 + $0x40] sm:$0xff] %vm662, %v653
    %666 = vst.msk [vmem:[#allocation2 + $0x60] sm:$0xff] %vm662, %v659
    %667 = vmatprep.subr.mxu0 0.0
    %v668 = vand.u32 %v17, 4294901760
    %669 = vmatpush1.msra.mxu0 %v668
    %670 = vmatprep.subr.mxu0 0.0
    %v671 = vand.u32 %v18, 4294901760
    %672 = vmatpush1.msra.mxu0 %v671
    %673 = vmatprep.subr.mxu0 0.0
    %v674 = vand.u32 %v19, 4294901760
    %675 = vmatpush1.msra.mxu0 %v674
    %676 = vmatprep.subr.mxu0 0.0
    %v677 = vand.u32 %v20, 4294901760
    %678 = vmatpush1.msra.mxu0 %v677
    %679 = vmatprep.subr.mxu0 0.0
    %680 = vmatpush1.msra.mxu0 0.0
    %681 = vmatprep.subr.mxu0 0.0
    %682 = vmatpush1.msra.mxu0 0.0
    %683 = vmatprep.subr.mxu0 0.0
    %684 = vmatpush1.msra.mxu0 0.0
    %685 = vmatprep.subr.mxu0 0.0
    %686 = vmatpush1.msra.mxu0 0.0
    %687 = vmatprep.subr.mxu0 0.0
    %688 = vmatpush1.msra.mxu0 0.0
    %689 = vmatprep.subr.mxu0 0.0
    %690 = vmatpush1.msra.mxu0 0.0
    %691 = vmatprep.subr.mxu0 0.0
    %692 = vmatpush1.msra.mxu0 0.0
    %693 = vmatprep.subr.mxu0 0.0
    %694 = vmatpush1.msra.mxu0 0.0
    %695 = vmatprep.subr.mxu0 0.0
    %696 = vmatpush1.msra.mxu0 0.0
    %697 = vmatprep.subr.mxu0 0.0
    %698 = vmatpush1.msra.mxu0 0.0
    %699 = vmatprep.subr.mxu0 0.0
    %700 = vmatpush1.msra.mxu0 0.0
    %701 = vmatprep.subr.mxu0 0.0
    %702 = vmatpush1.msra.mxu0 0.0
    %703 = vmatprep.subr.mxu0 0.0
    %704 = vmatpush1.msra.mxu0 0.0
    %705 = vmatprep.subr.mxu0 0.0
    %706 = vmatpush1.msra.mxu0 0.0
    %707 = vmatprep.subr.mxu0 0.0
    %708 = vmatpush1.msra.mxu0 0.0
    %709 = vmatprep.subr.mxu0 0.0
    %710 = vmatpush1.msra.mxu0 0.0
    %711 = vmatprep.subr.mxu0 0.0
    %712 = vmatpush1.msra.mxu0 0.0
    %713 = vmatprep.subr.mxu0 0.0
    %714 = vmatpush1.msra.mxu0 0.0
    %715 = vmatprep.subr.mxu0 0.0
    %716 = vmatpush1.msra.mxu0 0.0
    %717 = vmatprep.subr.mxu0 0.0
    %718 = vmatpush1.msra.mxu0 0.0
    %719 = vmatprep.subr.mxu0 0.0
    %720 = vmatpush1.msra.mxu0 0.0
    %721 = vmatprep.subr.mxu0 0.0
    %722 = vmatpush1.msra.mxu0 0.0
    %723 = vmatprep.subr.mxu0 0.0
    %724 = vmatpush1.msra.mxu0 0.0
    %725 = vmatprep.subr.mxu0 0.0
    %726 = vmatpush1.msra.mxu0 0.0
    %727 = vmatprep.subr.mxu0 0.0
    %728 = vmatpush1.msra.mxu0 0.0
    %729 = vmatprep.subr.mxu0 0.0
    %730 = vmatpush1.msra.mxu0 0.0
    %731 = vmatprep.subr.mxu0 0.0
    %732 = vmatpush1.msra.mxu0 0.0
    %733 = vmatprep.subr.mxu0 0.0
    %734 = vmatpush1.msra.mxu0 0.0
    %735 = vmatprep.mubr.f32.mxu0 0.0
    %v736 = vand.u32 %v37, 4294901760
    %v737 = vsub.f32 %v37, %v736
    %v738 = vand.u32 %v737, 4294901760
    %v739 = vsub.f32 %v737, %v738
    %v740 = vand.u32 %v739, 4294901760
    %741 = vmatmul.mubr.f32.gmra.mrb[0].mxu0 %v740
    %v742 = vpop.f32.mrb[0].mxu0
    %v743 = vadd.f32 0.0, %v742
    %v744 = vpop.f32.mrb[0].mxu0
    %745 = vmatprep.mubr.f32.mxu0 0.0
    %v746 = vand.u32 %v40, 4294901760
    %v747 = vsub.f32 %v40, %v746
    %v748 = vand.u32 %v747, 4294901760
    %v749 = vsub.f32 %v747, %v748
    %v750 = vand.u32 %v749, 4294901760
    %751 = vmatmul.mubr.f32.gmra.mrb[0].mxu0 %v750
    %v752 = vpop.f32.mrb[0].mxu0
    %v753 = vadd.f32 0.0, %v752
    %v754 = vpop.f32.mrb[0].mxu0
    %755 = vmatprep.mubr.f32.mxu0 0.0
    %v756 = vand.u32 %v43, 4294901760
    %v757 = vsub.f32 %v43, %v756
    %v758 = vand.u32 %v757, 4294901760
    %v759 = vsub.f32 %v757, %v758
    %v760 = vand.u32 %v759, 4294901760
    %761 = vmatmul.mubr.f32.gmra.mrb[0].mxu0 %v760
    %v762 = vpop.f32.mrb[0].mxu0
    %v763 = vadd.f32 0.0, %v762
    %v764 = vpop.f32.mrb[0].mxu0
    %765 = vmatprep.mubr.f32.mxu0 0.0
    %v766 = vand.u32 %v46, 4294901760
    %v767 = vsub.f32 %v46, %v766
    %v768 = vand.u32 %v767, 4294901760
    %v769 = vsub.f32 %v767, %v768
    %v770 = vand.u32 %v769, 4294901760
    %771 = vmatmul.mubr.f32.gmra.mrb[0].mxu0 %v770
    %v772 = vpop.f32.mrb[0].mxu0
    %v773 = vadd.f32 0.0, %v772
    %v774 = vpop.f32.mrb[0].mxu0
    %775 = vdwg.mxu0
    %776 = vmatprep.subr.mxu0 0.0
    %v777 = vand.u32 %v17, 4294901760
    %v778 = vsub.f32 %v17, %v777
    %v779 = vand.u32 %v778, 4294901760
    %v780 = vsub.f32 %v778, %v779
    %v781 = vand.u32 %v780, 4294901760
    %782 = vmatpush1.msra.mxu0 %v781
    %783 = vmatprep.subr.mxu0 0.0
    %v784 = vand.u32 %v18, 4294901760
    %v785 = vsub.f32 %v18, %v784
    %v786 = vand.u32 %v785, 4294901760
    %v787 = vsub.f32 %v785, %v786
    %v788 = vand.u32 %v787, 4294901760
    %789 = vmatpush1.msra.mxu0 %v788
    %790 = vmatprep.subr.mxu0 0.0
    %v791 = vand.u32 %v19, 4294901760
    %v792 = vsub.f32 %v19, %v791
    %v793 = vand.u32 %v792, 4294901760
    %v794 = vsub.f32 %v792, %v793
    %v795 = vand.u32 %v794, 4294901760
    %796 = vmatpush1.msra.mxu0 %v795
    %797 = vmatprep.subr.mxu0 0.0
    %v798 = vand.u32 %v20, 4294901760
    %v799 = vsub.f32 %v20, %v798
    %v800 = vand.u32 %v799, 4294901760
    %v801 = vsub.f32 %v799, %v800
    %v802 = vand.u32 %v801, 4294901760
    %803 = vmatpush1.msra.mxu0 %v802
    %804 = vmatprep.subr.mxu0 0.0
    %805 = vmatpush1.msra.mxu0 0.0
    %806 = vmatprep.subr.mxu0 0.0
    %807 = vmatpush1.msra.mxu0 0.0
    %808 = vmatprep.subr.mxu0 0.0
    %809 = vmatpush1.msra.mxu0 0.0
    %810 = vmatprep.subr.mxu0 0.0
    %811 = vmatpush1.msra.mxu0 0.0
    %812 = vmatprep.subr.mxu0 0.0
    %813 = vmatpush1.msra.mxu0 0.0
    %814 = vmatprep.subr.mxu0 0.0
    %815 = vmatpush1.msra.mxu0 0.0
    %816 = vmatprep.subr.mxu0 0.0
    %817 = vmatpush1.msra.mxu0 0.0
    %818 = vmatprep.subr.mxu0 0.0
    %819 = vmatpush1.msra.mxu0 0.0
    %820 = vmatprep.subr.mxu0 0.0
    %821 = vmatpush1.msra.mxu0 0.0
    %822 = vmatprep.subr.mxu0 0.0
    %823 = vmatpush1.msra.mxu0 0.0
    %824 = vmatprep.subr.mxu0 0.0
    %825 = vmatpush1.msra.mxu0 0.0
    %826 = vmatprep.subr.mxu0 0.0
    %827 = vmatpush1.msra.mxu0 0.0
    %828 = vmatprep.subr.mxu0 0.0
    %829 = vmatpush1.msra.mxu0 0.0
    %830 = vmatprep.subr.mxu0 0.0
    %831 = vmatpush1.msra.mxu0 0.0
    %832 = vmatprep.subr.mxu0 0.0
    %833 = vmatpush1.msra.mxu0 0.0
    %834 = vmatprep.subr.mxu0 0.0
    %835 = vmatpush1.msra.mxu0 0.0
    %836 = vmatprep.subr.mxu0 0.0
    %837 = vmatpush1.msra.mxu0 0.0
    %838 = vmatprep.subr.mxu0 0.0
    %839 = vmatpush1.msra.mxu0 0.0
    %840 = vmatprep.subr.mxu0 0.0
    %841 = vmatpush1.msra.mxu0 0.0
    %842 = vmatprep.subr.mxu0 0.0
    %843 = vmatpush1.msra.mxu0 0.0
    %844 = vmatprep.subr.mxu0 0.0
    %845 = vmatpush1.msra.mxu0 0.0
    %846 = vmatprep.subr.mxu0 0.0
    %847 = vmatpush1.msra.mxu0 0.0
    %848 = vmatprep.subr.mxu0 0.0
    %849 = vmatpush1.msra.mxu0 0.0
    %850 = vmatprep.subr.mxu0 0.0
    %851 = vmatpush1.msra.mxu0 0.0
    %852 = vmatprep.subr.mxu0 0.0
    %853 = vmatpush1.msra.mxu0 0.0
    %854 = vmatprep.subr.mxu0 0.0
    %855 = vmatpush1.msra.mxu0 0.0
    %856 = vmatprep.subr.mxu0 0.0
    %857 = vmatpush1.msra.mxu0 0.0
    %858 = vmatprep.subr.mxu0 0.0
    %859 = vmatpush1.msra.mxu0 0.0
    %860 = vmatprep.mubr.f32.mxu0 0.0
    %v861 = vand.u32 %v37, 4294901760
    %862 = vmatmul.mubr.f32.gmra.mrb[0].mxu0 %v861
    %v863 = vpop.f32.mrb[0].mxu0
    %v864 = vadd.f32 %v743, %v863
    %v865 = vpop.f32.mrb[0].mxu0
    %866 = vmatprep.mubr.f32.mxu0 0.0
    %v867 = vand.u32 %v40, 4294901760
    %868 = vmatmul.mubr.f32.gmra.mrb[0].mxu0 %v867
    %v869 = vpop.f32.mrb[0].mxu0
    %v870 = vadd.f32 %v753, %v869
    %v871 = vpop.f32.mrb[0].mxu0
    %872 = vmatprep.mubr.f32.mxu0 0.0
    %v873 = vand.u32 %v43, 4294901760
    %874 = vmatmul.mubr.f32.gmra.mrb[0].mxu0 %v873
    %v875 = vpop.f32.mrb[0].mxu0
    %v876 = vadd.f32 %v763, %v875
    %v877 = vpop.f32.mrb[0].mxu0
    %878 = vmatprep.mubr.f32.mxu0 0.0
    %v879 = vand.u32 %v46, 4294901760
    %880 = vmatmul.mubr.f32.gmra.mrb[0].mxu0 %v879
    %v881 = vpop.f32.mrb[0].mxu0
    %v882 = vadd.f32 %v773, %v881
    %v883 = vpop.f32.mrb[0].mxu0
    %884 = vdwg.mxu0
    %885 = vmatprep.subr.mxu0 0.0
    %v886 = vand.u32 %v17, 4294901760
    %v887 = vsub.f32 %v17, %v886
    %888 = vmatpush1.msra.mxu0 %v887
    %889 = vmatprep.subr.mxu0 0.0
    %v890 = vand.u32 %v18, 4294901760
    %v891 = vsub.f32 %v18, %v890
    %892 = vmatpush1.msra.mxu0 %v891
    %893 = vmatprep.subr.mxu0 0.0
    %v894 = vand.u32 %v19, 4294901760
    %v895 = vsub.f32 %v19, %v894
    %896 = vmatpush1.msra.mxu0 %v895
    %897 = vmatprep.subr.mxu0 0.0
    %v898 = vand.u32 %v20, 4294901760
    %v899 = vsub.f32 %v20, %v898
    %900 = vmatpush1.msra.mxu0 %v899
    %901 = vmatprep.subr.mxu0 0.0
    %902 = vmatpush1.msra.mxu0 0.0
    %903 = vmatprep.subr.mxu0 0.0
    %904 = vmatpush1.msra.mxu0 0.0
    %905 = vmatprep.subr.mxu0 0.0
    %906 = vmatpush1.msra.mxu0 0.0
    %907 = vmatprep.subr.mxu0 0.0
    %908 = vmatpush1.msra.mxu0 0.0
    %909 = vmatprep.subr.mxu0 0.0
    %910 = vmatpush1.msra.mxu0 0.0
    %911 = vmatprep.subr.mxu0 0.0
    %912 = vmatpush1.msra.mxu0 0.0
    %913 = vmatprep.subr.mxu0 0.0
    %914 = vmatpush1.msra.mxu0 0.0
    %915 = vmatprep.subr.mxu0 0.0
    %916 = vmatpush1.msra.mxu0 0.0
    %917 = vmatprep.subr.mxu0 0.0
    %918 = vmatpush1.msra.mxu0 0.0
    %919 = vmatprep.subr.mxu0 0.0
    %920 = vmatpush1.msra.mxu0 0.0
    %921 = vmatprep.subr.mxu0 0.0
    %922 = vmatpush1.msra.mxu0 0.0
    %923 = vmatprep.subr.mxu0 0.0
    %924 = vmatpush1.msra.mxu0 0.0
    %925 = vmatprep.subr.mxu0 0.0
    %926 = vmatpush1.msra.mxu0 0.0
    %927 = vmatprep.subr.mxu0 0.0
    %928 = vmatpush1.msra.mxu0 0.0
    %929 = vmatprep.subr.mxu0 0.0
    %930 = vmatpush1.msra.mxu0 0.0
    %931 = vmatprep.subr.mxu0 0.0
    %932 = vmatpush1.msra.mxu0 0.0
    %933 = vmatprep.subr.mxu0 0.0
    %934 = vmatpush1.msra.mxu0 0.0
    %935 = vmatprep.subr.mxu0 0.0
    %936 = vmatpush1.msra.mxu0 0.0
    %937 = vmatprep.subr.mxu0 0.0
    %938 = vmatpush1.msra.mxu0 0.0
    %939 = vmatprep.subr.mxu0 0.0
    %940 = vmatpush1.msra.mxu0 0.0
    %941 = vmatprep.subr.mxu0 0.0
    %942 = vmatpush1.msra.mxu0 0.0
    %943 = vmatprep.subr.mxu0 0.0
    %944 = vmatpush1.msra.mxu0 0.0
    %945 = vmatprep.subr.mxu0 0.0
    %946 = vmatpush1.msra.mxu0 0.0
    %947 = vmatprep.subr.mxu0 0.0
    %948 = vmatpush1.msra.mxu0 0.0
    %949 = vmatprep.subr.mxu0 0.0
    %950 = vmatpush1.msra.mxu0 0.0
    %951 = vmatprep.subr.mxu0 0.0
    %952 = vmatpush1.msra.mxu0 0.0
    %953 = vmatprep.subr.mxu0 0.0
    %954 = vmatpush1.msra.mxu0 0.0
    %955 = vmatprep.subr.mxu0 0.0
    %956 = vmatpush1.msra.mxu0 0.0
    %957 = vmatprep.mubr.f32.mxu0 0.0
    %v958 = vand.u32 %v37, 4294901760
    %v959 = vsub.f32 %v37, %v958
    %960 = vmatmul.mubr.f32.gmra.mrb[0].mxu0 %v959
    %v961 = vpop.f32.mrb[0].mxu0
    %v962 = vadd.f32 %v864, %v961
    %v963 = vpop.f32.mrb[0].mxu0
    %964 = vmatprep.mubr.f32.mxu0 0.0
    %v965 = vand.u32 %v40, 4294901760
    %v966 = vsub.f32 %v40, %v965
    %967 = vmatmul.mubr.f32.gmra.mrb[0].mxu0 %v966
    %v968 = vpop.f32.mrb[0].mxu0
    %v969 = vadd.f32 %v870, %v968
    %v970 = vpop.f32.mrb[0].mxu0
    %971 = vmatprep.mubr.f32.mxu0 0.0
    %v972 = vand.u32 %v43, 4294901760
    %v973 = vsub.f32 %v43, %v972
    %974 = vmatmul.mubr.f32.gmra.mrb[0].mxu0 %v973
    %v975 = vpop.f32.mrb[0].mxu0
    %v976 = vadd.f32 %v876, %v975
    %v977 = vpop.f32.mrb[0].mxu0
    %978 = vmatprep.mubr.f32.mxu0 0.0
    %v979 = vand.u32 %v46, 4294901760
    %v980 = vsub.f32 %v46, %v979
    %981 = vmatmul.mubr.f32.gmra.mrb[0].mxu0 %v980
    %v982 = vpop.f32.mrb[0].mxu0
    %v983 = vadd.f32 %v882, %v982
    %v984 = vpop.f32.mrb[0].mxu0
    %985 = vdwg.mxu0
    %986 = vmatprep.subr.mxu0 0.0
    %v987 = vand.u32 %v17, 4294901760
    %988 = vmatpush1.msra.mxu0 %v987
    %989 = vmatprep.subr.mxu0 0.0
    %v990 = vand.u32 %v18, 4294901760
    %991 = vmatpush1.msra.mxu0 %v990
    %992 = vmatprep.subr.mxu0 0.0
    %v993 = vand.u32 %v19, 4294901760
    %994 = vmatpush1.msra.mxu0 %v993
    %995 = vmatprep.subr.mxu0 0.0
    %v996 = vand.u32 %v20, 4294901760
    %997 = vmatpush1.msra.mxu0 %v996
    %998 = vmatprep.subr.mxu0 0.0
    %999 = vmatpush1.msra.mxu0 0.0
    %1000 = vmatprep.subr.mxu0 0.0
    %1001 = vmatpush1.msra.mxu0 0.0
    %1002 = vmatprep.subr.mxu0 0.0
    %1003 = vmatpush1.msra.mxu0 0.0
    %1004 = vmatprep.subr.mxu0 0.0
    %1005 = vmatpush1.msra.mxu0 0.0
    %1006 = vmatprep.subr.mxu0 0.0
    %1007 = vmatpush1.msra.mxu0 0.0
    %1008 = vmatprep.subr.mxu0 0.0
    %1009 = vmatpush1.msra.mxu0 0.0
    %1010 = vmatprep.subr.mxu0 0.0
    %1011 = vmatpush1.msra.mxu0 0.0
    %1012 = vmatprep.subr.mxu0 0.0
    %1013 = vmatpush1.msra.mxu0 0.0
    %1014 = vmatprep.subr.mxu0 0.0
    %1015 = vmatpush1.msra.mxu0 0.0
    %1016 = vmatprep.subr.mxu0 0.0
    %1017 = vmatpush1.msra.mxu0 0.0
    %1018 = vmatprep.subr.mxu0 0.0
    %1019 = vmatpush1.msra.mxu0 0.0
    %1020 = vmatprep.subr.mxu0 0.0
    %1021 = vmatpush1.msra.mxu0 0.0
    %1022 = vmatprep.subr.mxu0 0.0
    %1023 = vmatpush1.msra.mxu0 0.0
    %1024 = vmatprep.subr.mxu0 0.0
    %1025 = vmatpush1.msra.mxu0 0.0
    %1026 = vmatprep.subr.mxu0 0.0
    %1027 = vmatpush1.msra.mxu0 0.0
    %1028 = vmatprep.subr.mxu0 0.0
    %1029 = vmatpush1.msra.mxu0 0.0
    %1030 = vmatprep.subr.mxu0 0.0
    %1031 = vmatpush1.msra.mxu0 0.0
    %1032 = vmatprep.subr.mxu0 0.0
    %1033 = vmatpush1.msra.mxu0 0.0
    %1034 = vmatprep.subr.mxu0 0.0
    %1035 = vmatpush1.msra.mxu0 0.0
    %1036 = vmatprep.subr.mxu0 0.0
    %1037 = vmatpush1.msra.mxu0 0.0
    %1038 = vmatprep.subr.mxu0 0.0
    %1039 = vmatpush1.msra.mxu0 0.0
    %1040 = vmatprep.subr.mxu0 0.0
    %1041 = vmatpush1.msra.mxu0 0.0
    %1042 = vmatprep.subr.mxu0 0.0
    %1043 = vmatpush1.msra.mxu0 0.0
    %1044 = vmatprep.subr.mxu0 0.0
    %1045 = vmatpush1.msra.mxu0 0.0
    %1046 = vmatprep.subr.mxu0 0.0
    %1047 = vmatpush1.msra.mxu0 0.0
    %1048 = vmatprep.subr.mxu0 0.0
    %1049 = vmatpush1.msra.mxu0 0.0
    %1050 = vmatprep.subr.mxu0 0.0
    %1051 = vmatpush1.msra.mxu0 0.0
    %1052 = vmatprep.subr.mxu0 0.0
    %1053 = vmatpush1.msra.mxu0 0.0
    %1054 = vmatprep.mubr.f32.mxu0 0.0
    %v1055 = vand.u32 %v37, 4294901760
    %v1056 = vsub.f32 %v37, %v1055
    %v1057 = vand.u32 %v1056, 4294901760
    %1058 = vmatmul.mubr.f32.gmra.mrb[0].mxu0 %v1057
    %v1059 = vpop.f32.mrb[0].mxu0
    %v1060 = vadd.f32 %v962, %v1059
    %v1061 = vpop.f32.mrb[0].mxu0
    %1062 = vmatprep.mubr.f32.mxu0 0.0
    %v1063 = vand.u32 %v40, 4294901760
    %v1064 = vsub.f32 %v40, %v1063
    %v1065 = vand.u32 %v1064, 4294901760
    %1066 = vmatmul.mubr.f32.gmra.mrb[0].mxu0 %v1065
    %v1067 = vpop.f32.mrb[0].mxu0
    %v1068 = vadd.f32 %v969, %v1067
    %v1069 = vpop.f32.mrb[0].mxu0
    %1070 = vmatprep.mubr.f32.mxu0 0.0
    %v1071 = vand.u32 %v43, 4294901760
    %v1072 = vsub.f32 %v43, %v1071
    %v1073 = vand.u32 %v1072, 4294901760
    %1074 = vmatmul.mubr.f32.gmra.mrb[0].mxu0 %v1073
    %v1075 = vpop.f32.mrb[0].mxu0
    %v1076 = vadd.f32 %v976, %v1075
    %v1077 = vpop.f32.mrb[0].mxu0
    %1078 = vmatprep.mubr.f32.mxu0 0.0
    %v1079 = vand.u32 %v46, 4294901760
    %v1080 = vsub.f32 %v46, %v1079
    %v1081 = vand.u32 %v1080, 4294901760
    %1082 = vmatmul.mubr.f32.gmra.mrb[0].mxu0 %v1081
    %v1083 = vpop.f32.mrb[0].mxu0
    %v1084 = vadd.f32 %v983, %v1083
    %v1085 = vpop.f32.mrb[0].mxu0
    %1086 = vdwg.mxu0
    %1087 = vmatprep.subr.mxu0 0.0
    %v1088 = vand.u32 %v17, 4294901760
    %v1089 = vsub.f32 %v17, %v1088
    %v1090 = vand.u32 %v1089, 4294901760
    %1091 = vmatpush1.msra.mxu0 %v1090
    %1092 = vmatprep.subr.mxu0 0.0
    %v1093 = vand.u32 %v18, 4294901760
    %v1094 = vsub.f32 %v18, %v1093
    %v1095 = vand.u32 %v1094, 4294901760
    %1096 = vmatpush1.msra.mxu0 %v1095
    %1097 = vmatprep.subr.mxu0 0.0
    %v1098 = vand.u32 %v19, 4294901760
    %v1099 = vsub.f32 %v19, %v1098
    %v1100 = vand.u32 %v1099, 4294901760
    %1101 = vmatpush1.msra.mxu0 %v1100
    %1102 = vmatprep.subr.mxu0 0.0
    %v1103 = vand.u32 %v20, 4294901760
    %v1104 = vsub.f32 %v20, %v1103
    %v1105 = vand.u32 %v1104, 4294901760
    %1106 = vmatpush1.msra.mxu0 %v1105
    %1107 = vmatprep.subr.mxu0 0.0
    %1108 = vmatpush1.msra.mxu0 0.0
    %1109 = vmatprep.subr.mxu0 0.0
    %1110 = vmatpush1.msra.mxu0 0.0
    %1111 = vmatprep.subr.mxu0 0.0
    %1112 = vmatpush1.msra.mxu0 0.0
    %1113 = vmatprep.subr.mxu0 0.0
    %1114 = vmatpush1.msra.mxu0 0.0
    %1115 = vmatprep.subr.mxu0 0.0
    %1116 = vmatpush1.msra.mxu0 0.0
    %1117 = vmatprep.subr.mxu0 0.0
    %1118 = vmatpush1.msra.mxu0 0.0
    %1119 = vmatprep.subr.mxu0 0.0
    %1120 = vmatpush1.msra.mxu0 0.0
    %1121 = vmatprep.subr.mxu0 0.0
    %1122 = vmatpush1.msra.mxu0 0.0
    %1123 = vmatprep.subr.mxu0 0.0
    %1124 = vmatpush1.msra.mxu0 0.0
    %1125 = vmatprep.subr.mxu0 0.0
    %1126 = vmatpush1.msra.mxu0 0.0
    %1127 = vmatprep.subr.mxu0 0.0
    %1128 = vmatpush1.msra.mxu0 0.0
    %1129 = vmatprep.subr.mxu0 0.0
    %1130 = vmatpush1.msra.mxu0 0.0
    %1131 = vmatprep.subr.mxu0 0.0
    %1132 = vmatpush1.msra.mxu0 0.0
    %1133 = vmatprep.subr.mxu0 0.0
    %1134 = vmatpush1.msra.mxu0 0.0
    %1135 = vmatprep.subr.mxu0 0.0
    %1136 = vmatpush1.msra.mxu0 0.0
    %1137 = vmatprep.subr.mxu0 0.0
    %1138 = vmatpush1.msra.mxu0 0.0
    %1139 = vmatprep.subr.mxu0 0.0
    %1140 = vmatpush1.msra.mxu0 0.0
    %1141 = vmatprep.subr.mxu0 0.0
    %1142 = vmatpush1.msra.mxu0 0.0
    %1143 = vmatprep.subr.mxu0 0.0
    %1144 = vmatpush1.msra.mxu0 0.0
    %1145 = vmatprep.subr.mxu0 0.0
    %1146 = vmatpush1.msra.mxu0 0.0
    %1147 = vmatprep.subr.mxu0 0.0
    %1148 = vmatpush1.msra.mxu0 0.0
    %1149 = vmatprep.subr.mxu0 0.0
    %1150 = vmatpush1.msra.mxu0 0.0
    %1151 = vmatprep.subr.mxu0 0.0
    %1152 = vmatpush1.msra.mxu0 0.0
    %1153 = vmatprep.subr.mxu0 0.0
    %1154 = vmatpush1.msra.mxu0 0.0
    %1155 = vmatprep.subr.mxu0 0.0
    %1156 = vmatpush1.msra.mxu0 0.0
    %1157 = vmatprep.subr.mxu0 0.0
    %1158 = vmatpush1.msra.mxu0 0.0
    %1159 = vmatprep.subr.mxu0 0.0
    %1160 = vmatpush1.msra.mxu0 0.0
    %1161 = vmatprep.subr.mxu0 0.0
    %1162 = vmatpush1.msra.mxu0 0.0
    %1163 = vmatprep.mubr.f32.mxu0 0.0
    %v1164 = vand.u32 %v37, 4294901760
    %1165 = vmatmul.mubr.f32.gmra.mrb[0].mxu0 %v1164
    %v1166 = vpop.f32.mrb[0].mxu0
    %v1167 = vadd.f32 %v1060, %v1166
    %v1168 = vpop.f32.mrb[0].mxu0
    %1169 = vmatprep.mubr.f32.mxu0 0.0
    %v1170 = vand.u32 %v40, 4294901760
    %1171 = vmatmul.mubr.f32.gmra.mrb[0].mxu0 %v1170
    %v1172 = vpop.f32.mrb[0].mxu0
    %v1173 = vadd.f32 %v1068, %v1172
    %v1174 = vpop.f32.mrb[0].mxu0
    %1175 = vmatprep.mubr.f32.mxu0 0.0
    %v1176 = vand.u32 %v43, 4294901760
    %1177 = vmatmul.mubr.f32.gmra.mrb[0].mxu0 %v1176
    %v1178 = vpop.f32.mrb[0].mxu0
    %v1179 = vadd.f32 %v1076, %v1178
    %v1180 = vpop.f32.mrb[0].mxu0
    %1181 = vmatprep.mubr.f32.mxu0 0.0
    %v1182 = vand.u32 %v46, 4294901760
    %1183 = vmatmul.mubr.f32.gmra.mrb[0].mxu0 %v1182
    %v1184 = vpop.f32.mrb[0].mxu0
    %v1185 = vadd.f32 %v1084, %v1184
    %v1186 = vpop.f32.mrb[0].mxu0
    %1187 = vdwg.mxu0
    %1188 = vmatprep.subr.mxu0 0.0
    %v1189 = vand.u32 %v17, 4294901760
    %1190 = vmatpush1.msra.mxu0 %v1189
    %1191 = vmatprep.subr.mxu0 0.0
    %v1192 = vand.u32 %v18, 4294901760
    %1193 = vmatpush1.msra.mxu0 %v1192
    %1194 = vmatprep.subr.mxu0 0.0
    %v1195 = vand.u32 %v19, 4294901760
    %1196 = vmatpush1.msra.mxu0 %v1195
    %1197 = vmatprep.subr.mxu0 0.0
    %v1198 = vand.u32 %v20, 4294901760
    %1199 = vmatpush1.msra.mxu0 %v1198
    %1200 = vmatprep.subr.mxu0 0.0
    %1201 = vmatpush1.msra.mxu0 0.0
    %1202 = vmatprep.subr.mxu0 0.0
    %1203 = vmatpush1.msra.mxu0 0.0
    %1204 = vmatprep.subr.mxu0 0.0
    %1205 = vmatpush1.msra.mxu0 0.0
    %1206 = vmatprep.subr.mxu0 0.0
    %1207 = vmatpush1.msra.mxu0 0.0
    %1208 = vmatprep.subr.mxu0 0.0
    %1209 = vmatpush1.msra.mxu0 0.0
    %1210 = vmatprep.subr.mxu0 0.0
    %1211 = vmatpush1.msra.mxu0 0.0
    %1212 = vmatprep.subr.mxu0 0.0
    %1213 = vmatpush1.msra.mxu0 0.0
    %1214 = vmatprep.subr.mxu0 0.0
    %1215 = vmatpush1.msra.mxu0 0.0
    %1216 = vmatprep.subr.mxu0 0.0
    %1217 = vmatpush1.msra.mxu0 0.0
    %1218 = vmatprep.subr.mxu0 0.0
    %1219 = vmatpush1.msra.mxu0 0.0
    %1220 = vmatprep.subr.mxu0 0.0
    %1221 = vmatpush1.msra.mxu0 0.0
    %1222 = vmatprep.subr.mxu0 0.0
    %1223 = vmatpush1.msra.mxu0 0.0
    %1224 = vmatprep.subr.mxu0 0.0
    %1225 = vmatpush1.msra.mxu0 0.0
    %1226 = vmatprep.subr.mxu0 0.0
    %1227 = vmatpush1.msra.mxu0 0.0
    %1228 = vmatprep.subr.mxu0 0.0
    %1229 = vmatpush1.msra.mxu0 0.0
    %1230 = vmatprep.subr.mxu0 0.0
    %1231 = vmatpush1.msra.mxu0 0.0
    %1232 = vmatprep.subr.mxu0 0.0
    %1233 = vmatpush1.msra.mxu0 0.0
    %1234 = vmatprep.subr.mxu0 0.0
    %1235 = vmatpush1.msra.mxu0 0.0
    %1236 = vmatprep.subr.mxu0 0.0
    %1237 = vmatpush1.msra.mxu0 0.0
    %1238 = vmatprep.subr.mxu0 0.0
    %1239 = vmatpush1.msra.mxu0 0.0
    %1240 = vmatprep.subr.mxu0 0.0
    %1241 = vmatpush1.msra.mxu0 0.0
    %1242 = vmatprep.subr.mxu0 0.0
    %1243 = vmatpush1.msra.mxu0 0.0
    %1244 = vmatprep.subr.mxu0 0.0
    %1245 = vmatpush1.msra.mxu0 0.0
    %1246 = vmatprep.subr.mxu0 0.0
    %1247 = vmatpush1.msra.mxu0 0.0
    %1248 = vmatprep.subr.mxu0 0.0
    %1249 = vmatpush1.msra.mxu0 0.0
    %1250 = vmatprep.subr.mxu0 0.0
    %1251 = vmatpush1.msra.mxu0 0.0
    %1252 = vmatprep.subr.mxu0 0.0
    %1253 = vmatpush1.msra.mxu0 0.0
    %1254 = vmatprep.subr.mxu0 0.0
    %1255 = vmatpush1.msra.mxu0 0.0
    %1256 = vmatprep.mubr.f32.mxu0 0.0
    %v1257 = vand.u32 %v37, 4294901760
    %1258 = vmatmul.mubr.f32.gmra.mrb[0].mxu0 %v1257
    %v1259 = vpop.f32.mrb[0].mxu0
    %v1260 = vadd.f32 %v1167, %v1259
    %v1261 = vpop.f32.mrb[0].mxu0
    %1262 = vmatprep.mubr.f32.mxu0 0.0
    %v1263 = vand.u32 %v40, 4294901760
    %1264 = vmatmul.mubr.f32.gmra.mrb[0].mxu0 %v1263
    %v1265 = vpop.f32.mrb[0].mxu0
    %v1266 = vadd.f32 %v1173, %v1265
    %v1267 = vpop.f32.mrb[0].mxu0
    %1268 = vmatprep.mubr.f32.mxu0 0.0
    %v1269 = vand.u32 %v43, 4294901760
    %1270 = vmatmul.mubr.f32.gmra.mrb[0].mxu0 %v1269
    %v1271 = vpop.f32.mrb[0].mxu0
    %v1272 = vadd.f32 %v1179, %v1271
    %v1273 = vpop.f32.mrb[0].mxu0
    %1274 = vmatprep.mubr.f32.mxu0 0.0
    %v1275 = vand.u32 %v46, 4294901760
    %1276 = vmatmul.mubr.f32.gmra.mrb[0].mxu0 %v1275
    %v1277 = vpop.f32.mrb[0].mxu0
    %v1278 = vadd.f32 %v1185, %v1277
    %v1279 = vpop.f32.mrb[0].mxu0
    %1280 = vdwg.mxu0
    %s1281 = scalar_lea.vmem [#allocation2], 8
    %1282 = vst.msk [vmem:[%s1281] sm:$0xff] %vm662, %v1260
    %1283 = vst.msk [vmem:[%s1281 + $0x20] sm:$0xff] %vm662, %v1266
    %1284 = vst.msk [vmem:[%s1281 + $0x40] sm:$0xff] %vm662, %v1272
    %1285 = vst.msk [vmem:[%s1281 + $0x60] sm:$0xff] %vm662, %v1278
    %1286 = vmatprep.subr.mxu0 0.0
    %v1287 = vand.u32 %v22, 4294901760
    %1288 = vmatpush1.msra.mxu0 %v1287
    %1289 = vmatprep.subr.mxu0 0.0
    %v1290 = vand.u32 %v23, 4294901760
    %1291 = vmatpush1.msra.mxu0 %v1290
    %1292 = vmatprep.subr.mxu0 0.0
    %v1293 = vand.u32 %v24, 4294901760
    %1294 = vmatpush1.msra.mxu0 %v1293
    %1295 = vmatprep.subr.mxu0 0.0
    %v1296 = vand.u32 %v25, 4294901760
    %1297 = vmatpush1.msra.mxu0 %v1296
    %1298 = vmatprep.subr.mxu0 0.0
    %1299 = vmatpush1.msra.mxu0 0.0
    %1300 = vmatprep.subr.mxu0 0.0
    %1301 = vmatpush1.msra.mxu0 0.0
    %1302 = vmatprep.subr.mxu0 0.0
    %1303 = vmatpush1.msra.mxu0 0.0
    %1304 = vmatprep.subr.mxu0 0.0
    %1305 = vmatpush1.msra.mxu0 0.0
    %1306 = vmatprep.subr.mxu0 0.0
    %1307 = vmatpush1.msra.mxu0 0.0
    %1308 = vmatprep.subr.mxu0 0.0
    %1309 = vmatpush1.msra.mxu0 0.0
    %1310 = vmatprep.subr.mxu0 0.0
    %1311 = vmatpush1.msra.mxu0 0.0
    %1312 = vmatprep.subr.mxu0 0.0
    %1313 = vmatpush1.msra.mxu0 0.0
    %1314 = vmatprep.subr.mxu0 0.0
    %1315 = vmatpush1.msra.mxu0 0.0
    %1316 = vmatprep.subr.mxu0 0.0
    %1317 = vmatpush1.msra.mxu0 0.0
    %1318 = vmatprep.subr.mxu0 0.0
    %1319 = vmatpush1.msra.mxu0 0.0
    %1320 = vmatprep.subr.mxu0 0.0
    %1321 = vmatpush1.msra.mxu0 0.0
    %1322 = vmatprep.subr.mxu0 0.0
    %1323 = vmatpush1.msra.mxu0 0.0
    %1324 = vmatprep.subr.mxu0 0.0
    %1325 = vmatpush1.msra.mxu0 0.0
    %1326 = vmatprep.subr.mxu0 0.0
    %1327 = vmatpush1.msra.mxu0 0.0
    %1328 = vmatprep.subr.mxu0 0.0
    %1329 = vmatpush1.msra.mxu0 0.0
    %1330 = vmatprep.subr.mxu0 0.0
    %1331 = vmatpush1.msra.mxu0 0.0
    %1332 = vmatprep.subr.mxu0 0.0
    %1333 = vmatpush1.msra.mxu0 0.0
    %1334 = vmatprep.subr.mxu0 0.0
    %1335 = vmatpush1.msra.mxu0 0.0
    %1336 = vmatprep.subr.mxu0 0.0
    %1337 = vmatpush1.msra.mxu0 0.0
    %1338 = vmatprep.subr.mxu0 0.0
    %1339 = vmatpush1.msra.mxu0 0.0
    %1340 = vmatprep.subr.mxu0 0.0
    %1341 = vmatpush1.msra.mxu0 0.0
    %1342 = vmatprep.subr.mxu0 0.0
    %1343 = vmatpush1.msra.mxu0 0.0
    %1344 = vmatprep.subr.mxu0 0.0
    %1345 = vmatpush1.msra.mxu0 0.0
    %1346 = vmatprep.subr.mxu0 0.0
    %1347 = vmatpush1.msra.mxu0 0.0
    %1348 = vmatprep.subr.mxu0 0.0
    %1349 = vmatpush1.msra.mxu0 0.0
    %1350 = vmatprep.subr.mxu0 0.0
    %1351 = vmatpush1.msra.mxu0 0.0
    %1352 = vmatprep.subr.mxu0 0.0
    %1353 = vmatpush1.msra.mxu0 0.0
    %1354 = vmatprep.mubr.f32.mxu0 0.0
    %v1355 = vand.u32 %v37, 4294901760
    %v1356 = vsub.f32 %v37, %v1355
    %v1357 = vand.u32 %v1356, 4294901760
    %v1358 = vsub.f32 %v1356, %v1357
    %v1359 = vand.u32 %v1358, 4294901760
    %1360 = vmatmul.mubr.f32.gmra.mrb[0].mxu0 %v1359
    %v1361 = vpop.f32.mrb[0].mxu0
    %v1362 = vadd.f32 0.0, %v1361
    %v1363 = vpop.f32.mrb[0].mxu0
    %1364 = vmatprep.mubr.f32.mxu0 0.0
    %v1365 = vand.u32 %v40, 4294901760
    %v1366 = vsub.f32 %v40, %v1365
    %v1367 = vand.u32 %v1366, 4294901760
    %v1368 = vsub.f32 %v1366, %v1367
    %v1369 = vand.u32 %v1368, 4294901760
    %1370 = vmatmul.mubr.f32.gmra.mrb[0].mxu0 %v1369
    %v1371 = vpop.f32.mrb[0].mxu0
    %v1372 = vadd.f32 0.0, %v1371
    %v1373 = vpop.f32.mrb[0].mxu0
    %1374 = vmatprep.mubr.f32.mxu0 0.0
    %v1375 = vand.u32 %v43, 4294901760
    %v1376 = vsub.f32 %v43, %v1375
    %v1377 = vand.u32 %v1376, 4294901760
    %v1378 = vsub.f32 %v1376, %v1377
    %v1379 = vand.u32 %v1378, 4294901760
    %1380 = vmatmul.mubr.f32.gmra.mrb[0].mxu0 %v1379
    %v1381 = vpop.f32.mrb[0].mxu0
    %v1382 = vadd.f32 0.0, %v1381
    %v1383 = vpop.f32.mrb[0].mxu0
    %1384 = vmatprep.mubr.f32.mxu0 0.0
    %v1385 = vand.u32 %v46, 4294901760
    %v1386 = vsub.f32 %v46, %v1385
    %v1387 = vand.u32 %v1386, 4294901760
    %v1388 = vsub.f32 %v1386, %v1387
    %v1389 = vand.u32 %v1388, 4294901760
    %1390 = vmatmul.mubr.f32.gmra.mrb[0].mxu0 %v1389
    %v1391 = vpop.f32.mrb[0].mxu0
    %v1392 = vadd.f32 0.0, %v1391
    %v1393 = vpop.f32.mrb[0].mxu0
    %1394 = vdwg.mxu0
    %1395 = vmatprep.subr.mxu0 0.0
    %v1396 = vand.u32 %v22, 4294901760
    %v1397 = vsub.f32 %v22, %v1396
    %v1398 = vand.u32 %v1397, 4294901760
    %v1399 = vsub.f32 %v1397, %v1398
    %v1400 = vand.u32 %v1399, 4294901760
    %1401 = vmatpush1.msra.mxu0 %v1400
    %1402 = vmatprep.subr.mxu0 0.0
    %v1403 = vand.u32 %v23, 4294901760
    %v1404 = vsub.f32 %v23, %v1403
    %v1405 = vand.u32 %v1404, 4294901760
    %v1406 = vsub.f32 %v1404, %v1405
    %v1407 = vand.u32 %v1406, 4294901760
    %1408 = vmatpush1.msra.mxu0 %v1407
    %1409 = vmatprep.subr.mxu0 0.0
    %v1410 = vand.u32 %v24, 4294901760
    %v1411 = vsub.f32 %v24, %v1410
    %v1412 = vand.u32 %v1411, 4294901760
    %v1413 = vsub.f32 %v1411, %v1412
    %v1414 = vand.u32 %v1413, 4294901760
    %1415 = vmatpush1.msra.mxu0 %v1414
    %1416 = vmatprep.subr.mxu0 0.0
    %v1417 = vand.u32 %v25, 4294901760
    %v1418 = vsub.f32 %v25, %v1417
    %v1419 = vand.u32 %v1418, 4294901760
    %v1420 = vsub.f32 %v1418, %v1419
    %v1421 = vand.u32 %v1420, 4294901760
    %1422 = vmatpush1.msra.mxu0 %v1421
    %1423 = vmatprep.subr.mxu0 0.0
    %1424 = vmatpush1.msra.mxu0 0.0
    %1425 = vmatprep.subr.mxu0 0.0
    %1426 = vmatpush1.msra.mxu0 0.0
    %1427 = vmatprep.subr.mxu0 0.0
    %1428 = vmatpush1.msra.mxu0 0.0
    %1429 = vmatprep.subr.mxu0 0.0
    %1430 = vmatpush1.msra.mxu0 0.0
    %1431 = vmatprep.subr.mxu0 0.0
    %1432 = vmatpush1.msra.mxu0 0.0
    %1433 = vmatprep.subr.mxu0 0.0
    %1434 = vmatpush1.msra.mxu0 0.0
    %1435 = vmatprep.subr.mxu0 0.0
    %1436 = vmatpush1.msra.mxu0 0.0
    %1437 = vmatprep.subr.mxu0 0.0
    %1438 = vmatpush1.msra.mxu0 0.0
    %1439 = vmatprep.subr.mxu0 0.0
    %1440 = vmatpush1.msra.mxu0 0.0
    %1441 = vmatprep.subr.mxu0 0.0
    %1442 = vmatpush1.msra.mxu0 0.0
    %1443 = vmatprep.subr.mxu0 0.0
    %1444 = vmatpush1.msra.mxu0 0.0
    %1445 = vmatprep.subr.mxu0 0.0
    %1446 = vmatpush1.msra.mxu0 0.0
    %1447 = vmatprep.subr.mxu0 0.0
    %1448 = vmatpush1.msra.mxu0 0.0
    %1449 = vmatprep.subr.mxu0 0.0
    %1450 = vmatpush1.msra.mxu0 0.0
    %1451 = vmatprep.subr.mxu0 0.0
    %1452 = vmatpush1.msra.mxu0 0.0
    %1453 = vmatprep.subr.mxu0 0.0
    %1454 = vmatpush1.msra.mxu0 0.0
    %1455 = vmatprep.subr.mxu0 0.0
    %1456 = vmatpush1.msra.mxu0 0.0
    %1457 = vmatprep.subr.mxu0 0.0
    %1458 = vmatpush1.msra.mxu0 0.0
    %1459 = vmatprep.subr.mxu0 0.0
    %1460 = vmatpush1.msra.mxu0 0.0
    %1461 = vmatprep.subr.mxu0 0.0
    %1462 = vmatpush1.msra.mxu0 0.0
    %1463 = vmatprep.subr.mxu0 0.0
    %1464 = vmatpush1.msra.mxu0 0.0
    %1465 = vmatprep.subr.mxu0 0.0
    %1466 = vmatpush1.msra.mxu0 0.0
    %1467 = vmatprep.subr.mxu0 0.0
    %1468 = vmatpush1.msra.mxu0 0.0
    %1469 = vmatprep.subr.mxu0 0.0
    %1470 = vmatpush1.msra.mxu0 0.0
    %1471 = vmatprep.subr.mxu0 0.0
    %1472 = vmatpush1.msra.mxu0 0.0
    %1473 = vmatprep.subr.mxu0 0.0
    %1474 = vmatpush1.msra.mxu0 0.0
    %1475 = vmatprep.subr.mxu0 0.0
    %1476 = vmatpush1.msra.mxu0 0.0
    %1477 = vmatprep.subr.mxu0 0.0
    %1478 = vmatpush1.msra.mxu0 0.0
    %1479 = vmatprep.mubr.f32.mxu0 0.0
    %v1480 = vand.u32 %v37, 4294901760
    %1481 = vmatmul.mubr.f32.gmra.mrb[0].mxu0 %v1480
    %v1482 = vpop.f32.mrb[0].mxu0
    %v1483 = vadd.f32 %v1362, %v1482
    %v1484 = vpop.f32.mrb[0].mxu0
    %1485 = vmatprep.mubr.f32.mxu0 0.0
    %v1486 = vand.u32 %v40, 4294901760
    %1487 = vmatmul.mubr.f32.gmra.mrb[0].mxu0 %v1486
    %v1488 = vpop.f32.mrb[0].mxu0
    %v1489 = vadd.f32 %v1372, %v1488
    %v1490 = vpop.f32.mrb[0].mxu0
    %1491 = vmatprep.mubr.f32.mxu0 0.0
    %v1492 = vand.u32 %v43, 4294901760
    %1493 = vmatmul.mubr.f32.gmra.mrb[0].mxu0 %v1492
    %v1494 = vpop.f32.mrb[0].mxu0
    %v1495 = vadd.f32 %v1382, %v1494
    %v1496 = vpop.f32.mrb[0].mxu0
    %1497 = vmatprep.mubr.f32.mxu0 0.0
    %v1498 = vand.u32 %v46, 4294901760
    %1499 = vmatmul.mubr.f32.gmra.mrb[0].mxu0 %v1498
    %v1500 = vpop.f32.mrb[0].mxu0
    %v1501 = vadd.f32 %v1392, %v1500
    %v1502 = vpop.f32.mrb[0].mxu0
    %1503 = vdwg.mxu0
    %1504 = vmatprep.subr.mxu0 0.0
    %v1505 = vand.u32 %v22, 4294901760
    %v1506 = vsub.f32 %v22, %v1505
    %1507 = vmatpush1.msra.mxu0 %v1506
    %1508 = vmatprep.subr.mxu0 0.0
    %v1509 = vand.u32 %v23, 4294901760
    %v1510 = vsub.f32 %v23, %v1509
    %1511 = vmatpush1.msra.mxu0 %v1510
    %1512 = vmatprep.subr.mxu0 0.0
    %v1513 = vand.u32 %v24, 4294901760
    %v1514 = vsub.f32 %v24, %v1513
    %1515 = vmatpush1.msra.mxu0 %v1514
    %1516 = vmatprep.subr.mxu0 0.0
    %v1517 = vand.u32 %v25, 4294901760
    %v1518 = vsub.f32 %v25, %v1517
    %1519 = vmatpush1.msra.mxu0 %v1518
    %1520 = vmatprep.subr.mxu0 0.0
    %1521 = vmatpush1.msra.mxu0 0.0
    %1522 = vmatprep.subr.mxu0 0.0
    %1523 = vmatpush1.msra.mxu0 0.0
    %1524 = vmatprep.subr.mxu0 0.0
    %1525 = vmatpush1.msra.mxu0 0.0
    %1526 = vmatprep.subr.mxu0 0.0
    %1527 = vmatpush1.msra.mxu0 0.0
    %1528 = vmatprep.subr.mxu0 0.0
    %1529 = vmatpush1.msra.mxu0 0.0
    %1530 = vmatprep.subr.mxu0 0.0
    %1531 = vmatpush1.msra.mxu0 0.0
    %1532 = vmatprep.subr.mxu0 0.0
    %1533 = vmatpush1.msra.mxu0 0.0
    %1534 = vmatprep.subr.mxu0 0.0
    %1535 = vmatpush1.msra.mxu0 0.0
    %1536 = vmatprep.subr.mxu0 0.0
    %1537 = vmatpush1.msra.mxu0 0.0
    %1538 = vmatprep.subr.mxu0 0.0
    %1539 = vmatpush1.msra.mxu0 0.0
    %1540 = vmatprep.subr.mxu0 0.0
    %1541 = vmatpush1.msra.mxu0 0.0
    %1542 = vmatprep.subr.mxu0 0.0
    %1543 = vmatpush1.msra.mxu0 0.0
    %1544 = vmatprep.subr.mxu0 0.0
    %1545 = vmatpush1.msra.mxu0 0.0
    %1546 = vmatprep.subr.mxu0 0.0
    %1547 = vmatpush1.msra.mxu0 0.0
    %1548 = vmatprep.subr.mxu0 0.0
    %1549 = vmatpush1.msra.mxu0 0.0
    %1550 = vmatprep.subr.mxu0 0.0
    %1551 = vmatpush1.msra.mxu0 0.0
    %1552 = vmatprep.subr.mxu0 0.0
    %1553 = vmatpush1.msra.mxu0 0.0
    %1554 = vmatprep.subr.mxu0 0.0
    %1555 = vmatpush1.msra.mxu0 0.0
    %1556 = vmatprep.subr.mxu0 0.0
    %1557 = vmatpush1.msra.mxu0 0.0
    %1558 = vmatprep.subr.mxu0 0.0
    %1559 = vmatpush1.msra.mxu0 0.0
    %1560 = vmatprep.subr.mxu0 0.0
    %1561 = vmatpush1.msra.mxu0 0.0
    %1562 = vmatprep.subr.mxu0 0.0
    %1563 = vmatpush1.msra.mxu0 0.0
    %1564 = vmatprep.subr.mxu0 0.0
    %1565 = vmatpush1.msra.mxu0 0.0
    %1566 = vmatprep.subr.mxu0 0.0
    %1567 = vmatpush1.msra.mxu0 0.0
    %1568 = vmatprep.subr.mxu0 0.0
    %1569 = vmatpush1.msra.mxu0 0.0
    %1570 = vmatprep.subr.mxu0 0.0
    %1571 = vmatpush1.msra.mxu0 0.0
    %1572 = vmatprep.subr.mxu0 0.0
    %1573 = vmatpush1.msra.mxu0 0.0
    %1574 = vmatprep.subr.mxu0 0.0
    %1575 = vmatpush1.msra.mxu0 0.0
    %1576 = vmatprep.mubr.f32.mxu0 0.0
    %v1577 = vand.u32 %v37, 4294901760
    %v1578 = vsub.f32 %v37, %v1577
    %1579 = vmatmul.mubr.f32.gmra.mrb[0].mxu0 %v1578
    %v1580 = vpop.f32.mrb[0].mxu0
    %v1581 = vadd.f32 %v1483, %v1580
    %v1582 = vpop.f32.mrb[0].mxu0
    %1583 = vmatprep.mubr.f32.mxu0 0.0
    %v1584 = vand.u32 %v40, 4294901760
    %v1585 = vsub.f32 %v40, %v1584
    %1586 = vmatmul.mubr.f32.gmra.mrb[0].mxu0 %v1585
    %v1587 = vpop.f32.mrb[0].mxu0
    %v1588 = vadd.f32 %v1489, %v1587
    %v1589 = vpop.f32.mrb[0].mxu0
    %1590 = vmatprep.mubr.f32.mxu0 0.0
    %v1591 = vand.u32 %v43, 4294901760
    %v1592 = vsub.f32 %v43, %v1591
    %1593 = vmatmul.mubr.f32.gmra.mrb[0].mxu0 %v1592
    %v1594 = vpop.f32.mrb[0].mxu0
    %v1595 = vadd.f32 %v1495, %v1594
    %v1596 = vpop.f32.mrb[0].mxu0
    %1597 = vmatprep.mubr.f32.mxu0 0.0
    %v1598 = vand.u32 %v46, 4294901760
    %v1599 = vsub.f32 %v46, %v1598
    %1600 = vmatmul.mubr.f32.gmra.mrb[0].mxu0 %v1599
    %v1601 = vpop.f32.mrb[0].mxu0
    %v1602 = vadd.f32 %v1501, %v1601
    %v1603 = vpop.f32.mrb[0].mxu0
    %1604 = vdwg.mxu0
    %1605 = vmatprep.subr.mxu0 0.0
    %v1606 = vand.u32 %v22, 4294901760
    %1607 = vmatpush1.msra.mxu0 %v1606
    %1608 = vmatprep.subr.mxu0 0.0
    %v1609 = vand.u32 %v23, 4294901760
    %1610 = vmatpush1.msra.mxu0 %v1609
    %1611 = vmatprep.subr.mxu0 0.0
    %v1612 = vand.u32 %v24, 4294901760
    %1613 = vmatpush1.msra.mxu0 %v1612
    %1614 = vmatprep.subr.mxu0 0.0
    %v1615 = vand.u32 %v25, 4294901760
    %1616 = vmatpush1.msra.mxu0 %v1615
    %1617 = vmatprep.subr.mxu0 0.0
    %1618 = vmatpush1.msra.mxu0 0.0
    %1619 = vmatprep.subr.mxu0 0.0
    %1620 = vmatpush1.msra.mxu0 0.0
    %1621 = vmatprep.subr.mxu0 0.0
    %1622 = vmatpush1.msra.mxu0 0.0
    %1623 = vmatprep.subr.mxu0 0.0
    %1624 = vmatpush1.msra.mxu0 0.0
    %1625 = vmatprep.subr.mxu0 0.0
    %1626 = vmatpush1.msra.mxu0 0.0
    %1627 = vmatprep.subr.mxu0 0.0
    %1628 = vmatpush1.msra.mxu0 0.0
    %1629 = vmatprep.subr.mxu0 0.0
    %1630 = vmatpush1.msra.mxu0 0.0
    %1631 = vmatprep.subr.mxu0 0.0
    %1632 = vmatpush1.msra.mxu0 0.0
    %1633 = vmatprep.subr.mxu0 0.0
    %1634 = vmatpush1.msra.mxu0 0.0
    %1635 = vmatprep.subr.mxu0 0.0
    %1636 = vmatpush1.msra.mxu0 0.0
    %1637 = vmatprep.subr.mxu0 0.0
    %1638 = vmatpush1.msra.mxu0 0.0
    %1639 = vmatprep.subr.mxu0 0.0
    %1640 = vmatpush1.msra.mxu0 0.0
    %1641 = vmatprep.subr.mxu0 0.0
    %1642 = vmatpush1.msra.mxu0 0.0
    %1643 = vmatprep.subr.mxu0 0.0
    %1644 = vmatpush1.msra.mxu0 0.0
    %1645 = vmatprep.subr.mxu0 0.0
    %1646 = vmatpush1.msra.mxu0 0.0
    %1647 = vmatprep.subr.mxu0 0.0
    %1648 = vmatpush1.msra.mxu0 0.0
    %1649 = vmatprep.subr.mxu0 0.0
    %1650 = vmatpush1.msra.mxu0 0.0
    %1651 = vmatprep.subr.mxu0 0.0
    %1652 = vmatpush1.msra.mxu0 0.0
    %1653 = vmatprep.subr.mxu0 0.0
    %1654 = vmatpush1.msra.mxu0 0.0
    %1655 = vmatprep.subr.mxu0 0.0
    %1656 = vmatpush1.msra.mxu0 0.0
    %1657 = vmatprep.subr.mxu0 0.0
    %1658 = vmatpush1.msra.mxu0 0.0
    %1659 = vmatprep.subr.mxu0 0.0
    %1660 = vmatpush1.msra.mxu0 0.0
    %1661 = vmatprep.subr.mxu0 0.0
    %1662 = vmatpush1.msra.mxu0 0.0
    %1663 = vmatprep.subr.mxu0 0.0
    %1664 = vmatpush1.msra.mxu0 0.0
    %1665 = vmatprep.subr.mxu0 0.0
    %1666 = vmatpush1.msra.mxu0 0.0
    %1667 = vmatprep.subr.mxu0 0.0
    %1668 = vmatpush1.msra.mxu0 0.0
    %1669 = vmatprep.subr.mxu0 0.0
    %1670 = vmatpush1.msra.mxu0 0.0
    %1671 = vmatprep.subr.mxu0 0.0
    %1672 = vmatpush1.msra.mxu0 0.0
    %1673 = vmatprep.mubr.f32.mxu0 0.0
    %v1674 = vand.u32 %v37, 4294901760
    %v1675 = vsub.f32 %v37, %v1674
    %v1676 = vand.u32 %v1675, 4294901760
    %1677 = vmatmul.mubr.f32.gmra.mrb[0].mxu0 %v1676
    %v1678 = vpop.f32.mrb[0].mxu0
    %v1679 = vadd.f32 %v1581, %v1678
    %v1680 = vpop.f32.mrb[0].mxu0
    %1681 = vmatprep.mubr.f32.mxu0 0.0
    %v1682 = vand.u32 %v40, 4294901760
    %v1683 = vsub.f32 %v40, %v1682
    %v1684 = vand.u32 %v1683, 4294901760
    %1685 = vmatmul.mubr.f32.gmra.mrb[0].mxu0 %v1684
    %v1686 = vpop.f32.mrb[0].mxu0
    %v1687 = vadd.f32 %v1588, %v1686
    %v1688 = vpop.f32.mrb[0].mxu0
    %1689 = vmatprep.mubr.f32.mxu0 0.0
    %v1690 = vand.u32 %v43, 4294901760
    %v1691 = vsub.f32 %v43, %v1690
    %v1692 = vand.u32 %v1691, 4294901760
    %1693 = vmatmul.mubr.f32.gmra.mrb[0].mxu0 %v1692
    %v1694 = vpop.f32.mrb[0].mxu0
    %v1695 = vadd.f32 %v1595, %v1694
    %v1696 = vpop.f32.mrb[0].mxu0
    %1697 = vmatprep.mubr.f32.mxu0 0.0
    %v1698 = vand.u32 %v46, 4294901760
    %v1699 = vsub.f32 %v46, %v1698
    %v1700 = vand.u32 %v1699, 4294901760
    %1701 = vmatmul.mubr.f32.gmra.mrb[0].mxu0 %v1700
    %v1702 = vpop.f32.mrb[0].mxu0
    %v1703 = vadd.f32 %v1602, %v1702
    %v1704 = vpop.f32.mrb[0].mxu0
    %1705 = vdwg.mxu0
    %1706 = vmatprep.subr.mxu0 0.0
    %v1707 = vand.u32 %v22, 4294901760
    %v1708 = vsub.f32 %v22, %v1707
    %v1709 = vand.u32 %v1708, 4294901760
    %1710 = vmatpush1.msra.mxu0 %v1709
    %1711 = vmatprep.subr.mxu0 0.0
    %v1712 = vand.u32 %v23, 4294901760
    %v1713 = vsub.f32 %v23, %v1712
    %v1714 = vand.u32 %v1713, 4294901760
    %1715 = vmatpush1.msra.mxu0 %v1714
    %1716 = vmatprep.subr.mxu0 0.0
    %v1717 = vand.u32 %v24, 4294901760
    %v1718 = vsub.f32 %v24, %v1717
    %v1719 = vand.u32 %v1718, 4294901760
    %1720 = vmatpush1.msra.mxu0 %v1719
    %1721 = vmatprep.subr.mxu0 0.0
    %v1722 = vand.u32 %v25, 4294901760
    %v1723 = vsub.f32 %v25, %v1722
    %v1724 = vand.u32 %v1723, 4294901760
    %1725 = vmatpush1.msra.mxu0 %v1724
    %1726 = vmatprep.subr.mxu0 0.0
    %1727 = vmatpush1.msra.mxu0 0.0
    %1728 = vmatprep.subr.mxu0 0.0
    %1729 = vmatpush1.msra.mxu0 0.0
    %1730 = vmatprep.subr.mxu0 0.0
    %1731 = vmatpush1.msra.mxu0 0.0
    %1732 = vmatprep.subr.mxu0 0.0
    %1733 = vmatpush1.msra.mxu0 0.0
    %1734 = vmatprep.subr.mxu0 0.0
    %1735 = vmatpush1.msra.mxu0 0.0
    %1736 = vmatprep.subr.mxu0 0.0
    %1737 = vmatpush1.msra.mxu0 0.0
    %1738 = vmatprep.subr.mxu0 0.0
    %1739 = vmatpush1.msra.mxu0 0.0
    %1740 = vmatprep.subr.mxu0 0.0
    %1741 = vmatpush1.msra.mxu0 0.0
    %1742 = vmatprep.subr.mxu0 0.0
    %1743 = vmatpush1.msra.mxu0 0.0
    %1744 = vmatprep.subr.mxu0 0.0
    %1745 = vmatpush1.msra.mxu0 0.0
    %1746 = vmatprep.subr.mxu0 0.0
    %1747 = vmatpush1.msra.mxu0 0.0
    %1748 = vmatprep.subr.mxu0 0.0
    %1749 = vmatpush1.msra.mxu0 0.0
    %1750 = vmatprep.subr.mxu0 0.0
    %1751 = vmatpush1.msra.mxu0 0.0
    %1752 = vmatprep.subr.mxu0 0.0
    %1753 = vmatpush1.msra.mxu0 0.0
    %1754 = vmatprep.subr.mxu0 0.0
    %1755 = vmatpush1.msra.mxu0 0.0
    %1756 = vmatprep.subr.mxu0 0.0
    %1757 = vmatpush1.msra.mxu0 0.0
    %1758 = vmatprep.subr.mxu0 0.0
    %1759 = vmatpush1.msra.mxu0 0.0
    %1760 = vmatprep.subr.mxu0 0.0
    %1761 = vmatpush1.msra.mxu0 0.0
    %1762 = vmatprep.subr.mxu0 0.0
    %1763 = vmatpush1.msra.mxu0 0.0
    %1764 = vmatprep.subr.mxu0 0.0
    %1765 = vmatpush1.msra.mxu0 0.0
    %1766 = vmatprep.subr.mxu0 0.0
    %1767 = vmatpush1.msra.mxu0 0.0
    %1768 = vmatprep.subr.mxu0 0.0
    %1769 = vmatpush1.msra.mxu0 0.0
    %1770 = vmatprep.subr.mxu0 0.0
    %1771 = vmatpush1.msra.mxu0 0.0
    %1772 = vmatprep.subr.mxu0 0.0
    %1773 = vmatpush1.msra.mxu0 0.0
    %1774 = vmatprep.subr.mxu0 0.0
    %1775 = vmatpush1.msra.mxu0 0.0
    %1776 = vmatprep.subr.mxu0 0.0
    %1777 = vmatpush1.msra.mxu0 0.0
    %1778 = vmatprep.subr.mxu0 0.0
    %1779 = vmatpush1.msra.mxu0 0.0
    %1780 = vmatprep.subr.mxu0 0.0
    %1781 = vmatpush1.msra.mxu0 0.0
    %1782 = vmatprep.mubr.f32.mxu0 0.0
    %v1783 = vand.u32 %v37, 4294901760
    %1784 = vmatmul.mubr.f32.gmra.mrb[0].mxu0 %v1783
    %v1785 = vpop.f32.mrb[0].mxu0
    %v1786 = vadd.f32 %v1679, %v1785
    %v1787 = vpop.f32.mrb[0].mxu0
    %1788 = vmatprep.mubr.f32.mxu0 0.0
    %v1789 = vand.u32 %v40, 4294901760
    %1790 = vmatmul.mubr.f32.gmra.mrb[0].mxu0 %v1789
    %v1791 = vpop.f32.mrb[0].mxu0
    %v1792 = vadd.f32 %v1687, %v1791
    %v1793 = vpop.f32.mrb[0].mxu0
    %1794 = vmatprep.mubr.f32.mxu0 0.0
    %v1795 = vand.u32 %v43, 4294901760
    %1796 = vmatmul.mubr.f32.gmra.mrb[0].mxu0 %v1795
    %v1797 = vpop.f32.mrb[0].mxu0
    %v1798 = vadd.f32 %v1695, %v1797
    %v1799 = vpop.f32.mrb[0].mxu0
    %1800 = vmatprep.mubr.f32.mxu0 0.0
    %v1801 = vand.u32 %v46, 4294901760
    %1802 = vmatmul.mubr.f32.gmra.mrb[0].mxu0 %v1801
    %v1803 = vpop.f32.mrb[0].mxu0
    %v1804 = vadd.f32 %v1703, %v1803
    %v1805 = vpop.f32.mrb[0].mxu0
    %1806 = vdwg.mxu0
    %1807 = vmatprep.subr.mxu0 0.0
    %v1808 = vand.u32 %v22, 4294901760
    %1809 = vmatpush1.msra.mxu0 %v1808
    %1810 = vmatprep.subr.mxu0 0.0
    %v1811 = vand.u32 %v23, 4294901760
    %1812 = vmatpush1.msra.mxu0 %v1811
    %1813 = vmatprep.subr.mxu0 0.0
    %v1814 = vand.u32 %v24, 4294901760
    %1815 = vmatpush1.msra.mxu0 %v1814
    %1816 = vmatprep.subr.mxu0 0.0
    %v1817 = vand.u32 %v25, 4294901760
    %1818 = vmatpush1.msra.mxu0 %v1817
    %1819 = vmatprep.subr.mxu0 0.0
    %1820 = vmatpush1.msra.mxu0 0.0
    %1821 = vmatprep.subr.mxu0 0.0
    %1822 = vmatpush1.msra.mxu0 0.0
    %1823 = vmatprep.subr.mxu0 0.0
    %1824 = vmatpush1.msra.mxu0 0.0
    %1825 = vmatprep.subr.mxu0 0.0
    %1826 = vmatpush1.msra.mxu0 0.0
    %1827 = vmatprep.subr.mxu0 0.0
    %1828 = vmatpush1.msra.mxu0 0.0
    %1829 = vmatprep.subr.mxu0 0.0
    %1830 = vmatpush1.msra.mxu0 0.0
    %1831 = vmatprep.subr.mxu0 0.0
    %1832 = vmatpush1.msra.mxu0 0.0
    %1833 = vmatprep.subr.mxu0 0.0
    %1834 = vmatpush1.msra.mxu0 0.0
    %1835 = vmatprep.subr.mxu0 0.0
    %1836 = vmatpush1.msra.mxu0 0.0
    %1837 = vmatprep.subr.mxu0 0.0
    %1838 = vmatpush1.msra.mxu0 0.0
    %1839 = vmatprep.subr.mxu0 0.0
    %1840 = vmatpush1.msra.mxu0 0.0
    %1841 = vmatprep.subr.mxu0 0.0
    %1842 = vmatpush1.msra.mxu0 0.0
    %1843 = vmatprep.subr.mxu0 0.0
    %1844 = vmatpush1.msra.mxu0 0.0
    %1845 = vmatprep.subr.mxu0 0.0
    %1846 = vmatpush1.msra.mxu0 0.0
    %1847 = vmatprep.subr.mxu0 0.0
    %1848 = vmatpush1.msra.mxu0 0.0
    %1849 = vmatprep.subr.mxu0 0.0
    %1850 = vmatpush1.msra.mxu0 0.0
    %1851 = vmatprep.subr.mxu0 0.0
    %1852 = vmatpush1.msra.mxu0 0.0
    %1853 = vmatprep.subr.mxu0 0.0
    %1854 = vmatpush1.msra.mxu0 0.0
    %1855 = vmatprep.subr.mxu0 0.0
    %1856 = vmatpush1.msra.mxu0 0.0
    %1857 = vmatprep.subr.mxu0 0.0
    %1858 = vmatpush1.msra.mxu0 0.0
    %1859 = vmatprep.subr.mxu0 0.0
    %1860 = vmatpush1.msra.mxu0 0.0
    %1861 = vmatprep.subr.mxu0 0.0
    %1862 = vmatpush1.msra.mxu0 0.0
    %1863 = vmatprep.subr.mxu0 0.0
    %1864 = vmatpush1.msra.mxu0 0.0
    %1865 = vmatprep.subr.mxu0 0.0
    %1866 = vmatpush1.msra.mxu0 0.0
    %1867 = vmatprep.subr.mxu0 0.0
    %1868 = vmatpush1.msra.mxu0 0.0
    %1869 = vmatprep.subr.mxu0 0.0
    %1870 = vmatpush1.msra.mxu0 0.0
    %1871 = vmatprep.subr.mxu0 0.0
    %1872 = vmatpush1.msra.mxu0 0.0
    %1873 = vmatprep.subr.mxu0 0.0
    %1874 = vmatpush1.msra.mxu0 0.0
    %1875 = vmatprep.mubr.f32.mxu0 0.0
    %v1876 = vand.u32 %v37, 4294901760
    %1877 = vmatmul.mubr.f32.gmra.mrb[0].mxu0 %v1876
    %v1878 = vpop.f32.mrb[0].mxu0
    %v1879 = vadd.f32 %v1786, %v1878
    %v1880 = vpop.f32.mrb[0].mxu0
    %1881 = vmatprep.mubr.f32.mxu0 0.0
    %v1882 = vand.u32 %v40, 4294901760
    %1883 = vmatmul.mubr.f32.gmra.mrb[0].mxu0 %v1882
    %v1884 = vpop.f32.mrb[0].mxu0
    %v1885 = vadd.f32 %v1792, %v1884
    %v1886 = vpop.f32.mrb[0].mxu0
    %1887 = vmatprep.mubr.f32.mxu0 0.0
    %v1888 = vand.u32 %v43, 4294901760
    %1889 = vmatmul.mubr.f32.gmra.mrb[0].mxu0 %v1888
    %v1890 = vpop.f32.mrb[0].mxu0
    %v1891 = vadd.f32 %v1798, %v1890
    %v1892 = vpop.f32.mrb[0].mxu0
    %1893 = vmatprep.mubr.f32.mxu0 0.0
    %v1894 = vand.u32 %v46, 4294901760
    %1895 = vmatmul.mubr.f32.gmra.mrb[0].mxu0 %v1894
    %v1896 = vpop.f32.mrb[0].mxu0
    %v1897 = vadd.f32 %v1804, %v1896
    %v1898 = vpop.f32.mrb[0].mxu0
    %1899 = vdwg.mxu0
    %s1900 = scalar_lea.vmem [#allocation2], 16
    %1901 = vst.msk [vmem:[%s1900] sm:$0xff] %vm662, %v1879
    %1902 = vst.msk [vmem:[%s1900 + $0x20] sm:$0xff] %vm662, %v1885
    %1903 = vst.msk [vmem:[%s1900 + $0x40] sm:$0xff] %vm662, %v1891
    %1904 = vst.msk [vmem:[%s1900 + $0x60] sm:$0xff] %vm662, %v1897
    %1905 = vmatprep.subr.mxu0 0.0
    %v1906 = vand.u32 %v27, 4294901760
    %1907 = vmatpush1.msra.mxu0 %v1906
    %1908 = vmatprep.subr.mxu0 0.0
    %v1909 = vand.u32 %v28, 4294901760
    %1910 = vmatpush1.msra.mxu0 %v1909
    %1911 = vmatprep.subr.mxu0 0.0
    %v1912 = vand.u32 %v29, 4294901760
    %1913 = vmatpush1.msra.mxu0 %v1912
    %1914 = vmatprep.subr.mxu0 0.0
    %v1915 = vand.u32 %v30, 4294901760
    %1916 = vmatpush1.msra.mxu0 %v1915
    %1917 = vmatprep.subr.mxu0 0.0
    %1918 = vmatpush1.msra.mxu0 0.0
    %1919 = vmatprep.subr.mxu0 0.0
    %1920 = vmatpush1.msra.mxu0 0.0
    %1921 = vmatprep.subr.mxu0 0.0
    %1922 = vmatpush1.msra.mxu0 0.0
    %1923 = vmatprep.subr.mxu0 0.0
    %1924 = vmatpush1.msra.mxu0 0.0
    %1925 = vmatprep.subr.mxu0 0.0
    %1926 = vmatpush1.msra.mxu0 0.0
    %1927 = vmatprep.subr.mxu0 0.0
    %1928 = vmatpush1.msra.mxu0 0.0
    %1929 = vmatprep.subr.mxu0 0.0
    %1930 = vmatpush1.msra.mxu0 0.0
    %1931 = vmatprep.subr.mxu0 0.0
    %1932 = vmatpush1.msra.mxu0 0.0
    %1933 = vmatprep.subr.mxu0 0.0
    %1934 = vmatpush1.msra.mxu0 0.0
    %1935 = vmatprep.subr.mxu0 0.0
    %1936 = vmatpush1.msra.mxu0 0.0
    %1937 = vmatprep.subr.mxu0 0.0
    %1938 = vmatpush1.msra.mxu0 0.0
    %1939 = vmatprep.subr.mxu0 0.0
    %1940 = vmatpush1.msra.mxu0 0.0
    %1941 = vmatprep.subr.mxu0 0.0
    %1942 = vmatpush1.msra.mxu0 0.0
    %1943 = vmatprep.subr.mxu0 0.0
    %1944 = vmatpush1.msra.mxu0 0.0
    %1945 = vmatprep.subr.mxu0 0.0
    %1946 = vmatpush1.msra.mxu0 0.0
    %1947 = vmatprep.subr.mxu0 0.0
    %1948 = vmatpush1.msra.mxu0 0.0
    %1949 = vmatprep.subr.mxu0 0.0
    %1950 = vmatpush1.msra.mxu0 0.0
    %1951 = vmatprep.subr.mxu0 0.0
    %1952 = vmatpush1.msra.mxu0 0.0
    %1953 = vmatprep.subr.mxu0 0.0
    %1954 = vmatpush1.msra.mxu0 0.0
    %1955 = vmatprep.subr.mxu0 0.0
    %1956 = vmatpush1.msra.mxu0 0.0
    %1957 = vmatprep.subr.mxu0 0.0
    %1958 = vmatpush1.msra.mxu0 0.0
    %1959 = vmatprep.subr.mxu0 0.0
    %1960 = vmatpush1.msra.mxu0 0.0
    %1961 = vmatprep.subr.mxu0 0.0
    %1962 = vmatpush1.msra.mxu0 0.0
    %1963 = vmatprep.subr.mxu0 0.0
    %1964 = vmatpush1.msra.mxu0 0.0
    %1965 = vmatprep.subr.mxu0 0.0
    %1966 = vmatpush1.msra.mxu0 0.0
    %1967 = vmatprep.subr.mxu0 0.0
    %1968 = vmatpush1.msra.mxu0 0.0
    %1969 = vmatprep.subr.mxu0 0.0
    %1970 = vmatpush1.msra.mxu0 0.0
    %1971 = vmatprep.subr.mxu0 0.0
    %1972 = vmatpush1.msra.mxu0 0.0
    %1973 = vmatprep.mubr.f32.mxu0 0.0
    %v1974 = vand.u32 %v37, 4294901760
    %v1975 = vsub.f32 %v37, %v1974
    %v1976 = vand.u32 %v1975, 4294901760
    %v1977 = vsub.f32 %v1975, %v1976
    %v1978 = vand.u32 %v1977, 4294901760
    %1979 = vmatmul.mubr.f32.gmra.mrb[0].mxu0 %v1978
    %v1980 = vpop.f32.mrb[0].mxu0
    %v1981 = vadd.f32 0.0, %v1980
    %v1982 = vpop.f32.mrb[0].mxu0
    %1983 = vmatprep.mubr.f32.mxu0 0.0
    %v1984 = vand.u32 %v40, 4294901760
    %v1985 = vsub.f32 %v40, %v1984
    %v1986 = vand.u32 %v1985, 4294901760
    %v1987 = vsub.f32 %v1985, %v1986
    %v1988 = vand.u32 %v1987, 4294901760
    %1989 = vmatmul.mubr.f32.gmra.mrb[0].mxu0 %v1988
    %v1990 = vpop.f32.mrb[0].mxu0
    %v1991 = vadd.f32 0.0, %v1990
    %v1992 = vpop.f32.mrb[0].mxu0
    %1993 = vmatprep.mubr.f32.mxu0 0.0
    %v1994 = vand.u32 %v43, 4294901760
    %v1995 = vsub.f32 %v43, %v1994
    %v1996 = vand.u32 %v1995, 4294901760
    %v1997 = vsub.f32 %v1995, %v1996
    %v1998 = vand.u32 %v1997, 4294901760
    %1999 = vmatmul.mubr.f32.gmra.mrb[0].mxu0 %v1998
    %v2000 = vpop.f32.mrb[0].mxu0
    %v2001 = vadd.f32 0.0, %v2000
    %v2002 = vpop.f32.mrb[0].mxu0
    %2003 = vmatprep.mubr.f32.mxu0 0.0
    %v2004 = vand.u32 %v46, 4294901760
    %v2005 = vsub.f32 %v46, %v2004
    %v2006 = vand.u32 %v2005, 4294901760
    %v2007 = vsub.f32 %v2005, %v2006
    %v2008 = vand.u32 %v2007, 4294901760
    %2009 = vmatmul.mubr.f32.gmra.mrb[0].mxu0 %v2008
    %v2010 = vpop.f32.mrb[0].mxu0
    %v2011 = vadd.f32 0.0, %v2010
    %v2012 = vpop.f32.mrb[0].mxu0
    %2013 = vdwg.mxu0
    %2014 = vmatprep.subr.mxu0 0.0
    %v2015 = vand.u32 %v27, 4294901760
    %v2016 = vsub.f32 %v27, %v2015
    %v2017 = vand.u32 %v2016, 4294901760
    %v2018 = vsub.f32 %v2016, %v2017
    %v2019 = vand.u32 %v2018, 4294901760
    %2020 = vmatpush1.msra.mxu0 %v2019
    %2021 = vmatprep.subr.mxu0 0.0
    %v2022 = vand.u32 %v28, 4294901760
    %v2023 = vsub.f32 %v28, %v2022
    %v2024 = vand.u32 %v2023, 4294901760
    %v2025 = vsub.f32 %v2023, %v2024
    %v2026 = vand.u32 %v2025, 4294901760
    %2027 = vmatpush1.msra.mxu0 %v2026
    %2028 = vmatprep.subr.mxu0 0.0
    %v2029 = vand.u32 %v29, 4294901760
    %v2030 = vsub.f32 %v29, %v2029
    %v2031 = vand.u32 %v2030, 4294901760
    %v2032 = vsub.f32 %v2030, %v2031
    %v2033 = vand.u32 %v2032, 4294901760
    %2034 = vmatpush1.msra.mxu0 %v2033
    %2035 = vmatprep.subr.mxu0 0.0
    %v2036 = vand.u32 %v30, 4294901760
    %v2037 = vsub.f32 %v30, %v2036
    %v2038 = vand.u32 %v2037, 4294901760
    %v2039 = vsub.f32 %v2037, %v2038
    %v2040 = vand.u32 %v2039, 4294901760
    %2041 = vmatpush1.msra.mxu0 %v2040
    %2042 = vmatprep.subr.mxu0 0.0
    %2043 = vmatpush1.msra.mxu0 0.0
    %2044 = vmatprep.subr.mxu0 0.0
    %2045 = vmatpush1.msra.mxu0 0.0
    %2046 = vmatprep.subr.mxu0 0.0
    %2047 = vmatpush1.msra.mxu0 0.0
    %2048 = vmatprep.subr.mxu0 0.0
    %2049 = vmatpush1.msra.mxu0 0.0
    %2050 = vmatprep.subr.mxu0 0.0
    %2051 = vmatpush1.msra.mxu0 0.0
    %2052 = vmatprep.subr.mxu0 0.0
    %2053 = vmatpush1.msra.mxu0 0.0
    %2054 = vmatprep.subr.mxu0 0.0
    %2055 = vmatpush1.msra.mxu0 0.0
    %2056 = vmatprep.subr.mxu0 0.0
    %2057 = vmatpush1.msra.mxu0 0.0
    %2058 = vmatprep.subr.mxu0 0.0
    %2059 = vmatpush1.msra.mxu0 0.0
    %2060 = vmatprep.subr.mxu0 0.0
    %2061 = vmatpush1.msra.mxu0 0.0
    %2062 = vmatprep.subr.mxu0 0.0
    %2063 = vmatpush1.msra.mxu0 0.0
    %2064 = vmatprep.subr.mxu0 0.0
    %2065 = vmatpush1.msra.mxu0 0.0
    %2066 = vmatprep.subr.mxu0 0.0
    %2067 = vmatpush1.msra.mxu0 0.0
    %2068 = vmatprep.subr.mxu0 0.0
    %2069 = vmatpush1.msra.mxu0 0.0
    %2070 = vmatprep.subr.mxu0 0.0
    %2071 = vmatpush1.msra.mxu0 0.0
    %2072 = vmatprep.subr.mxu0 0.0
    %2073 = vmatpush1.msra.mxu0 0.0
    %2074 = vmatprep.subr.mxu0 0.0
    %2075 = vmatpush1.msra.mxu0 0.0
    %2076 = vmatprep.subr.mxu0 0.0
    %2077 = vmatpush1.msra.mxu0 0.0
    %2078 = vmatprep.subr.mxu0 0.0
    %2079 = vmatpush1.msra.mxu0 0.0
    %2080 = vmatprep.subr.mxu0 0.0
    %2081 = vmatpush1.msra.mxu0 0.0
    %2082 = vmatprep.subr.mxu0 0.0
    %2083 = vmatpush1.msra.mxu0 0.0
    %2084 = vmatprep.subr.mxu0 0.0
    %2085 = vmatpush1.msra.mxu0 0.0
    %2086 = vmatprep.subr.mxu0 0.0
    %2087 = vmatpush1.msra.mxu0 0.0
    %2088 = vmatprep.subr.mxu0 0.0
    %2089 = vmatpush1.msra.mxu0 0.0
    %2090 = vmatprep.subr.mxu0 0.0
    %2091 = vmatpush1.msra.mxu0 0.0
    %2092 = vmatprep.subr.mxu0 0.0
    %2093 = vmatpush1.msra.mxu0 0.0
    %2094 = vmatprep.subr.mxu0 0.0
    %2095 = vmatpush1.msra.mxu0 0.0
    %2096 = vmatprep.subr.mxu0 0.0
    %2097 = vmatpush1.msra.mxu0 0.0
    %2098 = vmatprep.mubr.f32.mxu0 0.0
    %v2099 = vand.u32 %v37, 4294901760
    %2100 = vmatmul.mubr.f32.gmra.mrb[0].mxu0 %v2099
    %v2101 = vpop.f32.mrb[0].mxu0
    %v2102 = vadd.f32 %v1981, %v2101
    %v2103 = vpop.f32.mrb[0].mxu0
    %2104 = vmatprep.mubr.f32.mxu0 0.0
    %v2105 = vand.u32 %v40, 4294901760
    %2106 = vmatmul.mubr.f32.gmra.mrb[0].mxu0 %v2105
    %v2107 = vpop.f32.mrb[0].mxu0
    %v2108 = vadd.f32 %v1991, %v2107
    %v2109 = vpop.f32.mrb[0].mxu0
    %2110 = vmatprep.mubr.f32.mxu0 0.0
    %v2111 = vand.u32 %v43, 4294901760
    %2112 = vmatmul.mubr.f32.gmra.mrb[0].mxu0 %v2111
    %v2113 = vpop.f32.mrb[0].mxu0
    %v2114 = vadd.f32 %v2001, %v2113
    %v2115 = vpop.f32.mrb[0].mxu0
    %2116 = vmatprep.mubr.f32.mxu0 0.0
    %v2117 = vand.u32 %v46, 4294901760
    %2118 = vmatmul.mubr.f32.gmra.mrb[0].mxu0 %v2117
    %v2119 = vpop.f32.mrb[0].mxu0
    %v2120 = vadd.f32 %v2011, %v2119
    %v2121 = vpop.f32.mrb[0].mxu0
    %2122 = vdwg.mxu0
    %2123 = vmatprep.subr.mxu0 0.0
    %v2124 = vand.u32 %v27, 4294901760
    %v2125 = vsub.f32 %v27, %v2124
    %2126 = vmatpush1.msra.mxu0 %v2125
    %2127 = vmatprep.subr.mxu0 0.0
    %v2128 = vand.u32 %v28, 4294901760
    %v2129 = vsub.f32 %v28, %v2128
    %2130 = vmatpush1.msra.mxu0 %v2129
    %2131 = vmatprep.subr.mxu0 0.0
    %v2132 = vand.u32 %v29, 4294901760
    %v2133 = vsub.f32 %v29, %v2132
    %2134 = vmatpush1.msra.mxu0 %v2133
    %2135 = vmatprep.subr.mxu0 0.0
    %v2136 = vand.u32 %v30, 4294901760
    %v2137 = vsub.f32 %v30, %v2136
    %2138 = vmatpush1.msra.mxu0 %v2137
    %2139 = vmatprep.subr.mxu0 0.0
    %2140 = vmatpush1.msra.mxu0 0.0
    %2141 = vmatprep.subr.mxu0 0.0
    %2142 = vmatpush1.msra.mxu0 0.0
    %2143 = vmatprep.subr.mxu0 0.0
    %2144 = vmatpush1.msra.mxu0 0.0
    %2145 = vmatprep.subr.mxu0 0.0
    %2146 = vmatpush1.msra.mxu0 0.0
    %2147 = vmatprep.subr.mxu0 0.0
    %2148 = vmatpush1.msra.mxu0 0.0
    %2149 = vmatprep.subr.mxu0 0.0
    %2150 = vmatpush1.msra.mxu0 0.0
    %2151 = vmatprep.subr.mxu0 0.0
    %2152 = vmatpush1.msra.mxu0 0.0
    %2153 = vmatprep.subr.mxu0 0.0
    %2154 = vmatpush1.msra.mxu0 0.0
    %2155 = vmatprep.subr.mxu0 0.0
    %2156 = vmatpush1.msra.mxu0 0.0
    %2157 = vmatprep.subr.mxu0 0.0
    %2158 = vmatpush1.msra.mxu0 0.0
    %2159 = vmatprep.subr.mxu0 0.0
    %2160 = vmatpush1.msra.mxu0 0.0
    %2161 = vmatprep.subr.mxu0 0.0
    %2162 = vmatpush1.msra.mxu0 0.0
    %2163 = vmatprep.subr.mxu0 0.0
    %2164 = vmatpush1.msra.mxu0 0.0
    %2165 = vmatprep.subr.mxu0 0.0
    %2166 = vmatpush1.msra.mxu0 0.0
    %2167 = vmatprep.subr.mxu0 0.0
    %2168 = vmatpush1.msra.mxu0 0.0
    %2169 = vmatprep.subr.mxu0 0.0
    %2170 = vmatpush1.msra.mxu0 0.0
    %2171 = vmatprep.subr.mxu0 0.0
    %2172 = vmatpush1.msra.mxu0 0.0
    %2173 = vmatprep.subr.mxu0 0.0
    %2174 = vmatpush1.msra.mxu0 0.0
    %2175 = vmatprep.subr.mxu0 0.0
    %2176 = vmatpush1.msra.mxu0 0.0
    %2177 = vmatprep.subr.mxu0 0.0
    %2178 = vmatpush1.msra.mxu0 0.0
    %2179 = vmatprep.subr.mxu0 0.0
    %2180 = vmatpush1.msra.mxu0 0.0
    %2181 = vmatprep.subr.mxu0 0.0
    %2182 = vmatpush1.msra.mxu0 0.0
    %2183 = vmatprep.subr.mxu0 0.0
    %2184 = vmatpush1.msra.mxu0 0.0
    %2185 = vmatprep.subr.mxu0 0.0
    %2186 = vmatpush1.msra.mxu0 0.0
    %2187 = vmatprep.subr.mxu0 0.0
    %2188 = vmatpush1.msra.mxu0 0.0
    %2189 = vmatprep.subr.mxu0 0.0
    %2190 = vmatpush1.msra.mxu0 0.0
    %2191 = vmatprep.subr.mxu0 0.0
    %2192 = vmatpush1.msra.mxu0 0.0
    %2193 = vmatprep.subr.mxu0 0.0
    %2194 = vmatpush1.msra.mxu0 0.0
    %2195 = vmatprep.mubr.f32.mxu0 0.0
    %v2196 = vand.u32 %v37, 4294901760
    %v2197 = vsub.f32 %v37, %v2196
    %2198 = vmatmul.mubr.f32.gmra.mrb[0].mxu0 %v2197
    %v2199 = vpop.f32.mrb[0].mxu0
    %v2200 = vadd.f32 %v2102, %v2199
    %v2201 = vpop.f32.mrb[0].mxu0
    %2202 = vmatprep.mubr.f32.mxu0 0.0
    %v2203 = vand.u32 %v40, 4294901760
    %v2204 = vsub.f32 %v40, %v2203
    %2205 = vmatmul.mubr.f32.gmra.mrb[0].mxu0 %v2204
    %v2206 = vpop.f32.mrb[0].mxu0
    %v2207 = vadd.f32 %v2108, %v2206
    %v2208 = vpop.f32.mrb[0].mxu0
    %2209 = vmatprep.mubr.f32.mxu0 0.0
    %v2210 = vand.u32 %v43, 4294901760
    %v2211 = vsub.f32 %v43, %v2210
    %2212 = vmatmul.mubr.f32.gmra.mrb[0].mxu0 %v2211
    %v2213 = vpop.f32.mrb[0].mxu0
    %v2214 = vadd.f32 %v2114, %v2213
    %v2215 = vpop.f32.mrb[0].mxu0
    %2216 = vmatprep.mubr.f32.mxu0 0.0
    %v2217 = vand.u32 %v46, 4294901760
    %v2218 = vsub.f32 %v46, %v2217
    %2219 = vmatmul.mubr.f32.gmra.mrb[0].mxu0 %v2218
    %v2220 = vpop.f32.mrb[0].mxu0
    %v2221 = vadd.f32 %v2120, %v2220
    %v2222 = vpop.f32.mrb[0].mxu0
    %2223 = vdwg.mxu0
    %2224 = vmatprep.subr.mxu0 0.0
    %v2225 = vand.u32 %v27, 4294901760
    %2226 = vmatpush1.msra.mxu0 %v2225
    %2227 = vmatprep.subr.mxu0 0.0
    %v2228 = vand.u32 %v28, 4294901760
    %2229 = vmatpush1.msra.mxu0 %v2228
    %2230 = vmatprep.subr.mxu0 0.0
    %v2231 = vand.u32 %v29, 4294901760
    %2232 = vmatpush1.msra.mxu0 %v2231
    %2233 = vmatprep.subr.mxu0 0.0
    %v2234 = vand.u32 %v30, 4294901760
    %2235 = vmatpush1.msra.mxu0 %v2234
    %2236 = vmatprep.subr.mxu0 0.0
    %2237 = vmatpush1.msra.mxu0 0.0
    %2238 = vmatprep.subr.mxu0 0.0
    %2239 = vmatpush1.msra.mxu0 0.0
    %2240 = vmatprep.subr.mxu0 0.0
    %2241 = vmatpush1.msra.mxu0 0.0
    %2242 = vmatprep.subr.mxu0 0.0
    %2243 = vmatpush1.msra.mxu0 0.0
    %2244 = vmatprep.subr.mxu0 0.0
    %2245 = vmatpush1.msra.mxu0 0.0
    %2246 = vmatprep.subr.mxu0 0.0
    %2247 = vmatpush1.msra.mxu0 0.0
    %2248 = vmatprep.subr.mxu0 0.0
    %2249 = vmatpush1.msra.mxu0 0.0
    %2250 = vmatprep.subr.mxu0 0.0
    %2251 = vmatpush1.msra.mxu0 0.0
    %2252 = vmatprep.subr.mxu0 0.0
    %2253 = vmatpush1.msra.mxu0 0.0
    %2254 = vmatprep.subr.mxu0 0.0
    %2255 = vmatpush1.msra.mxu0 0.0
    %2256 = vmatprep.subr.mxu0 0.0
    %2257 = vmatpush1.msra.mxu0 0.0
    %2258 = vmatprep.subr.mxu0 0.0
    %2259 = vmatpush1.msra.mxu0 0.0
    %2260 = vmatprep.subr.mxu0 0.0
    %2261 = vmatpush1.msra.mxu0 0.0
    %2262 = vmatprep.subr.mxu0 0.0
    %2263 = vmatpush1.msra.mxu0 0.0
    %2264 = vmatprep.subr.mxu0 0.0
    %2265 = vmatpush1.msra.mxu0 0.0
    %2266 = vmatprep.subr.mxu0 0.0
    %2267 = vmatpush1.msra.mxu0 0.0
    %2268 = vmatprep.subr.mxu0 0.0
    %2269 = vmatpush1.msra.mxu0 0.0
    %2270 = vmatprep.subr.mxu0 0.0
    %2271 = vmatpush1.msra.mxu0 0.0
    %2272 = vmatprep.subr.mxu0 0.0
    %2273 = vmatpush1.msra.mxu0 0.0
    %2274 = vmatprep.subr.mxu0 0.0
    %2275 = vmatpush1.msra.mxu0 0.0
    %2276 = vmatprep.subr.mxu0 0.0
    %2277 = vmatpush1.msra.mxu0 0.0
    %2278 = vmatprep.subr.mxu0 0.0
    %2279 = vmatpush1.msra.mxu0 0.0
    %2280 = vmatprep.subr.mxu0 0.0
    %2281 = vmatpush1.msra.mxu0 0.0
    %2282 = vmatprep.subr.mxu0 0.0
    %2283 = vmatpush1.msra.mxu0 0.0
    %2284 = vmatprep.subr.mxu0 0.0
    %2285 = vmatpush1.msra.mxu0 0.0
    %2286 = vmatprep.subr.mxu0 0.0
    %2287 = vmatpush1.msra.mxu0 0.0
    %2288 = vmatprep.subr.mxu0 0.0
    %2289 = vmatpush1.msra.mxu0 0.0
    %2290 = vmatprep.subr.mxu0 0.0
    %2291 = vmatpush1.msra.mxu0 0.0
    %2292 = vmatprep.mubr.f32.mxu0 0.0
    %v2293 = vand.u32 %v37, 4294901760
    %v2294 = vsub.f32 %v37, %v2293
    %v2295 = vand.u32 %v2294, 4294901760
    %2296 = vmatmul.mubr.f32.gmra.mrb[0].mxu0 %v2295
    %v2297 = vpop.f32.mrb[0].mxu0
    %v2298 = vadd.f32 %v2200, %v2297
    %v2299 = vpop.f32.mrb[0].mxu0
    %2300 = vmatprep.mubr.f32.mxu0 0.0
    %v2301 = vand.u32 %v40, 4294901760
    %v2302 = vsub.f32 %v40, %v2301
    %v2303 = vand.u32 %v2302, 4294901760
    %2304 = vmatmul.mubr.f32.gmra.mrb[0].mxu0 %v2303
    %v2305 = vpop.f32.mrb[0].mxu0
    %v2306 = vadd.f32 %v2207, %v2305
    %v2307 = vpop.f32.mrb[0].mxu0
    %2308 = vmatprep.mubr.f32.mxu0 0.0
    %v2309 = vand.u32 %v43, 4294901760
    %v2310 = vsub.f32 %v43, %v2309
    %v2311 = vand.u32 %v2310, 4294901760
    %2312 = vmatmul.mubr.f32.gmra.mrb[0].mxu0 %v2311
    %v2313 = vpop.f32.mrb[0].mxu0
    %v2314 = vadd.f32 %v2214, %v2313
    %v2315 = vpop.f32.mrb[0].mxu0
    %2316 = vmatprep.mubr.f32.mxu0 0.0
    %v2317 = vand.u32 %v46, 4294901760
    %v2318 = vsub.f32 %v46, %v2317
    %v2319 = vand.u32 %v2318, 4294901760
    %2320 = vmatmul.mubr.f32.gmra.mrb[0].mxu0 %v2319
    %v2321 = vpop.f32.mrb[0].mxu0
    %v2322 = vadd.f32 %v2221, %v2321
    %v2323 = vpop.f32.mrb[0].mxu0
    %2324 = vdwg.mxu0
    %2325 = vmatprep.subr.mxu0 0.0
    %v2326 = vand.u32 %v27, 4294901760
    %v2327 = vsub.f32 %v27, %v2326
    %v2328 = vand.u32 %v2327, 4294901760
    %2329 = vmatpush1.msra.mxu0 %v2328
    %2330 = vmatprep.subr.mxu0 0.0
    %v2331 = vand.u32 %v28, 4294901760
    %v2332 = vsub.f32 %v28, %v2331
    %v2333 = vand.u32 %v2332, 4294901760
    %2334 = vmatpush1.msra.mxu0 %v2333
    %2335 = vmatprep.subr.mxu0 0.0
    %v2336 = vand.u32 %v29, 4294901760
    %v2337 = vsub.f32 %v29, %v2336
    %v2338 = vand.u32 %v2337, 4294901760
    %2339 = vmatpush1.msra.mxu0 %v2338
    %2340 = vmatprep.subr.mxu0 0.0
    %v2341 = vand.u32 %v30, 4294901760
    %v2342 = vsub.f32 %v30, %v2341
    %v2343 = vand.u32 %v2342, 4294901760
    %2344 = vmatpush1.msra.mxu0 %v2343
    %2345 = vmatprep.subr.mxu0 0.0
    %2346 = vmatpush1.msra.mxu0 0.0
    %2347 = vmatprep.subr.mxu0 0.0
    %2348 = vmatpush1.msra.mxu0 0.0
    %2349 = vmatprep.subr.mxu0 0.0
    %2350 = vmatpush1.msra.mxu0 0.0
    %2351 = vmatprep.subr.mxu0 0.0
    %2352 = vmatpush1.msra.mxu0 0.0
    %2353 = vmatprep.subr.mxu0 0.0
    %2354 = vmatpush1.msra.mxu0 0.0
    %2355 = vmatprep.subr.mxu0 0.0
    %2356 = vmatpush1.msra.mxu0 0.0
    %2357 = vmatprep.subr.mxu0 0.0
    %2358 = vmatpush1.msra.mxu0 0.0
    %2359 = vmatprep.subr.mxu0 0.0
    %2360 = vmatpush1.msra.mxu0 0.0
    %2361 = vmatprep.subr.mxu0 0.0
    %2362 = vmatpush1.msra.mxu0 0.0
    %2363 = vmatprep.subr.mxu0 0.0
    %2364 = vmatpush1.msra.mxu0 0.0
    %2365 = vmatprep.subr.mxu0 0.0
    %2366 = vmatpush1.msra.mxu0 0.0
    %2367 = vmatprep.subr.mxu0 0.0
    %2368 = vmatpush1.msra.mxu0 0.0
    %2369 = vmatprep.subr.mxu0 0.0
    %2370 = vmatpush1.msra.mxu0 0.0
    %2371 = vmatprep.subr.mxu0 0.0
    %2372 = vmatpush1.msra.mxu0 0.0
    %2373 = vmatprep.subr.mxu0 0.0
    %2374 = vmatpush1.msra.mxu0 0.0
    %2375 = vmatprep.subr.mxu0 0.0
    %2376 = vmatpush1.msra.mxu0 0.0
    %2377 = vmatprep.subr.mxu0 0.0
    %2378 = vmatpush1.msra.mxu0 0.0
    %2379 = vmatprep.subr.mxu0 0.0
    %2380 = vmatpush1.msra.mxu0 0.0
    %2381 = vmatprep.subr.mxu0 0.0
    %2382 = vmatpush1.msra.mxu0 0.0
    %2383 = vmatprep.subr.mxu0 0.0
    %2384 = vmatpush1.msra.mxu0 0.0
    %2385 = vmatprep.subr.mxu0 0.0
    %2386 = vmatpush1.msra.mxu0 0.0
    %2387 = vmatprep.subr.mxu0 0.0
    %2388 = vmatpush1.msra.mxu0 0.0
    %2389 = vmatprep.subr.mxu0 0.0
    %2390 = vmatpush1.msra.mxu0 0.0
    %2391 = vmatprep.subr.mxu0 0.0
    %2392 = vmatpush1.msra.mxu0 0.0
    %2393 = vmatprep.subr.mxu0 0.0
    %2394 = vmatpush1.msra.mxu0 0.0
    %2395 = vmatprep.subr.mxu0 0.0
    %2396 = vmatpush1.msra.mxu0 0.0
    %2397 = vmatprep.subr.mxu0 0.0
    %2398 = vmatpush1.msra.mxu0 0.0
    %2399 = vmatprep.subr.mxu0 0.0
    %2400 = vmatpush1.msra.mxu0 0.0
    %2401 = vmatprep.mubr.f32.mxu0 0.0
    %v2402 = vand.u32 %v37, 4294901760
    %2403 = vmatmul.mubr.f32.gmra.mrb[0].mxu0 %v2402
    %v2404 = vpop.f32.mrb[0].mxu0
    %v2405 = vadd.f32 %v2298, %v2404
    %v2406 = vpop.f32.mrb[0].mxu0
    %2407 = vmatprep.mubr.f32.mxu0 0.0
    %v2408 = vand.u32 %v40, 4294901760
    %2409 = vmatmul.mubr.f32.gmra.mrb[0].mxu0 %v2408
    %v2410 = vpop.f32.mrb[0].mxu0
    %v2411 = vadd.f32 %v2306, %v2410
    %v2412 = vpop.f32.mrb[0].mxu0
    %2413 = vmatprep.mubr.f32.mxu0 0.0
    %v2414 = vand.u32 %v43, 4294901760
    %2415 = vmatmul.mubr.f32.gmra.mrb[0].mxu0 %v2414
    %v2416 = vpop.f32.mrb[0].mxu0
    %v2417 = vadd.f32 %v2314, %v2416
    %v2418 = vpop.f32.mrb[0].mxu0
    %2419 = vmatprep.mubr.f32.mxu0 0.0
    %v2420 = vand.u32 %v46, 4294901760
    %2421 = vmatmul.mubr.f32.gmra.mrb[0].mxu0 %v2420
    %v2422 = vpop.f32.mrb[0].mxu0
    %v2423 = vadd.f32 %v2322, %v2422
    %v2424 = vpop.f32.mrb[0].mxu0
    %2425 = vdwg.mxu0
    %2426 = vmatprep.subr.mxu0 0.0
    %v2427 = vand.u32 %v27, 4294901760
    %2428 = vmatpush1.msra.mxu0 %v2427
    %2429 = vmatprep.subr.mxu0 0.0
    %v2430 = vand.u32 %v28, 4294901760
    %2431 = vmatpush1.msra.mxu0 %v2430
    %2432 = vmatprep.subr.mxu0 0.0
    %v2433 = vand.u32 %v29, 4294901760
    %2434 = vmatpush1.msra.mxu0 %v2433
    %2435 = vmatprep.subr.mxu0 0.0
    %v2436 = vand.u32 %v30, 4294901760
    %2437 = vmatpush1.msra.mxu0 %v2436
    %2438 = vmatprep.subr.mxu0 0.0
    %2439 = vmatpush1.msra.mxu0 0.0
    %2440 = vmatprep.subr.mxu0 0.0
    %2441 = vmatpush1.msra.mxu0 0.0
    %2442 = vmatprep.subr.mxu0 0.0
    %2443 = vmatpush1.msra.mxu0 0.0
    %2444 = vmatprep.subr.mxu0 0.0
    %2445 = vmatpush1.msra.mxu0 0.0
    %2446 = vmatprep.subr.mxu0 0.0
    %2447 = vmatpush1.msra.mxu0 0.0
    %2448 = vmatprep.subr.mxu0 0.0
    %2449 = vmatpush1.msra.mxu0 0.0
    %2450 = vmatprep.subr.mxu0 0.0
    %2451 = vmatpush1.msra.mxu0 0.0
    %2452 = vmatprep.subr.mxu0 0.0
    %2453 = vmatpush1.msra.mxu0 0.0
    %2454 = vmatprep.subr.mxu0 0.0
    %2455 = vmatpush1.msra.mxu0 0.0
    %2456 = vmatprep.subr.mxu0 0.0
    %2457 = vmatpush1.msra.mxu0 0.0
    %2458 = vmatprep.subr.mxu0 0.0
    %2459 = vmatpush1.msra.mxu0 0.0
    %2460 = vmatprep.subr.mxu0 0.0
    %2461 = vmatpush1.msra.mxu0 0.0
    %2462 = vmatprep.subr.mxu0 0.0
    %2463 = vmatpush1.msra.mxu0 0.0
    %2464 = vmatprep.subr.mxu0 0.0
    %2465 = vmatpush1.msra.mxu0 0.0
    %2466 = vmatprep.subr.mxu0 0.0
    %2467 = vmatpush1.msra.mxu0 0.0
    %2468 = vmatprep.subr.mxu0 0.0
    %2469 = vmatpush1.msra.mxu0 0.0
    %2470 = vmatprep.subr.mxu0 0.0
    %2471 = vmatpush1.msra.mxu0 0.0
    %2472 = vmatprep.subr.mxu0 0.0
    %2473 = vmatpush1.msra.mxu0 0.0
    %2474 = vmatprep.subr.mxu0 0.0
    %2475 = vmatpush1.msra.mxu0 0.0
    %2476 = vmatprep.subr.mxu0 0.0
    %2477 = vmatpush1.msra.mxu0 0.0
    %2478 = vmatprep.subr.mxu0 0.0
    %2479 = vmatpush1.msra.mxu0 0.0
    %2480 = vmatprep.subr.mxu0 0.0
    %2481 = vmatpush1.msra.mxu0 0.0
    %2482 = vmatprep.subr.mxu0 0.0
    %2483 = vmatpush1.msra.mxu0 0.0
    %2484 = vmatprep.subr.mxu0 0.0
    %2485 = vmatpush1.msra.mxu0 0.0
    %2486 = vmatprep.subr.mxu0 0.0
    %2487 = vmatpush1.msra.mxu0 0.0
    %2488 = vmatprep.subr.mxu0 0.0
    %2489 = vmatpush1.msra.mxu0 0.0
    %2490 = vmatprep.subr.mxu0 0.0
    %2491 = vmatpush1.msra.mxu0 0.0
    %2492 = vmatprep.subr.mxu0 0.0
    %2493 = vmatpush1.msra.mxu0 0.0
    %2494 = vmatprep.mubr.f32.mxu0 0.0
    %v2495 = vand.u32 %v37, 4294901760
    %2496 = vmatmul.mubr.f32.gmra.mrb[0].mxu0 %v2495
    %v2497 = vpop.f32.mrb[0].mxu0
    %v2498 = vadd.f32 %v2405, %v2497
    %v2499 = vpop.f32.mrb[0].mxu0
    %2500 = vmatprep.mubr.f32.mxu0 0.0
    %v2501 = vand.u32 %v40, 4294901760
    %2502 = vmatmul.mubr.f32.gmra.mrb[0].mxu0 %v2501
    %v2503 = vpop.f32.mrb[0].mxu0
    %v2504 = vadd.f32 %v2411, %v2503
    %v2505 = vpop.f32.mrb[0].mxu0
    %2506 = vmatprep.mubr.f32.mxu0 0.0
    %v2507 = vand.u32 %v43, 4294901760
    %2508 = vmatmul.mubr.f32.gmra.mrb[0].mxu0 %v2507
    %v2509 = vpop.f32.mrb[0].mxu0
    %v2510 = vadd.f32 %v2417, %v2509
    %v2511 = vpop.f32.mrb[0].mxu0
    %2512 = vmatprep.mubr.f32.mxu0 0.0
    %v2513 = vand.u32 %v46, 4294901760
    %2514 = vmatmul.mubr.f32.gmra.mrb[0].mxu0 %v2513
    %v2515 = vpop.f32.mrb[0].mxu0
    %v2516 = vadd.f32 %v2423, %v2515
    %v2517 = vpop.f32.mrb[0].mxu0
    %2518 = vdwg.mxu0
    %s2519 = scalar_lea.vmem [#allocation2], 24
    %2520 = vst.msk [vmem:[%s2519] sm:$0xff] %vm662, %v2498
    %2521 = vst.msk [vmem:[%s2519 + $0x20] sm:$0xff] %vm662, %v2504
    %2522 = vst.msk [vmem:[%s2519 + $0x40] sm:$0xff] %vm662, %v2510
    %2523 = vst.msk [vmem:[%s2519 + $0x60] sm:$0xff] %vm662, %v2516
    %s2524 = scalar_lea.vmem %s1, 32
    %v2525 = vld [vmem:[%s2524] sm:$0xff]
    %v2526 = vld [vmem:[%s2524 + $0x8] sm:$0xff]
    %v2527 = vld [vmem:[%s2524 + $0x10] sm:$0xff]
    %v2528 = vld [vmem:[%s2524 + $0x18] sm:$0xff]
    %v2530 = vsel %vm35, %v2525, 0
    %v2533 = vsel %vm35, %v2526, 0
    %v2536 = vsel %vm35, %v2527, 0
    %v2539 = vsel %vm35, %v2528, 0
    %2541 = vmatprep.subr.mxu0 0.0
    %v2542 = vand.u32 %v12, 4294901760
    %2543 = vmatpush1.msra.mxu0 %v2542
    %2544 = vmatprep.subr.mxu0 0.0
    %v2545 = vand.u32 %v13, 4294901760
    %2546 = vmatpush1.msra.mxu0 %v2545
    %2547 = vmatprep.subr.mxu0 0.0
    %v2548 = vand.u32 %v14, 4294901760
    %2549 = vmatpush1.msra.mxu0 %v2548
    %2550 = vmatprep.subr.mxu0 0.0
    %v2551 = vand.u32 %v15, 4294901760
    %2552 = vmatpush1.msra.mxu0 %v2551
    %2553 = vmatprep.subr.mxu0 0.0
    %2554 = vmatpush1.msra.mxu0 0.0
    %2555 = vmatprep.subr.mxu0 0.0
    %2556 = vmatpush1.msra.mxu0 0.0
    %2557 = vmatprep.subr.mxu0 0.0
    %2558 = vmatpush1.msra.mxu0 0.0
    %2559 = vmatprep.subr.mxu0 0.0
    %2560 = vmatpush1.msra.mxu0 0.0
    %2561 = vmatprep.subr.mxu0 0.0
    %2562 = vmatpush1.msra.mxu0 0.0
    %2563 = vmatprep.subr.mxu0 0.0
    %2564 = vmatpush1.msra.mxu0 0.0
    %2565 = vmatprep.subr.mxu0 0.0
    %2566 = vmatpush1.msra.mxu0 0.0
    %2567 = vmatprep.subr.mxu0 0.0
    %2568 = vmatpush1.msra.mxu0 0.0
    %2569 = vmatprep.subr.mxu0 0.0
    %2570 = vmatpush1.msra.mxu0 0.0
    %2571 = vmatprep.subr.mxu0 0.0
    %2572 = vmatpush1.msra.mxu0 0.0
    %2573 = vmatprep.subr.mxu0 0.0
    %2574 = vmatpush1.msra.mxu0 0.0
    %2575 = vmatprep.subr.mxu0 0.0
    %2576 = vmatpush1.msra.mxu0 0.0
    %2577 = vmatprep.subr.mxu0 0.0
    %2578 = vmatpush1.msra.mxu0 0.0
    %2579 = vmatprep.subr.mxu0 0.0
    %2580 = vmatpush1.msra.mxu0 0.0
    %2581 = vmatprep.subr.mxu0 0.0
    %2582 = vmatpush1.msra.mxu0 0.0
    %2583 = vmatprep.subr.mxu0 0.0
    %2584 = vmatpush1.msra.mxu0 0.0
    %2585 = vmatprep.subr.mxu0 0.0
    %2586 = vmatpush1.msra.mxu0 0.0
    %2587 = vmatprep.subr.mxu0 0.0
    %2588 = vmatpush1.msra.mxu0 0.0
    %2589 = vmatprep.subr.mxu0 0.0
    %2590 = vmatpush1.msra.mxu0 0.0
    %2591 = vmatprep.subr.mxu0 0.0
    %2592 = vmatpush1.msra.mxu0 0.0
    %2593 = vmatprep.subr.mxu0 0.0
    %2594 = vmatpush1.msra.mxu0 0.0
    %2595 = vmatprep.subr.mxu0 0.0
    %2596 = vmatpush1.msra.mxu0 0.0
    %2597 = vmatprep.subr.mxu0 0.0
    %2598 = vmatpush1.msra.mxu0 0.0
    %2599 = vmatprep.subr.mxu0 0.0
    %2600 = vmatpush1.msra.mxu0 0.0
    %2601 = vmatprep.subr.mxu0 0.0
    %2602 = vmatpush1.msra.mxu0 0.0
    %2603 = vmatprep.subr.mxu0 0.0
    %2604 = vmatpush1.msra.mxu0 0.0
    %2605 = vmatprep.subr.mxu0 0.0
    %2606 = vmatpush1.msra.mxu0 0.0
    %2607 = vmatprep.subr.mxu0 0.0
    %2608 = vmatpush1.msra.mxu0 0.0
    %2609 = vmatprep.mubr.f32.mxu0 0.0
    %v2610 = vand.u32 %v2530, 4294901760
    %v2611 = vsub.f32 %v2530, %v2610
    %v2612 = vand.u32 %v2611, 4294901760
    %v2613 = vsub.f32 %v2611, %v2612
    %v2614 = vand.u32 %v2613, 4294901760
    %2615 = vmatmul.mubr.f32.gmra.mrb[0].mxu0 %v2614
    %v2616 = vpop.f32.mrb[0].mxu0
    %v2617 = vadd.f32 0.0, %v2616
    %v2618 = vpop.f32.mrb[0].mxu0
    %2619 = vmatprep.mubr.f32.mxu0 0.0
    %v2620 = vand.u32 %v2533, 4294901760
    %v2621 = vsub.f32 %v2533, %v2620
    %v2622 = vand.u32 %v2621, 4294901760
    %v2623 = vsub.f32 %v2621, %v2622
    %v2624 = vand.u32 %v2623, 4294901760
    %2625 = vmatmul.mubr.f32.gmra.mrb[0].mxu0 %v2624
    %v2626 = vpop.f32.mrb[0].mxu0
    %v2627 = vadd.f32 0.0, %v2626
    %v2628 = vpop.f32.mrb[0].mxu0
    %2629 = vmatprep.mubr.f32.mxu0 0.0
    %v2630 = vand.u32 %v2536, 4294901760
    %v2631 = vsub.f32 %v2536, %v2630
    %v2632 = vand.u32 %v2631, 4294901760
    %v2633 = vsub.f32 %v2631, %v2632
    %v2634 = vand.u32 %v2633, 4294901760
    %2635 = vmatmul.mubr.f32.gmra.mrb[0].mxu0 %v2634
    %v2636 = vpop.f32.mrb[0].mxu0
    %v2637 = vadd.f32 0.0, %v2636
    %v2638 = vpop.f32.mrb[0].mxu0
    %2639 = vmatprep.mubr.f32.mxu0 0.0
    %v2640 = vand.u32 %v2539, 4294901760
    %v2641 = vsub.f32 %v2539, %v2640
    %v2642 = vand.u32 %v2641, 4294901760
    %v2643 = vsub.f32 %v2641, %v2642
    %v2644 = vand.u32 %v2643, 4294901760
    %2645 = vmatmul.mubr.f32.gmra.mrb[0].mxu0 %v2644
    %v2646 = vpop.f32.mrb[0].mxu0
    %v2647 = vadd.f32 0.0, %v2646
    %v2648 = vpop.f32.mrb[0].mxu0
    %2649 = vdwg.mxu0
    %2650 = vmatprep.subr.mxu0 0.0
    %v2651 = vand.u32 %v12, 4294901760
    %v2652 = vsub.f32 %v12, %v2651
    %v2653 = vand.u32 %v2652, 4294901760
    %v2654 = vsub.f32 %v2652, %v2653
    %v2655 = vand.u32 %v2654, 4294901760
    %2656 = vmatpush1.msra.mxu0 %v2655
    %2657 = vmatprep.subr.mxu0 0.0
    %v2658 = vand.u32 %v13, 4294901760
    %v2659 = vsub.f32 %v13, %v2658
    %v2660 = vand.u32 %v2659, 4294901760
    %v2661 = vsub.f32 %v2659, %v2660
    %v2662 = vand.u32 %v2661, 4294901760
    %2663 = vmatpush1.msra.mxu0 %v2662
    %2664 = vmatprep.subr.mxu0 0.0
    %v2665 = vand.u32 %v14, 4294901760
    %v2666 = vsub.f32 %v14, %v2665
    %v2667 = vand.u32 %v2666, 4294901760
    %v2668 = vsub.f32 %v2666, %v2667
    %v2669 = vand.u32 %v2668, 4294901760
    %2670 = vmatpush1.msra.mxu0 %v2669
    %2671 = vmatprep.subr.mxu0 0.0
    %v2672 = vand.u32 %v15, 4294901760
    %v2673 = vsub.f32 %v15, %v2672
    %v2674 = vand.u32 %v2673, 4294901760
    %v2675 = vsub.f32 %v2673, %v2674
    %v2676 = vand.u32 %v2675, 4294901760
    %2677 = vmatpush1.msra.mxu0 %v2676
    %2678 = vmatprep.subr.mxu0 0.0
    %2679 = vmatpush1.msra.mxu0 0.0
    %2680 = vmatprep.subr.mxu0 0.0
    %2681 = vmatpush1.msra.mxu0 0.0
    %2682 = vmatprep.subr.mxu0 0.0
    %2683 = vmatpush1.msra.mxu0 0.0
    %2684 = vmatprep.subr.mxu0 0.0
    %2685 = vmatpush1.msra.mxu0 0.0
    %2686 = vmatprep.subr.mxu0 0.0
    %2687 = vmatpush1.msra.mxu0 0.0
    %2688 = vmatprep.subr.mxu0 0.0
    %2689 = vmatpush1.msra.mxu0 0.0
    %2690 = vmatprep.subr.mxu0 0.0
    %2691 = vmatpush1.msra.mxu0 0.0
    %2692 = vmatprep.subr.mxu0 0.0
    %2693 = vmatpush1.msra.mxu0 0.0
    %2694 = vmatprep.subr.mxu0 0.0
    %2695 = vmatpush1.msra.mxu0 0.0
    %2696 = vmatprep.subr.mxu0 0.0
    %2697 = vmatpush1.msra.mxu0 0.0
    %2698 = vmatprep.subr.mxu0 0.0
    %2699 = vmatpush1.msra.mxu0 0.0
    %2700 = vmatprep.subr.mxu0 0.0
    %2701 = vmatpush1.msra.mxu0 0.0
    %2702 = vmatprep.subr.mxu0 0.0
    %2703 = vmatpush1.msra.mxu0 0.0
    %2704 = vmatprep.subr.mxu0 0.0
    %2705 = vmatpush1.msra.mxu0 0.0
    %2706 = vmatprep.subr.mxu0 0.0
    %2707 = vmatpush1.msra.mxu0 0.0
    %2708 = vmatprep.subr.mxu0 0.0
    %2709 = vmatpush1.msra.mxu0 0.0
    %2710 = vmatprep.subr.mxu0 0.0
    %2711 = vmatpush1.msra.mxu0 0.0
    %2712 = vmatprep.subr.mxu0 0.0
    %2713 = vmatpush1.msra.mxu0 0.0
    %2714 = vmatprep.subr.mxu0 0.0
    %2715 = vmatpush1.msra.mxu0 0.0
    %2716 = vmatprep.subr.mxu0 0.0
    %2717 = vmatpush1.msra.mxu0 0.0
    %2718 = vmatprep.subr.mxu0 0.0
    %2719 = vmatpush1.msra.mxu0 0.0
    %2720 = vmatprep.subr.mxu0 0.0
    %2721 = vmatpush1.msra.mxu0 0.0
    %2722 = vmatprep.subr.mxu0 0.0
    %2723 = vmatpush1.msra.mxu0 0.0
    %2724 = vmatprep.subr.mxu0 0.0
    %2725 = vmatpush1.msra.mxu0 0.0
    %2726 = vmatprep.subr.mxu0 0.0
    %2727 = vmatpush1.msra.mxu0 0.0
    %2728 = vmatprep.subr.mxu0 0.0
    %2729 = vmatpush1.msra.mxu0 0.0
    %2730 = vmatprep.subr.mxu0 0.0
    %2731 = vmatpush1.msra.mxu0 0.0
    %2732 = vmatprep.subr.mxu0 0.0
    %2733 = vmatpush1.msra.mxu0 0.0
    %2734 = vmatprep.mubr.f32.mxu0 0.0
    %v2735 = vand.u32 %v2530, 4294901760
    %2736 = vmatmul.mubr.f32.gmra.mrb[0].mxu0 %v2735
    %v2737 = vpop.f32.mrb[0].mxu0
    %v2738 = vadd.f32 %v2617, %v2737
    %v2739 = vpop.f32.mrb[0].mxu0
    %2740 = vmatprep.mubr.f32.mxu0 0.0
    %v2741 = vand.u32 %v2533, 4294901760
    %2742 = vmatmul.mubr.f32.gmra.mrb[0].mxu0 %v2741
    %v2743 = vpop.f32.mrb[0].mxu0
    %v2744 = vadd.f32 %v2627, %v2743
    %v2745 = vpop.f32.mrb[0].mxu0
    %2746 = vmatprep.mubr.f32.mxu0 0.0
    %v2747 = vand.u32 %v2536, 4294901760
    %2748 = vmatmul.mubr.f32.gmra.mrb[0].mxu0 %v2747
    %v2749 = vpop.f32.mrb[0].mxu0
    %v2750 = vadd.f32 %v2637, %v2749
    %v2751 = vpop.f32.mrb[0].mxu0
    %2752 = vmatprep.mubr.f32.mxu0 0.0
    %v2753 = vand.u32 %v2539, 4294901760
    %2754 = vmatmul.mubr.f32.gmra.mrb[0].mxu0 %v2753
    %v2755 = vpop.f32.mrb[0].mxu0
    %v2756 = vadd.f32 %v2647, %v2755
    %v2757 = vpop.f32.mrb[0].mxu0
    %2758 = vdwg.mxu0
    %2759 = vmatprep.subr.mxu0 0.0
    %v2760 = vand.u32 %v12, 4294901760
    %v2761 = vsub.f32 %v12, %v2760
    %2762 = vmatpush1.msra.mxu0 %v2761
    %2763 = vmatprep.subr.mxu0 0.0
    %v2764 = vand.u32 %v13, 4294901760
    %v2765 = vsub.f32 %v13, %v2764
    %2766 = vmatpush1.msra.mxu0 %v2765
    %2767 = vmatprep.subr.mxu0 0.0
    %v2768 = vand.u32 %v14, 4294901760
    %v2769 = vsub.f32 %v14, %v2768
    %2770 = vmatpush1.msra.mxu0 %v2769
    %2771 = vmatprep.subr.mxu0 0.0
    %v2772 = vand.u32 %v15, 4294901760
    %v2773 = vsub.f32 %v15, %v2772
    %2774 = vmatpush1.msra.mxu0 %v2773
    %2775 = vmatprep.subr.mxu0 0.0
    %2776 = vmatpush1.msra.mxu0 0.0
    %2777 = vmatprep.subr.mxu0 0.0
    %2778 = vmatpush1.msra.mxu0 0.0
    %2779 = vmatprep.subr.mxu0 0.0
    %2780 = vmatpush1.msra.mxu0 0.0
    %2781 = vmatprep.subr.mxu0 0.0
    %2782 = vmatpush1.msra.mxu0 0.0
    %2783 = vmatprep.subr.mxu0 0.0
    %2784 = vmatpush1.msra.mxu0 0.0
    %2785 = vmatprep.subr.mxu0 0.0
    %2786 = vmatpush1.msra.mxu0 0.0
    %2787 = vmatprep.subr.mxu0 0.0
    %2788 = vmatpush1.msra.mxu0 0.0
    %2789 = vmatprep.subr.mxu0 0.0
    %2790 = vmatpush1.msra.mxu0 0.0
    %2791 = vmatprep.subr.mxu0 0.0
    %2792 = vmatpush1.msra.mxu0 0.0
    %2793 = vmatprep.subr.mxu0 0.0
    %2794 = vmatpush1.msra.mxu0 0.0
    %2795 = vmatprep.subr.mxu0 0.0
    %2796 = vmatpush1.msra.mxu0 0.0
    %2797 = vmatprep.subr.mxu0 0.0
    %2798 = vmatpush1.msra.mxu0 0.0
    %2799 = vmatprep.subr.mxu0 0.0
    %2800 = vmatpush1.msra.mxu0 0.0
    %2801 = vmatprep.subr.mxu0 0.0
    %2802 = vmatpush1.msra.mxu0 0.0
    %2803 = vmatprep.subr.mxu0 0.0
    %2804 = vmatpush1.msra.mxu0 0.0
    %2805 = vmatprep.subr.mxu0 0.0
    %2806 = vmatpush1.msra.mxu0 0.0
    %2807 = vmatprep.subr.mxu0 0.0
    %2808 = vmatpush1.msra.mxu0 0.0
    %2809 = vmatprep.subr.mxu0 0.0
    %2810 = vmatpush1.msra.mxu0 0.0
    %2811 = vmatprep.subr.mxu0 0.0
    %2812 = vmatpush1.msra.mxu0 0.0
    %2813 = vmatprep.subr.mxu0 0.0
    %2814 = vmatpush1.msra.mxu0 0.0
    %2815 = vmatprep.subr.mxu0 0.0
    %2816 = vmatpush1.msra.mxu0 0.0
    %2817 = vmatprep.subr.mxu0 0.0
    %2818 = vmatpush1.msra.mxu0 0.0
    %2819 = vmatprep.subr.mxu0 0.0
    %2820 = vmatpush1.msra.mxu0 0.0
    %2821 = vmatprep.subr.mxu0 0.0
    %2822 = vmatpush1.msra.mxu0 0.0
    %2823 = vmatprep.subr.mxu0 0.0
    %2824 = vmatpush1.msra.mxu0 0.0
    %2825 = vmatprep.subr.mxu0 0.0
    %2826 = vmatpush1.msra.mxu0 0.0
    %2827 = vmatprep.subr.mxu0 0.0
    %2828 = vmatpush1.msra.mxu0 0.0
    %2829 = vmatprep.subr.mxu0 0.0
    %2830 = vmatpush1.msra.mxu0 0.0
    %2831 = vmatprep.mubr.f32.mxu0 0.0
    %v2832 = vand.u32 %v2530, 4294901760
    %v2833 = vsub.f32 %v2530, %v2832
    %2834 = vmatmul.mubr.f32.gmra.mrb[0].mxu0 %v2833
    %v2835 = vpop.f32.mrb[0].mxu0
    %v2836 = vadd.f32 %v2738, %v2835
    %v2837 = vpop.f32.mrb[0].mxu0
    %2838 = vmatprep.mubr.f32.mxu0 0.0
    %v2839 = vand.u32 %v2533, 4294901760
    %v2840 = vsub.f32 %v2533, %v2839
    %2841 = vmatmul.mubr.f32.gmra.mrb[0].mxu0 %v2840
    %v2842 = vpop.f32.mrb[0].mxu0
    %v2843 = vadd.f32 %v2744, %v2842
    %v2844 = vpop.f32.mrb[0].mxu0
    %2845 = vmatprep.mubr.f32.mxu0 0.0
    %v2846 = vand.u32 %v2536, 4294901760
    %v2847 = vsub.f32 %v2536, %v2846
    %2848 = vmatmul.mubr.f32.gmra.mrb[0].mxu0 %v2847
    %v2849 = vpop.f32.mrb[0].mxu0
    %v2850 = vadd.f32 %v2750, %v2849
    %v2851 = vpop.f32.mrb[0].mxu0
    %2852 = vmatprep.mubr.f32.mxu0 0.0
    %v2853 = vand.u32 %v2539, 4294901760
    %v2854 = vsub.f32 %v2539, %v2853
    %2855 = vmatmul.mubr.f32.gmra.mrb[0].mxu0 %v2854
    %v2856 = vpop.f32.mrb[0].mxu0
    %v2857 = vadd.f32 %v2756, %v2856
    %v2858 = vpop.f32.mrb[0].mxu0
    %2859 = vdwg.mxu0
    %2860 = vmatprep.subr.mxu0 0.0
    %v2861 = vand.u32 %v12, 4294901760
    %2862 = vmatpush1.msra.mxu0 %v2861
    %2863 = vmatprep.subr.mxu0 0.0
    %v2864 = vand.u32 %v13, 4294901760
    %2865 = vmatpush1.msra.mxu0 %v2864
    %2866 = vmatprep.subr.mxu0 0.0
    %v2867 = vand.u32 %v14, 4294901760
    %2868 = vmatpush1.msra.mxu0 %v2867
    %2869 = vmatprep.subr.mxu0 0.0
    %v2870 = vand.u32 %v15, 4294901760
    %2871 = vmatpush1.msra.mxu0 %v2870
    %2872 = vmatprep.subr.mxu0 0.0
    %2873 = vmatpush1.msra.mxu0 0.0
    %2874 = vmatprep.subr.mxu0 0.0
    %2875 = vmatpush1.msra.mxu0 0.0
    %2876 = vmatprep.subr.mxu0 0.0
    %2877 = vmatpush1.msra.mxu0 0.0
    %2878 = vmatprep.subr.mxu0 0.0
    %2879 = vmatpush1.msra.mxu0 0.0
    %2880 = vmatprep.subr.mxu0 0.0
    %2881 = vmatpush1.msra.mxu0 0.0
    %2882 = vmatprep.subr.mxu0 0.0
    %2883 = vmatpush1.msra.mxu0 0.0
    %2884 = vmatprep.subr.mxu0 0.0
    %2885 = vmatpush1.msra.mxu0 0.0
    %2886 = vmatprep.subr.mxu0 0.0
    %2887 = vmatpush1.msra.mxu0 0.0
    %2888 = vmatprep.subr.mxu0 0.0
    %2889 = vmatpush1.msra.mxu0 0.0
    %2890 = vmatprep.subr.mxu0 0.0
    %2891 = vmatpush1.msra.mxu0 0.0
    %2892 = vmatprep.subr.mxu0 0.0
    %2893 = vmatpush1.msra.mxu0 0.0
    %2894 = vmatprep.subr.mxu0 0.0
    %2895 = vmatpush1.msra.mxu0 0.0
    %2896 = vmatprep.subr.mxu0 0.0
    %2897 = vmatpush1.msra.mxu0 0.0
    %2898 = vmatprep.subr.mxu0 0.0
    %2899 = vmatpush1.msra.mxu0 0.0
    %2900 = vmatprep.subr.mxu0 0.0
    %2901 = vmatpush1.msra.mxu0 0.0
    %2902 = vmatprep.subr.mxu0 0.0
    %2903 = vmatpush1.msra.mxu0 0.0
    %2904 = vmatprep.subr.mxu0 0.0
    %2905 = vmatpush1.msra.mxu0 0.0
    %2906 = vmatprep.subr.mxu0 0.0
    %2907 = vmatpush1.msra.mxu0 0.0
    %2908 = vmatprep.subr.mxu0 0.0
    %2909 = vmatpush1.msra.mxu0 0.0
    %2910 = vmatprep.subr.mxu0 0.0
    %2911 = vmatpush1.msra.mxu0 0.0
    %2912 = vmatprep.subr.mxu0 0.0
    %2913 = vmatpush1.msra.mxu0 0.0
    %2914 = vmatprep.subr.mxu0 0.0
    %2915 = vmatpush1.msra.mxu0 0.0
    %2916 = vmatprep.subr.mxu0 0.0
    %2917 = vmatpush1.msra.mxu0 0.0
    %2918 = vmatprep.subr.mxu0 0.0
    %2919 = vmatpush1.msra.mxu0 0.0
    %2920 = vmatprep.subr.mxu0 0.0
    %2921 = vmatpush1.msra.mxu0 0.0
    %2922 = vmatprep.subr.mxu0 0.0
    %2923 = vmatpush1.msra.mxu0 0.0
    %2924 = vmatprep.subr.mxu0 0.0
    %2925 = vmatpush1.msra.mxu0 0.0
    %2926 = vmatprep.subr.mxu0 0.0
    %2927 = vmatpush1.msra.mxu0 0.0
    %2928 = vmatprep.mubr.f32.mxu0 0.0
    %v2929 = vand.u32 %v2530, 4294901760
    %v2930 = vsub.f32 %v2530, %v2929
    %v2931 = vand.u32 %v2930, 4294901760
    %2932 = vmatmul.mubr.f32.gmra.mrb[0].mxu0 %v2931
    %v2933 = vpop.f32.mrb[0].mxu0
    %v2934 = vadd.f32 %v2836, %v2933
    %v2935 = vpop.f32.mrb[0].mxu0
    %2936 = vmatprep.mubr.f32.mxu0 0.0
    %v2937 = vand.u32 %v2533, 4294901760
    %v2938 = vsub.f32 %v2533, %v2937
    %v2939 = vand.u32 %v2938, 4294901760
    %2940 = vmatmul.mubr.f32.gmra.mrb[0].mxu0 %v2939
    %v2941 = vpop.f32.mrb[0].mxu0
    %v2942 = vadd.f32 %v2843, %v2941
    %v2943 = vpop.f32.mrb[0].mxu0
    %2944 = vmatprep.mubr.f32.mxu0 0.0
    %v2945 = vand.u32 %v2536, 4294901760
    %v2946 = vsub.f32 %v2536, %v2945
    %v2947 = vand.u32 %v2946, 4294901760
    %2948 = vmatmul.mubr.f32.gmra.mrb[0].mxu0 %v2947
    %v2949 = vpop.f32.mrb[0].mxu0
    %v2950 = vadd.f32 %v2850, %v2949
    %v2951 = vpop.f32.mrb[0].mxu0
    %2952 = vmatprep.mubr.f32.mxu0 0.0
    %v2953 = vand.u32 %v2539, 4294901760
    %v2954 = vsub.f32 %v2539, %v2953
    %v2955 = vand.u32 %v2954, 4294901760
    %2956 = vmatmul.mubr.f32.gmra.mrb[0].mxu0 %v2955
    %v2957 = vpop.f32.mrb[0].mxu0
    %v2958 = vadd.f32 %v2857, %v2957
    %v2959 = vpop.f32.mrb[0].mxu0
    %2960 = vdwg.mxu0
    %2961 = vmatprep.subr.mxu0 0.0
    %v2962 = vand.u32 %v12, 4294901760
    %v2963 = vsub.f32 %v12, %v2962
    %v2964 = vand.u32 %v2963, 4294901760
    %2965 = vmatpush1.msra.mxu0 %v2964
    %2966 = vmatprep.subr.mxu0 0.0
    %v2967 = vand.u32 %v13, 4294901760
    %v2968 = vsub.f32 %v13, %v2967
    %v2969 = vand.u32 %v2968, 4294901760
    %2970 = vmatpush1.msra.mxu0 %v2969
    %2971 = vmatprep.subr.mxu0 0.0
    %v2972 = vand.u32 %v14, 4294901760
    %v2973 = vsub.f32 %v14, %v2972
    %v2974 = vand.u32 %v2973, 4294901760
    %2975 = vmatpush1.msra.mxu0 %v2974
    %2976 = vmatprep.subr.mxu0 0.0
    %v2977 = vand.u32 %v15, 4294901760
    %v2978 = vsub.f32 %v15, %v2977
    %v2979 = vand.u32 %v2978, 4294901760
    %2980 = vmatpush1.msra.mxu0 %v2979
    %2981 = vmatprep.subr.mxu0 0.0
    %2982 = vmatpush1.msra.mxu0 0.0
    %2983 = vmatprep.subr.mxu0 0.0
    %2984 = vmatpush1.msra.mxu0 0.0
    %2985 = vmatprep.subr.mxu0 0.0
    %2986 = vmatpush1.msra.mxu0 0.0
    %2987 = vmatprep.subr.mxu0 0.0
    %2988 = vmatpush1.msra.mxu0 0.0
    %2989 = vmatprep.subr.mxu0 0.0
    %2990 = vmatpush1.msra.mxu0 0.0
    %2991 = vmatprep.subr.mxu0 0.0
    %2992 = vmatpush1.msra.mxu0 0.0
    %2993 = vmatprep.subr.mxu0 0.0
    %2994 = vmatpush1.msra.mxu0 0.0
    %2995 = vmatprep.subr.mxu0 0.0
    %2996 = vmatpush1.msra.mxu0 0.0
    %2997 = vmatprep.subr.mxu0 0.0
    %2998 = vmatpush1.msra.mxu0 0.0
    %2999 = vmatprep.subr.mxu0 0.0
    %3000 = vmatpush1.msra.mxu0 0.0
    %3001 = vmatprep.subr.mxu0 0.0
    %3002 = vmatpush1.msra.mxu0 0.0
    %3003 = vmatprep.subr.mxu0 0.0
    %3004 = vmatpush1.msra.mxu0 0.0
    %3005 = vmatprep.subr.mxu0 0.0
    %3006 = vmatpush1.msra.mxu0 0.0
    %3007 = vmatprep.subr.mxu0 0.0
    %3008 = vmatpush1.msra.mxu0 0.0
    %3009 = vmatprep.subr.mxu0 0.0
    %3010 = vmatpush1.msra.mxu0 0.0
    %3011 = vmatprep.subr.mxu0 0.0
    %3012 = vmatpush1.msra.mxu0 0.0
    %3013 = vmatprep.subr.mxu0 0.0
    %3014 = vmatpush1.msra.mxu0 0.0
    %3015 = vmatprep.subr.mxu0 0.0
    %3016 = vmatpush1.msra.mxu0 0.0
    %3017 = vmatprep.subr.mxu0 0.0
    %3018 = vmatpush1.msra.mxu0 0.0
    %3019 = vmatprep.subr.mxu0 0.0
    %3020 = vmatpush1.msra.mxu0 0.0
    %3021 = vmatprep.subr.mxu0 0.0
    %3022 = vmatpush1.msra.mxu0 0.0
    %3023 = vmatprep.subr.mxu0 0.0
    %3024 = vmatpush1.msra.mxu0 0.0
    %3025 = vmatprep.subr.mxu0 0.0
    %3026 = vmatpush1.msra.mxu0 0.0
    %3027 = vmatprep.subr.mxu0 0.0
    %3028 = vmatpush1.msra.mxu0 0.0
    %3029 = vmatprep.subr.mxu0 0.0
    %3030 = vmatpush1.msra.mxu0 0.0
    %3031 = vmatprep.subr.mxu0 0.0
    %3032 = vmatpush1.msra.mxu0 0.0
    %3033 = vmatprep.subr.mxu0 0.0
    %3034 = vmatpush1.msra.mxu0 0.0
    %3035 = vmatprep.subr.mxu0 0.0
    %3036 = vmatpush1.msra.mxu0 0.0
    %3037 = vmatprep.mubr.f32.mxu0 0.0
    %v3038 = vand.u32 %v2530, 4294901760
    %3039 = vmatmul.mubr.f32.gmra.mrb[0].mxu0 %v3038
    %v3040 = vpop.f32.mrb[0].mxu0
    %v3041 = vadd.f32 %v2934, %v3040
    %v3042 = vpop.f32.mrb[0].mxu0
    %3043 = vmatprep.mubr.f32.mxu0 0.0
    %v3044 = vand.u32 %v2533, 4294901760
    %3045 = vmatmul.mubr.f32.gmra.mrb[0].mxu0 %v3044
    %v3046 = vpop.f32.mrb[0].mxu0
    %v3047 = vadd.f32 %v2942, %v3046
    %v3048 = vpop.f32.mrb[0].mxu0
    %3049 = vmatprep.mubr.f32.mxu0 0.0
    %v3050 = vand.u32 %v2536, 4294901760
    %3051 = vmatmul.mubr.f32.gmra.mrb[0].mxu0 %v3050
    %v3052 = vpop.f32.mrb[0].mxu0
    %v3053 = vadd.f32 %v2950, %v3052
    %v3054 = vpop.f32.mrb[0].mxu0
    %3055 = vmatprep.mubr.f32.mxu0 0.0
    %v3056 = vand.u32 %v2539, 4294901760
    %3057 = vmatmul.mubr.f32.gmra.mrb[0].mxu0 %v3056
    %v3058 = vpop.f32.mrb[0].mxu0
    %v3059 = vadd.f32 %v2958, %v3058
    %v3060 = vpop.f32.mrb[0].mxu0
    %3061 = vdwg.mxu0
    %3062 = vmatprep.subr.mxu0 0.0
    %v3063 = vand.u32 %v12, 4294901760
    %3064 = vmatpush1.msra.mxu0 %v3063
    %3065 = vmatprep.subr.mxu0 0.0
    %v3066 = vand.u32 %v13, 4294901760
    %3067 = vmatpush1.msra.mxu0 %v3066
    %3068 = vmatprep.subr.mxu0 0.0
    %v3069 = vand.u32 %v14, 4294901760
    %3070 = vmatpush1.msra.mxu0 %v3069
    %3071 = vmatprep.subr.mxu0 0.0
    %v3072 = vand.u32 %v15, 4294901760
    %3073 = vmatpush1.msra.mxu0 %v3072
    %3074 = vmatprep.subr.mxu0 0.0
    %3075 = vmatpush1.msra.mxu0 0.0
    %3076 = vmatprep.subr.mxu0 0.0
    %3077 = vmatpush1.msra.mxu0 0.0
    %3078 = vmatprep.subr.mxu0 0.0
    %3079 = vmatpush1.msra.mxu0 0.0
    %3080 = vmatprep.subr.mxu0 0.0
    %3081 = vmatpush1.msra.mxu0 0.0
    %3082 = vmatprep.subr.mxu0 0.0
    %3083 = vmatpush1.msra.mxu0 0.0
    %3084 = vmatprep.subr.mxu0 0.0
    %3085 = vmatpush1.msra.mxu0 0.0
    %3086 = vmatprep.subr.mxu0 0.0
    %3087 = vmatpush1.msra.mxu0 0.0
    %3088 = vmatprep.subr.mxu0 0.0
    %3089 = vmatpush1.msra.mxu0 0.0
    %3090 = vmatprep.subr.mxu0 0.0
    %3091 = vmatpush1.msra.mxu0 0.0
    %3092 = vmatprep.subr.mxu0 0.0
    %3093 = vmatpush1.msra.mxu0 0.0
    %3094 = vmatprep.subr.mxu0 0.0
    %3095 = vmatpush1.msra.mxu0 0.0
    %3096 = vmatprep.subr.mxu0 0.0
    %3097 = vmatpush1.msra.mxu0 0.0
    %3098 = vmatprep.subr.mxu0 0.0
    %3099 = vmatpush1.msra.mxu0 0.0
    %3100 = vmatprep.subr.mxu0 0.0
    %3101 = vmatpush1.msra.mxu0 0.0
    %3102 = vmatprep.subr.mxu0 0.0
    %3103 = vmatpush1.msra.mxu0 0.0
    %3104 = vmatprep.subr.mxu0 0.0
    %3105 = vmatpush1.msra.mxu0 0.0
    %3106 = vmatprep.subr.mxu0 0.0
    %3107 = vmatpush1.msra.mxu0 0.0
    %3108 = vmatprep.subr.mxu0 0.0
    %3109 = vmatpush1.msra.mxu0 0.0
    %3110 = vmatprep.subr.mxu0 0.0
    %3111 = vmatpush1.msra.mxu0 0.0
    %3112 = vmatprep.subr.mxu0 0.0
    %3113 = vmatpush1.msra.mxu0 0.0
    %3114 = vmatprep.subr.mxu0 0.0
    %3115 = vmatpush1.msra.mxu0 0.0
    %3116 = vmatprep.subr.mxu0 0.0
    %3117 = vmatpush1.msra.mxu0 0.0
    %3118 = vmatprep.subr.mxu0 0.0
    %3119 = vmatpush1.msra.mxu0 0.0
    %3120 = vmatprep.subr.mxu0 0.0
    %3121 = vmatpush1.msra.mxu0 0.0
    %3122 = vmatprep.subr.mxu0 0.0
    %3123 = vmatpush1.msra.mxu0 0.0
    %3124 = vmatprep.subr.mxu0 0.0
    %3125 = vmatpush1.msra.mxu0 0.0
    %3126 = vmatprep.subr.mxu0 0.0
    %3127 = vmatpush1.msra.mxu0 0.0
    %3128 = vmatprep.subr.mxu0 0.0
    %3129 = vmatpush1.msra.mxu0 0.0
    %3130 = vmatprep.mubr.f32.mxu0 0.0
    %v3131 = vand.u32 %v2530, 4294901760
    %3132 = vmatmul.mubr.f32.gmra.mrb[0].mxu0 %v3131
    %v3133 = vpop.f32.mrb[0].mxu0
    %v3134 = vadd.f32 %v3041, %v3133
    %v3135 = vpop.f32.mrb[0].mxu0
    %3136 = vmatprep.mubr.f32.mxu0 0.0
    %v3137 = vand.u32 %v2533, 4294901760
    %3138 = vmatmul.mubr.f32.gmra.mrb[0].mxu0 %v3137
    %v3139 = vpop.f32.mrb[0].mxu0
    %v3140 = vadd.f32 %v3047, %v3139
    %v3141 = vpop.f32.mrb[0].mxu0
    %3142 = vmatprep.mubr.f32.mxu0 0.0
    %v3143 = vand.u32 %v2536, 4294901760
    %3144 = vmatmul.mubr.f32.gmra.mrb[0].mxu0 %v3143
    %v3145 = vpop.f32.mrb[0].mxu0
    %v3146 = vadd.f32 %v3053, %v3145
    %v3147 = vpop.f32.mrb[0].mxu0
    %3148 = vmatprep.mubr.f32.mxu0 0.0
    %v3149 = vand.u32 %v2539, 4294901760
    %3150 = vmatmul.mubr.f32.gmra.mrb[0].mxu0 %v3149
    %v3151 = vpop.f32.mrb[0].mxu0
    %v3152 = vadd.f32 %v3059, %v3151
    %v3153 = vpop.f32.mrb[0].mxu0
    %3154 = vdwg.mxu0
    %s3155 = scalar_lea.vmem [#allocation2], 128
    %3156 = vst.msk [vmem:[%s3155] sm:$0xff] %vm662, %v3134
    %3157 = vst.msk [vmem:[%s3155 + $0x20] sm:$0xff] %vm662, %v3140
    %3158 = vst.msk [vmem:[%s3155 + $0x40] sm:$0xff] %vm662, %v3146
    %3159 = vst.msk [vmem:[%s3155 + $0x60] sm:$0xff] %vm662, %v3152
    %3160 = vmatprep.subr.mxu0 0.0
    %v3161 = vand.u32 %v17, 4294901760
    %3162 = vmatpush1.msra.mxu0 %v3161
    %3163 = vmatprep.subr.mxu0 0.0
    %v3164 = vand.u32 %v18, 4294901760
    %3165 = vmatpush1.msra.mxu0 %v3164
    %3166 = vmatprep.subr.mxu0 0.0
    %v3167 = vand.u32 %v19, 4294901760
    %3168 = vmatpush1.msra.mxu0 %v3167
    %3169 = vmatprep.subr.mxu0 0.0
    %v3170 = vand.u32 %v20, 4294901760
    %3171 = vmatpush1.msra.mxu0 %v3170
    %3172 = vmatprep.subr.mxu0 0.0
    %3173 = vmatpush1.msra.mxu0 0.0
    %3174 = vmatprep.subr.mxu0 0.0
    %3175 = vmatpush1.msra.mxu0 0.0
    %3176 = vmatprep.subr.mxu0 0.0
    %3177 = vmatpush1.msra.mxu0 0.0
    %3178 = vmatprep.subr.mxu0 0.0
    %3179 = vmatpush1.msra.mxu0 0.0
    %3180 = vmatprep.subr.mxu0 0.0
    %3181 = vmatpush1.msra.mxu0 0.0
    %3182 = vmatprep.subr.mxu0 0.0
    %3183 = vmatpush1.msra.mxu0 0.0
    %3184 = vmatprep.subr.mxu0 0.0
    %3185 = vmatpush1.msra.mxu0 0.0
    %3186 = vmatprep.subr.mxu0 0.0
    %3187 = vmatpush1.msra.mxu0 0.0
    %3188 = vmatprep.subr.mxu0 0.0
    %3189 = vmatpush1.msra.mxu0 0.0
    %3190 = vmatprep.subr.mxu0 0.0
    %3191 = vmatpush1.msra.mxu0 0.0
    %3192 = vmatprep.subr.mxu0 0.0
    %3193 = vmatpush1.msra.mxu0 0.0
    %3194 = vmatprep.subr.mxu0 0.0
    %3195 = vmatpush1.msra.mxu0 0.0
    %3196 = vmatprep.subr.mxu0 0.0
    %3197 = vmatpush1.msra.mxu0 0.0
    %3198 = vmatprep.subr.mxu0 0.0
    %3199 = vmatpush1.msra.mxu0 0.0
    %3200 = vmatprep.subr.mxu0 0.0
    %3201 = vmatpush1.msra.mxu0 0.0
    %3202 = vmatprep.subr.mxu0 0.0
    %3203 = vmatpush1.msra.mxu0 0.0
    %3204 = vmatprep.subr.mxu0 0.0
    %3205 = vmatpush1.msra.mxu0 0.0
    %3206 = vmatprep.subr.mxu0 0.0
    %3207 = vmatpush1.msra.mxu0 0.0
    %3208 = vmatprep.subr.mxu0 0.0
    %3209 = vmatpush1.msra.mxu0 0.0
    %3210 = vmatprep.subr.mxu0 0.0
    %3211 = vmatpush1.msra.mxu0 0.0
    %3212 = vmatprep.subr.mxu0 0.0
    %3213 = vmatpush1.msra.mxu0 0.0
    %3214 = vmatprep.subr.mxu0 0.0
    %3215 = vmatpush1.msra.mxu0 0.0
    %3216 = vmatprep.subr.mxu0 0.0
    %3217 = vmatpush1.msra.mxu0 0.0
    %3218 = vmatprep.subr.mxu0 0.0
    %3219 = vmatpush1.msra.mxu0 0.0
    %3220 = vmatprep.subr.mxu0 0.0
    %3221 = vmatpush1.msra.mxu0 0.0
    %3222 = vmatprep.subr.mxu0 0.0
    %3223 = vmatpush1.msra.mxu0 0.0
    %3224 = vmatprep.subr.mxu0 0.0
    %3225 = vmatpush1.msra.mxu0 0.0
    %3226 = vmatprep.subr.mxu0 0.0
    %3227 = vmatpush1.msra.mxu0 0.0
    %3228 = vmatprep.mubr.f32.mxu0 0.0
    %v3229 = vand.u32 %v2530, 4294901760
    %v3230 = vsub.f32 %v2530, %v3229
    %v3231 = vand.u32 %v3230, 4294901760
    %v3232 = vsub.f32 %v3230, %v3231
    %v3233 = vand.u32 %v3232, 4294901760
    %3234 = vmatmul.mubr.f32.gmra.mrb[0].mxu0 %v3233
    %v3235 = vpop.f32.mrb[0].mxu0
    %v3236 = vadd.f32 0.0, %v3235
    %v3237 = vpop.f32.mrb[0].mxu0
    %3238 = vmatprep.mubr.f32.mxu0 0.0
    %v3239 = vand.u32 %v2533, 4294901760
    %v3240 = vsub.f32 %v2533, %v3239
    %v3241 = vand.u32 %v3240, 4294901760
    %v3242 = vsub.f32 %v3240, %v3241
    %v3243 = vand.u32 %v3242, 4294901760
    %3244 = vmatmul.mubr.f32.gmra.mrb[0].mxu0 %v3243
    %v3245 = vpop.f32.mrb[0].mxu0
    %v3246 = vadd.f32 0.0, %v3245
    %v3247 = vpop.f32.mrb[0].mxu0
    %3248 = vmatprep.mubr.f32.mxu0 0.0
    %v3249 = vand.u32 %v2536, 4294901760
    %v3250 = vsub.f32 %v2536, %v3249
    %v3251 = vand.u32 %v3250, 4294901760
    %v3252 = vsub.f32 %v3250, %v3251
    %v3253 = vand.u32 %v3252, 4294901760
    %3254 = vmatmul.mubr.f32.gmra.mrb[0].mxu0 %v3253
    %v3255 = vpop.f32.mrb[0].mxu0
    %v3256 = vadd.f32 0.0, %v3255
    %v3257 = vpop.f32.mrb[0].mxu0
    %3258 = vmatprep.mubr.f32.mxu0 0.0
    %v3259 = vand.u32 %v2539, 4294901760
    %v3260 = vsub.f32 %v2539, %v3259
    %v3261 = vand.u32 %v3260, 4294901760
    %v3262 = vsub.f32 %v3260, %v3261
    %v3263 = vand.u32 %v3262, 4294901760
    %3264 = vmatmul.mubr.f32.gmra.mrb[0].mxu0 %v3263
    %v3265 = vpop.f32.mrb[0].mxu0
    %v3266 = vadd.f32 0.0, %v3265
    %v3267 = vpop.f32.mrb[0].mxu0
    %3268 = vdwg.mxu0
    %3269 = vmatprep.subr.mxu0 0.0
    %v3270 = vand.u32 %v17, 4294901760
    %v3271 = vsub.f32 %v17, %v3270
    %v3272 = vand.u32 %v3271, 4294901760
    %v3273 = vsub.f32 %v3271, %v3272
    %v3274 = vand.u32 %v3273, 4294901760
    %3275 = vmatpush1.msra.mxu0 %v3274
    %3276 = vmatprep.subr.mxu0 0.0
    %v3277 = vand.u32 %v18, 4294901760
    %v3278 = vsub.f32 %v18, %v3277
    %v3279 = vand.u32 %v3278, 4294901760
    %v3280 = vsub.f32 %v3278, %v3279
    %v3281 = vand.u32 %v3280, 4294901760
    %3282 = vmatpush1.msra.mxu0 %v3281
    %3283 = vmatprep.subr.mxu0 0.0
    %v3284 = vand.u32 %v19, 4294901760
    %v3285 = vsub.f32 %v19, %v3284
    %v3286 = vand.u32 %v3285, 4294901760
    %v3287 = vsub.f32 %v3285, %v3286
    %v3288 = vand.u32 %v3287, 4294901760
    %3289 = vmatpush1.msra.mxu0 %v3288
    %3290 = vmatprep.subr.mxu0 0.0
    %v3291 = vand.u32 %v20, 4294901760
    %v3292 = vsub.f32 %v20, %v3291
    %v3293 = vand.u32 %v3292, 4294901760
    %v3294 = vsub.f32 %v3292, %v3293
    %v3295 = vand.u32 %v3294, 4294901760
    %3296 = vmatpush1.msra.mxu0 %v3295
    %3297 = vmatprep.subr.mxu0 0.0
    %3298 = vmatpush1.msra.mxu0 0.0
    %3299 = vmatprep.subr.mxu0 0.0
    %3300 = vmatpush1.msra.mxu0 0.0
    %3301 = vmatprep.subr.mxu0 0.0
    %3302 = vmatpush1.msra.mxu0 0.0
    %3303 = vmatprep.subr.mxu0 0.0
    %3304 = vmatpush1.msra.mxu0 0.0
    %3305 = vmatprep.subr.mxu0 0.0
    %3306 = vmatpush1.msra.mxu0 0.0
    %3307 = vmatprep.subr.mxu0 0.0
    %3308 = vmatpush1.msra.mxu0 0.0
    %3309 = vmatprep.subr.mxu0 0.0
    %3310 = vmatpush1.msra.mxu0 0.0
    %3311 = vmatprep.subr.mxu0 0.0
    %3312 = vmatpush1.msra.mxu0 0.0
    %3313 = vmatprep.subr.mxu0 0.0
    %3314 = vmatpush1.msra.mxu0 0.0
    %3315 = vmatprep.subr.mxu0 0.0
    %3316 = vmatpush1.msra.mxu0 0.0
    %3317 = vmatprep.subr.mxu0 0.0
    %3318 = vmatpush1.msra.mxu0 0.0
    %3319 = vmatprep.subr.mxu0 0.0
    %3320 = vmatpush1.msra.mxu0 0.0
    %3321 = vmatprep.subr.mxu0 0.0
    %3322 = vmatpush1.msra.mxu0 0.0
    %3323 = vmatprep.subr.mxu0 0.0
    %3324 = vmatpush1.msra.mxu0 0.0
    %3325 = vmatprep.subr.mxu0 0.0
    %3326 = vmatpush1.msra.mxu0 0.0
    %3327 = vmatprep.subr.mxu0 0.0
    %3328 = vmatpush1.msra.mxu0 0.0
    %3329 = vmatprep.subr.mxu0 0.0
    %3330 = vmatpush1.msra.mxu0 0.0
    %3331 = vmatprep.subr.mxu0 0.0
    %3332 = vmatpush1.msra.mxu0 0.0
    %3333 = vmatprep.subr.mxu0 0.0
    %3334 = vmatpush1.msra.mxu0 0.0
    %3335 = vmatprep.subr.mxu0 0.0
    %3336 = vmatpush1.msra.mxu0 0.0
    %3337 = vmatprep.subr.mxu0 0.0
    %3338 = vmatpush1.msra.mxu0 0.0
    %3339 = vmatprep.subr.mxu0 0.0
    %3340 = vmatpush1.msra.mxu0 0.0
    %3341 = vmatprep.subr.mxu0 0.0
    %3342 = vmatpush1.msra.mxu0 0.0
    %3343 = vmatprep.subr.mxu0 0.0
    %3344 = vmatpush1.msra.mxu0 0.0
    %3345 = vmatprep.subr.mxu0 0.0
    %3346 = vmatpush1.msra.mxu0 0.0
    %3347 = vmatprep.subr.mxu0 0.0
    %3348 = vmatpush1.msra.mxu0 0.0
    %3349 = vmatprep.subr.mxu0 0.0
    %3350 = vmatpush1.msra.mxu0 0.0
    %3351 = vmatprep.subr.mxu0 0.0
    %3352 = vmatpush1.msra.mxu0 0.0
    %3353 = vmatprep.mubr.f32.mxu0 0.0
    %v3354 = vand.u32 %v2530, 4294901760
    %3355 = vmatmul.mubr.f32.gmra.mrb[0].mxu0 %v3354
    %v3356 = vpop.f32.mrb[0].mxu0
    %v3357 = vadd.f32 %v3236, %v3356
    %v3358 = vpop.f32.mrb[0].mxu0
    %3359 = vmatprep.mubr.f32.mxu0 0.0
    %v3360 = vand.u32 %v2533, 4294901760
    %3361 = vmatmul.mubr.f32.gmra.mrb[0].mxu0 %v3360
    %v3362 = vpop.f32.mrb[0].mxu0
    %v3363 = vadd.f32 %v3246, %v3362
    %v3364 = vpop.f32.mrb[0].mxu0
    %3365 = vmatprep.mubr.f32.mxu0 0.0
    %v3366 = vand.u32 %v2536, 4294901760
    %3367 = vmatmul.mubr.f32.gmra.mrb[0].mxu0 %v3366
    %v3368 = vpop.f32.mrb[0].mxu0
    %v3369 = vadd.f32 %v3256, %v3368
    %v3370 = vpop.f32.mrb[0].mxu0
    %3371 = vmatprep.mubr.f32.mxu0 0.0
    %v3372 = vand.u32 %v2539, 4294901760
    %3373 = vmatmul.mubr.f32.gmra.mrb[0].mxu0 %v3372
    %v3374 = vpop.f32.mrb[0].mxu0
    %v3375 = vadd.f32 %v3266, %v3374
    %v3376 = vpop.f32.mrb[0].mxu0
    %3377 = vdwg.mxu0
    %3378 = vmatprep.subr.mxu0 0.0
    %v3379 = vand.u32 %v17, 4294901760
    %v3380 = vsub.f32 %v17, %v3379
    %3381 = vmatpush1.msra.mxu0 %v3380
    %3382 = vmatprep.subr.mxu0 0.0
    %v3383 = vand.u32 %v18, 4294901760
    %v3384 = vsub.f32 %v18, %v3383
    %3385 = vmatpush1.msra.mxu0 %v3384
    %3386 = vmatprep.subr.mxu0 0.0
    %v3387 = vand.u32 %v19, 4294901760
    %v3388 = vsub.f32 %v19, %v3387
    %3389 = vmatpush1.msra.mxu0 %v3388
    %3390 = vmatprep.subr.mxu0 0.0
    %v3391 = vand.u32 %v20, 4294901760
    %v3392 = vsub.f32 %v20, %v3391
    %3393 = vmatpush1.msra.mxu0 %v3392
    %3394 = vmatprep.subr.mxu0 0.0
    %3395 = vmatpush1.msra.mxu0 0.0
    %3396 = vmatprep.subr.mxu0 0.0
    %3397 = vmatpush1.msra.mxu0 0.0
    %3398 = vmatprep.subr.mxu0 0.0
    %3399 = vmatpush1.msra.mxu0 0.0
    %3400 = vmatprep.subr.mxu0 0.0
    %3401 = vmatpush1.msra.mxu0 0.0
    %3402 = vmatprep.subr.mxu0 0.0
    %3403 = vmatpush1.msra.mxu0 0.0
    %3404 = vmatprep.subr.mxu0 0.0
    %3405 = vmatpush1.msra.mxu0 0.0
    %3406 = vmatprep.subr.mxu0 0.0
    %3407 = vmatpush1.msra.mxu0 0.0
    %3408 = vmatprep.subr.mxu0 0.0
    %3409 = vmatpush1.msra.mxu0 0.0
    %3410 = vmatprep.subr.mxu0 0.0
    %3411 = vmatpush1.msra.mxu0 0.0
    %3412 = vmatprep.subr.mxu0 0.0
    %3413 = vmatpush1.msra.mxu0 0.0
    %3414 = vmatprep.subr.mxu0 0.0
    %3415 = vmatpush1.msra.mxu0 0.0
    %3416 = vmatprep.subr.mxu0 0.0
    %3417 = vmatpush1.msra.mxu0 0.0
    %3418 = vmatprep.subr.mxu0 0.0
    %3419 = vmatpush1.msra.mxu0 0.0
    %3420 = vmatprep.subr.mxu0 0.0
    %3421 = vmatpush1.msra.mxu0 0.0
    %3422 = vmatprep.subr.mxu0 0.0
    %3423 = vmatpush1.msra.mxu0 0.0
    %3424 = vmatprep.subr.mxu0 0.0
    %3425 = vmatpush1.msra.mxu0 0.0
    %3426 = vmatprep.subr.mxu0 0.0
    %3427 = vmatpush1.msra.mxu0 0.0
    %3428 = vmatprep.subr.mxu0 0.0
    %3429 = vmatpush1.msra.mxu0 0.0
    %3430 = vmatprep.subr.mxu0 0.0
    %3431 = vmatpush1.msra.mxu0 0.0
    %3432 = vmatprep.subr.mxu0 0.0
    %3433 = vmatpush1.msra.mxu0 0.0
    %3434 = vmatprep.subr.mxu0 0.0
    %3435 = vmatpush1.msra.mxu0 0.0
    %3436 = vmatprep.subr.mxu0 0.0
    %3437 = vmatpush1.msra.mxu0 0.0
    %3438 = vmatprep.subr.mxu0 0.0
    %3439 = vmatpush1.msra.mxu0 0.0
    %3440 = vmatprep.subr.mxu0 0.0
    %3441 = vmatpush1.msra.mxu0 0.0
    %3442 = vmatprep.subr.mxu0 0.0
    %3443 = vmatpush1.msra.mxu0 0.0
    %3444 = vmatprep.subr.mxu0 0.0
    %3445 = vmatpush1.msra.mxu0 0.0
    %3446 = vmatprep.subr.mxu0 0.0
    %3447 = vmatpush1.msra.mxu0 0.0
    %3448 = vmatprep.subr.mxu0 0.0
    %3449 = vmatpush1.msra.mxu0 0.0
    %3450 = vmatprep.mubr.f32.mxu0 0.0
    %v3451 = vand.u32 %v2530, 4294901760
    %v3452 = vsub.f32 %v2530, %v3451
    %3453 = vmatmul.mubr.f32.gmra.mrb[0].mxu0 %v3452
    %v3454 = vpop.f32.mrb[0].mxu0
    %v3455 = vadd.f32 %v3357, %v3454
    %v3456 = vpop.f32.mrb[0].mxu0
    %3457 = vmatprep.mubr.f32.mxu0 0.0
    %v3458 = vand.u32 %v2533, 4294901760
    %v3459 = vsub.f32 %v2533, %v3458
    %3460 = vmatmul.mubr.f32.gmra.mrb[0].mxu0 %v3459
    %v3461 = vpop.f32.mrb[0].mxu0
    %v3462 = vadd.f32 %v3363, %v3461
    %v3463 = vpop.f32.mrb[0].mxu0
    %3464 = vmatprep.mubr.f32.mxu0 0.0
    %v3465 = vand.u32 %v2536, 4294901760
    %v3466 = vsub.f32 %v2536, %v3465
    %3467 = vmatmul.mubr.f32.gmra.mrb[0].mxu0 %v3466
    %v3468 = vpop.f32.mrb[0].mxu0
    %v3469 = vadd.f32 %v3369, %v3468
    %v3470 = vpop.f32.mrb[0].mxu0
    %3471 = vmatprep.mubr.f32.mxu0 0.0
    %v3472 = vand.u32 %v2539, 4294901760
    %v3473 = vsub.f32 %v2539, %v3472
    %3474 = vmatmul.mubr.f32.gmra.mrb[0].mxu0 %v3473
    %v3475 = vpop.f32.mrb[0].mxu0
    %v3476 = vadd.f32 %v3375, %v3475
    %v3477 = vpop.f32.mrb[0].mxu0
    %3478 = vdwg.mxu0
    %3479 = vmatprep.subr.mxu0 0.0
    %v3480 = vand.u32 %v17, 4294901760
    %3481 = vmatpush1.msra.mxu0 %v3480
    %3482 = vmatprep.subr.mxu0 0.0
    %v3483 = vand.u32 %v18, 4294901760
    %3484 = vmatpush1.msra.mxu0 %v3483
    %3485 = vmatprep.subr.mxu0 0.0
    %v3486 = vand.u32 %v19, 4294901760
    %3487 = vmatpush1.msra.mxu0 %v3486
    %3488 = vmatprep.subr.mxu0 0.0
    %v3489 = vand.u32 %v20, 4294901760
    %3490 = vmatpush1.msra.mxu0 %v3489
    %3491 = vmatprep.subr.mxu0 0.0
    %3492 = vmatpush1.msra.mxu0 0.0
    %3493 = vmatprep.subr.mxu0 0.0
    %3494 = vmatpush1.msra.mxu0 0.0
    %3495 = vmatprep.subr.mxu0 0.0
    %3496 = vmatpush1.msra.mxu0 0.0
    %3497 = vmatprep.subr.mxu0 0.0
    %3498 = vmatpush1.msra.mxu0 0.0
    %3499 = vmatprep.subr.mxu0 0.0
    %3500 = vmatpush1.msra.mxu0 0.0
    %3501 = vmatprep.subr.mxu0 0.0
    %3502 = vmatpush1.msra.mxu0 0.0
    %3503 = vmatprep.subr.mxu0 0.0
    %3504 = vmatpush1.msra.mxu0 0.0
    %3505 = vmatprep.subr.mxu0 0.0
    %3506 = vmatpush1.msra.mxu0 0.0
    %3507 = vmatprep.subr.mxu0 0.0
    %3508 = vmatpush1.msra.mxu0 0.0
    %3509 = vmatprep.subr.mxu0 0.0
    %3510 = vmatpush1.msra.mxu0 0.0
    %3511 = vmatprep.subr.mxu0 0.0
    %3512 = vmatpush1.msra.mxu0 0.0
    %3513 = vmatprep.subr.mxu0 0.0
    %3514 = vmatpush1.msra.mxu0 0.0
    %3515 = vmatprep.subr.mxu0 0.0
    %3516 = vmatpush1.msra.mxu0 0.0
    %3517 = vmatprep.subr.mxu0 0.0
    %3518 = vmatpush1.msra.mxu0 0.0
    %3519 = vmatprep.subr.mxu0 0.0
    %3520 = vmatpush1.msra.mxu0 0.0
    %3521 = vmatprep.subr.mxu0 0.0
    %3522 = vmatpush1.msra.mxu0 0.0
    %3523 = vmatprep.subr.mxu0 0.0
    %3524 = vmatpush1.msra.mxu0 0.0
    %3525 = vmatprep.subr.mxu0 0.0
    %3526 = vmatpush1.msra.mxu0 0.0
    %3527 = vmatprep.subr.mxu0 0.0
    %3528 = vmatpush1.msra.mxu0 0.0
    %3529 = vmatprep.subr.mxu0 0.0
    %3530 = vmatpush1.msra.mxu0 0.0
    %3531 = vmatprep.subr.mxu0 0.0
    %3532 = vmatpush1.msra.mxu0 0.0
    %3533 = vmatprep.subr.mxu0 0.0
    %3534 = vmatpush1.msra.mxu0 0.0
    %3535 = vmatprep.subr.mxu0 0.0
    %3536 = vmatpush1.msra.mxu0 0.0
    %3537 = vmatprep.subr.mxu0 0.0
    %3538 = vmatpush1.msra.mxu0 0.0
    %3539 = vmatprep.subr.mxu0 0.0
    %3540 = vmatpush1.msra.mxu0 0.0
    %3541 = vmatprep.subr.mxu0 0.0
    %3542 = vmatpush1.msra.mxu0 0.0
    %3543 = vmatprep.subr.mxu0 0.0
    %3544 = vmatpush1.msra.mxu0 0.0
    %3545 = vmatprep.subr.mxu0 0.0
    %3546 = vmatpush1.msra.mxu0 0.0
    %3547 = vmatprep.mubr.f32.mxu0 0.0
    %v3548 = vand.u32 %v2530, 4294901760
    %v3549 = vsub.f32 %v2530, %v3548
    %v3550 = vand.u32 %v3549, 4294901760
    %3551 = vmatmul.mubr.f32.gmra.mrb[0].mxu0 %v3550
    %v3552 = vpop.f32.mrb[0].mxu0
    %v3553 = vadd.f32 %v3455, %v3552
    %v3554 = vpop.f32.mrb[0].mxu0
    %3555 = vmatprep.mubr.f32.mxu0 0.0
    %v3556 = vand.u32 %v2533, 4294901760
    %v3557 = vsub.f32 %v2533, %v3556
    %v3558 = vand.u32 %v3557, 4294901760
    %3559 = vmatmul.mubr.f32.gmra.mrb[0].mxu0 %v3558
    %v3560 = vpop.f32.mrb[0].mxu0
    %v3561 = vadd.f32 %v3462, %v3560
    %v3562 = vpop.f32.mrb[0].mxu0
    %3563 = vmatprep.mubr.f32.mxu0 0.0
    %v3564 = vand.u32 %v2536, 4294901760
    %v3565 = vsub.f32 %v2536, %v3564
    %v3566 = vand.u32 %v3565, 4294901760
    %3567 = vmatmul.mubr.f32.gmra.mrb[0].mxu0 %v3566
    %v3568 = vpop.f32.mrb[0].mxu0
    %v3569 = vadd.f32 %v3469, %v3568
    %v3570 = vpop.f32.mrb[0].mxu0
    %3571 = vmatprep.mubr.f32.mxu0 0.0
    %v3572 = vand.u32 %v2539, 4294901760
    %v3573 = vsub.f32 %v2539, %v3572
    %v3574 = vand.u32 %v3573, 4294901760
    %3575 = vmatmul.mubr.f32.gmra.mrb[0].mxu0 %v3574
    %v3576 = vpop.f32.mrb[0].mxu0
    %v3577 = vadd.f32 %v3476, %v3576
    %v3578 = vpop.f32.mrb[0].mxu0
    %3579 = vdwg.mxu0
    %3580 = vmatprep.subr.mxu0 0.0
    %v3581 = vand.u32 %v17, 4294901760
    %v3582 = vsub.f32 %v17, %v3581
    %v3583 = vand.u32 %v3582, 4294901760
    %3584 = vmatpush1.msra.mxu0 %v3583
    %3585 = vmatprep.subr.mxu0 0.0
    %v3586 = vand.u32 %v18, 4294901760
    %v3587 = vsub.f32 %v18, %v3586
    %v3588 = vand.u32 %v3587, 4294901760
    %3589 = vmatpush1.msra.mxu0 %v3588
    %3590 = vmatprep.subr.mxu0 0.0
    %v3591 = vand.u32 %v19, 4294901760
    %v3592 = vsub.f32 %v19, %v3591
    %v3593 = vand.u32 %v3592, 4294901760
    %3594 = vmatpush1.msra.mxu0 %v3593
    %3595 = vmatprep.subr.mxu0 0.0
    %v3596 = vand.u32 %v20, 4294901760
    %v3597 = vsub.f32 %v20, %v3596
    %v3598 = vand.u32 %v3597, 4294901760
    %3599 = vmatpush1.msra.mxu0 %v3598
    %3600 = vmatprep.subr.mxu0 0.0
    %3601 = vmatpush1.msra.mxu0 0.0
    %3602 = vmatprep.subr.mxu0 0.0
    %3603 = vmatpush1.msra.mxu0 0.0
    %3604 = vmatprep.subr.mxu0 0.0
    %3605 = vmatpush1.msra.mxu0 0.0
    %3606 = vmatprep.subr.mxu0 0.0
    %3607 = vmatpush1.msra.mxu0 0.0
    %3608 = vmatprep.subr.mxu0 0.0
    %3609 = vmatpush1.msra.mxu0 0.0
    %3610 = vmatprep.subr.mxu0 0.0
    %3611 = vmatpush1.msra.mxu0 0.0
    %3612 = vmatprep.subr.mxu0 0.0
    %3613 = vmatpush1.msra.mxu0 0.0
    %3614 = vmatprep.subr.mxu0 0.0
    %3615 = vmatpush1.msra.mxu0 0.0
    %3616 = vmatprep.subr.mxu0 0.0
    %3617 = vmatpush1.msra.mxu0 0.0
    %3618 = vmatprep.subr.mxu0 0.0
    %3619 = vmatpush1.msra.mxu0 0.0
    %3620 = vmatprep.subr.mxu0 0.0
    %3621 = vmatpush1.msra.mxu0 0.0
    %3622 = vmatprep.subr.mxu0 0.0
    %3623 = vmatpush1.msra.mxu0 0.0
    %3624 = vmatprep.subr.mxu0 0.0
    %3625 = vmatpush1.msra.mxu0 0.0
    %3626 = vmatprep.subr.mxu0 0.0
    %3627 = vmatpush1.msra.mxu0 0.0
    %3628 = vmatprep.subr.mxu0 0.0
    %3629 = vmatpush1.msra.mxu0 0.0
    %3630 = vmatprep.subr.mxu0 0.0
    %3631 = vmatpush1.msra.mxu0 0.0
    %3632 = vmatprep.subr.mxu0 0.0
    %3633 = vmatpush1.msra.mxu0 0.0
    %3634 = vmatprep.subr.mxu0 0.0
    %3635 = vmatpush1.msra.mxu0 0.0
    %3636 = vmatprep.subr.mxu0 0.0
    %3637 = vmatpush1.msra.mxu0 0.0
    %3638 = vmatprep.subr.mxu0 0.0
    %3639 = vmatpush1.msra.mxu0 0.0
    %3640 = vmatprep.subr.mxu0 0.0
    %3641 = vmatpush1.msra.mxu0 0.0
    %3642 = vmatprep.subr.mxu0 0.0
    %3643 = vmatpush1.msra.mxu0 0.0
    %3644 = vmatprep.subr.mxu0 0.0
    %3645 = vmatpush1.msra.mxu0 0.0
    %3646 = vmatprep.subr.mxu0 0.0
    %3647 = vmatpush1.msra.mxu0 0.0
    %3648 = vmatprep.subr.mxu0 0.0
    %3649 = vmatpush1.msra.mxu0 0.0
    %3650 = vmatprep.subr.mxu0 0.0
    %3651 = vmatpush1.msra.mxu0 0.0
    %3652 = vmatprep.subr.mxu0 0.0
    %3653 = vmatpush1.msra.mxu0 0.0
    %3654 = vmatprep.subr.mxu0 0.0
    %3655 = vmatpush1.msra.mxu0 0.0
    %3656 = vmatprep.mubr.f32.mxu0 0.0
    %v3657 = vand.u32 %v2530, 4294901760
    %3658 = vmatmul.mubr.f32.gmra.mrb[0].mxu0 %v3657
    %v3659 = vpop.f32.mrb[0].mxu0
    %v3660 = vadd.f32 %v3553, %v3659
    %v3661 = vpop.f32.mrb[0].mxu0
    %3662 = vmatprep.mubr.f32.mxu0 0.0
    %v3663 = vand.u32 %v2533, 4294901760
    %3664 = vmatmul.mubr.f32.gmra.mrb[0].mxu0 %v3663
    %v3665 = vpop.f32.mrb[0].mxu0
    %v3666 = vadd.f32 %v3561, %v3665
    %v3667 = vpop.f32.mrb[0].mxu0
    %3668 = vmatprep.mubr.f32.mxu0 0.0
    %v3669 = vand.u32 %v2536, 4294901760
    %3670 = vmatmul.mubr.f32.gmra.mrb[0].mxu0 %v3669
    %v3671 = vpop.f32.mrb[0].mxu0
    %v3672 = vadd.f32 %v3569, %v3671
    %v3673 = vpop.f32.mrb[0].mxu0
    %3674 = vmatprep.mubr.f32.mxu0 0.0
    %v3675 = vand.u32 %v2539, 4294901760
    %3676 = vmatmul.mubr.f32.gmra.mrb[0].mxu0 %v3675
    %v3677 = vpop.f32.mrb[0].mxu0
    %v3678 = vadd.f32 %v3577, %v3677
    %v3679 = vpop.f32.mrb[0].mxu0
    %3680 = vdwg.mxu0
    %3681 = vmatprep.subr.mxu0 0.0
    %v3682 = vand.u32 %v17, 4294901760
    %3683 = vmatpush1.msra.mxu0 %v3682
    %3684 = vmatprep.subr.mxu0 0.0
    %v3685 = vand.u32 %v18, 4294901760
    %3686 = vmatpush1.msra.mxu0 %v3685
    %3687 = vmatprep.subr.mxu0 0.0
    %v3688 = vand.u32 %v19, 4294901760
    %3689 = vmatpush1.msra.mxu0 %v3688
    %3690 = vmatprep.subr.mxu0 0.0
    %v3691 = vand.u32 %v20, 4294901760
    %3692 = vmatpush1.msra.mxu0 %v3691
    %3693 = vmatprep.subr.mxu0 0.0
    %3694 = vmatpush1.msra.mxu0 0.0
    %3695 = vmatprep.subr.mxu0 0.0
    %3696 = vmatpush1.msra.mxu0 0.0
    %3697 = vmatprep.subr.mxu0 0.0
    %3698 = vmatpush1.msra.mxu0 0.0
    %3699 = vmatprep.subr.mxu0 0.0
    %3700 = vmatpush1.msra.mxu0 0.0
    %3701 = vmatprep.subr.mxu0 0.0
    %3702 = vmatpush1.msra.mxu0 0.0
    %3703 = vmatprep.subr.mxu0 0.0
    %3704 = vmatpush1.msra.mxu0 0.0
    %3705 = vmatprep.subr.mxu0 0.0
    %3706 = vmatpush1.msra.mxu0 0.0
    %3707 = vmatprep.subr.mxu0 0.0
    %3708 = vmatpush1.msra.mxu0 0.0
    %3709 = vmatprep.subr.mxu0 0.0
    %3710 = vmatpush1.msra.mxu0 0.0
    %3711 = vmatprep.subr.mxu0 0.0
    %3712 = vmatpush1.msra.mxu0 0.0
    %3713 = vmatprep.subr.mxu0 0.0
    %3714 = vmatpush1.msra.mxu0 0.0
    %3715 = vmatprep.subr.mxu0 0.0
    %3716 = vmatpush1.msra.mxu0 0.0
    %3717 = vmatprep.subr.mxu0 0.0
    %3718 = vmatpush1.msra.mxu0 0.0
    %3719 = vmatprep.subr.mxu0 0.0
    %3720 = vmatpush1.msra.mxu0 0.0
    %3721 = vmatprep.subr.mxu0 0.0
    %3722 = vmatpush1.msra.mxu0 0.0
    %3723 = vmatprep.subr.mxu0 0.0
    %3724 = vmatpush1.msra.mxu0 0.0
    %3725 = vmatprep.subr.mxu0 0.0
    %3726 = vmatpush1.msra.mxu0 0.0
    %3727 = vmatprep.subr.mxu0 0.0
    %3728 = vmatpush1.msra.mxu0 0.0
    %3729 = vmatprep.subr.mxu0 0.0
    %3730 = vmatpush1.msra.mxu0 0.0
    %3731 = vmatprep.subr.mxu0 0.0
    %3732 = vmatpush1.msra.mxu0 0.0
    %3733 = vmatprep.subr.mxu0 0.0
    %3734 = vmatpush1.msra.mxu0 0.0
    %3735 = vmatprep.subr.mxu0 0.0
    %3736 = vmatpush1.msra.mxu0 0.0
    %3737 = vmatprep.subr.mxu0 0.0
    %3738 = vmatpush1.msra.mxu0 0.0
    %3739 = vmatprep.subr.mxu0 0.0
    %3740 = vmatpush1.msra.mxu0 0.0
    %3741 = vmatprep.subr.mxu0 0.0
    %3742 = vmatpush1.msra.mxu0 0.0
    %3743 = vmatprep.subr.mxu0 0.0
    %3744 = vmatpush1.msra.mxu0 0.0
    %3745 = vmatprep.subr.mxu0 0.0
    %3746 = vmatpush1.msra.mxu0 0.0
    %3747 = vmatprep.subr.mxu0 0.0
    %3748 = vmatpush1.msra.mxu0 0.0
    %3749 = vmatprep.mubr.f32.mxu0 0.0
    %v3750 = vand.u32 %v2530, 4294901760
    %3751 = vmatmul.mubr.f32.gmra.mrb[0].mxu0 %v3750
    %v3752 = vpop.f32.mrb[0].mxu0
    %v3753 = vadd.f32 %v3660, %v3752
    %v3754 = vpop.f32.mrb[0].mxu0
    %3755 = vmatprep.mubr.f32.mxu0 0.0
    %v3756 = vand.u32 %v2533, 4294901760
    %3757 = vmatmul.mubr.f32.gmra.mrb[0].mxu0 %v3756
    %v3758 = vpop.f32.mrb[0].mxu0
    %v3759 = vadd.f32 %v3666, %v3758
    %v3760 = vpop.f32.mrb[0].mxu0
    %3761 = vmatprep.mubr.f32.mxu0 0.0
    %v3762 = vand.u32 %v2536, 4294901760
    %3763 = vmatmul.mubr.f32.gmra.mrb[0].mxu0 %v3762
    %v3764 = vpop.f32.mrb[0].mxu0
    %v3765 = vadd.f32 %v3672, %v3764
    %v3766 = vpop.f32.mrb[0].mxu0
    %3767 = vmatprep.mubr.f32.mxu0 0.0
    %v3768 = vand.u32 %v2539, 4294901760
    %3769 = vmatmul.mubr.f32.gmra.mrb[0].mxu0 %v3768
    %v3770 = vpop.f32.mrb[0].mxu0
    %v3771 = vadd.f32 %v3678, %v3770
    %v3772 = vpop.f32.mrb[0].mxu0
    %3773 = vdwg.mxu0
    %s3774 = scalar_lea.vmem [#allocation2], 136
    %3775 = vst.msk [vmem:[%s3774] sm:$0xff] %vm662, %v3753
    %3776 = vst.msk [vmem:[%s3774 + $0x20] sm:$0xff] %vm662, %v3759
    %3777 = vst.msk [vmem:[%s3774 + $0x40] sm:$0xff] %vm662, %v3765
    %3778 = vst.msk [vmem:[%s3774 + $0x60] sm:$0xff] %vm662, %v3771
    %3779 = vmatprep.subr.mxu0 0.0
    %v3780 = vand.u32 %v22, 4294901760
    %3781 = vmatpush1.msra.mxu0 %v3780
    %3782 = vmatprep.subr.mxu0 0.0
    %v3783 = vand.u32 %v23, 4294901760
    %3784 = vmatpush1.msra.mxu0 %v3783
    %3785 = vmatprep.subr.mxu0 0.0
    %v3786 = vand.u32 %v24, 4294901760
    %3787 = vmatpush1.msra.mxu0 %v3786
    %3788 = vmatprep.subr.mxu0 0.0
    %v3789 = vand.u32 %v25, 4294901760
    %3790 = vmatpush1.msra.mxu0 %v3789
    %3791 = vmatprep.subr.mxu0 0.0
    %3792 = vmatpush1.msra.mxu0 0.0
    %3793 = vmatprep.subr.mxu0 0.0
    %3794 = vmatpush1.msra.mxu0 0.0
    %3795 = vmatprep.subr.mxu0 0.0
    %3796 = vmatpush1.msra.mxu0 0.0
    %3797 = vmatprep.subr.mxu0 0.0
    %3798 = vmatpush1.msra.mxu0 0.0
    %3799 = vmatprep.subr.mxu0 0.0
    %3800 = vmatpush1.msra.mxu0 0.0
    %3801 = vmatprep.subr.mxu0 0.0
    %3802 = vmatpush1.msra.mxu0 0.0
    %3803 = vmatprep.subr.mxu0 0.0
    %3804 = vmatpush1.msra.mxu0 0.0
    %3805 = vmatprep.subr.mxu0 0.0
    %3806 = vmatpush1.msra.mxu0 0.0
    %3807 = vmatprep.subr.mxu0 0.0
    %3808 = vmatpush1.msra.mxu0 0.0
    %3809 = vmatprep.subr.mxu0 0.0
    %3810 = vmatpush1.msra.mxu0 0.0
    %3811 = vmatprep.subr.mxu0 0.0
    %3812 = vmatpush1.msra.mxu0 0.0
    %3813 = vmatprep.subr.mxu0 0.0
    %3814 = vmatpush1.msra.mxu0 0.0
    %3815 = vmatprep.subr.mxu0 0.0
    %3816 = vmatpush1.msra.mxu0 0.0
    %3817 = vmatprep.subr.mxu0 0.0
    %3818 = vmatpush1.msra.mxu0 0.0
    %3819 = vmatprep.subr.mxu0 0.0
    %3820 = vmatpush1.msra.mxu0 0.0
    %3821 = vmatprep.subr.mxu0 0.0
    %3822 = vmatpush1.msra.mxu0 0.0
    %3823 = vmatprep.subr.mxu0 0.0
    %3824 = vmatpush1.msra.mxu0 0.0
    %3825 = vmatprep.subr.mxu0 0.0
    %3826 = vmatpush1.msra.mxu0 0.0
    %3827 = vmatprep.subr.mxu0 0.0
    %3828 = vmatpush1.msra.mxu0 0.0
    %3829 = vmatprep.subr.mxu0 0.0
    %3830 = vmatpush1.msra.mxu0 0.0
    %3831 = vmatprep.subr.mxu0 0.0
    %3832 = vmatpush1.msra.mxu0 0.0
    %3833 = vmatprep.subr.mxu0 0.0
    %3834 = vmatpush1.msra.mxu0 0.0
    %3835 = vmatprep.subr.mxu0 0.0
    %3836 = vmatpush1.msra.mxu0 0.0
    %3837 = vmatprep.subr.mxu0 0.0
    %3838 = vmatpush1.msra.mxu0 0.0
    %3839 = vmatprep.subr.mxu0 0.0
    %3840 = vmatpush1.msra.mxu0 0.0
    %3841 = vmatprep.subr.mxu0 0.0
    %3842 = vmatpush1.msra.mxu0 0.0
    %3843 = vmatprep.subr.mxu0 0.0
    %3844 = vmatpush1.msra.mxu0 0.0
    %3845 = vmatprep.subr.mxu0 0.0
    %3846 = vmatpush1.msra.mxu0 0.0
    %3847 = vmatprep.mubr.f32.mxu0 0.0
    %v3848 = vand.u32 %v2530, 4294901760
    %v3849 = vsub.f32 %v2530, %v3848
    %v3850 = vand.u32 %v3849, 4294901760
    %v3851 = vsub.f32 %v3849, %v3850
    %v3852 = vand.u32 %v3851, 4294901760
    %3853 = vmatmul.mubr.f32.gmra.mrb[0].mxu0 %v3852
    %v3854 = vpop.f32.mrb[0].mxu0
    %v3855 = vadd.f32 0.0, %v3854
    %v3856 = vpop.f32.mrb[0].mxu0
    %3857 = vmatprep.mubr.f32.mxu0 0.0
    %v3858 = vand.u32 %v2533, 4294901760
    %v3859 = vsub.f32 %v2533, %v3858
    %v3860 = vand.u32 %v3859, 4294901760
    %v3861 = vsub.f32 %v3859, %v3860
    %v3862 = vand.u32 %v3861, 4294901760
    %3863 = vmatmul.mubr.f32.gmra.mrb[0].mxu0 %v3862
    %v3864 = vpop.f32.mrb[0].mxu0
    %v3865 = vadd.f32 0.0, %v3864
    %v3866 = vpop.f32.mrb[0].mxu0
    %3867 = vmatprep.mubr.f32.mxu0 0.0
    %v3868 = vand.u32 %v2536, 4294901760
    %v3869 = vsub.f32 %v2536, %v3868
    %v3870 = vand.u32 %v3869, 4294901760
    %v3871 = vsub.f32 %v3869, %v3870
    %v3872 = vand.u32 %v3871, 4294901760
    %3873 = vmatmul.mubr.f32.gmra.mrb[0].mxu0 %v3872
    %v3874 = vpop.f32.mrb[0].mxu0
    %v3875 = vadd.f32 0.0, %v3874
    %v3876 = vpop.f32.mrb[0].mxu0
    %3877 = vmatprep.mubr.f32.mxu0 0.0
    %v3878 = vand.u32 %v2539, 4294901760
    %v3879 = vsub.f32 %v2539, %v3878
    %v3880 = vand.u32 %v3879, 4294901760
    %v3881 = vsub.f32 %v3879, %v3880
    %v3882 = vand.u32 %v3881, 4294901760
    %3883 = vmatmul.mubr.f32.gmra.mrb[0].mxu0 %v3882
    %v3884 = vpop.f32.mrb[0].mxu0
    %v3885 = vadd.f32 0.0, %v3884
    %v3886 = vpop.f32.mrb[0].mxu0
    %3887 = vdwg.mxu0
    %3888 = vmatprep.subr.mxu0 0.0
    %v3889 = vand.u32 %v22, 4294901760
    %v3890 = vsub.f32 %v22, %v3889
    %v3891 = vand.u32 %v3890, 4294901760
    %v3892 = vsub.f32 %v3890, %v3891
    %v3893 = vand.u32 %v3892, 4294901760
    %3894 = vmatpush1.msra.mxu0 %v3893
    %3895 = vmatprep.subr.mxu0 0.0
    %v3896 = vand.u32 %v23, 4294901760
    %v3897 = vsub.f32 %v23, %v3896
    %v3898 = vand.u32 %v3897, 4294901760
    %v3899 = vsub.f32 %v3897, %v3898
    %v3900 = vand.u32 %v3899, 4294901760
    %3901 = vmatpush1.msra.mxu0 %v3900
    %3902 = vmatprep.subr.mxu0 0.0
    %v3903 = vand.u32 %v24, 4294901760
    %v3904 = vsub.f32 %v24, %v3903
    %v3905 = vand.u32 %v3904, 4294901760
    %v3906 = vsub.f32 %v3904, %v3905
    %v3907 = vand.u32 %v3906, 4294901760
    %3908 = vmatpush1.msra.mxu0 %v3907
    %3909 = vmatprep.subr.mxu0 0.0
    %v3910 = vand.u32 %v25, 4294901760
    %v3911 = vsub.f32 %v25, %v3910
    %v3912 = vand.u32 %v3911, 4294901760
    %v3913 = vsub.f32 %v3911, %v3912
    %v3914 = vand.u32 %v3913, 4294901760
    %3915 = vmatpush1.msra.mxu0 %v3914
    %3916 = vmatprep.subr.mxu0 0.0
    %3917 = vmatpush1.msra.mxu0 0.0
    %3918 = vmatprep.subr.mxu0 0.0
    %3919 = vmatpush1.msra.mxu0 0.0
    %3920 = vmatprep.subr.mxu0 0.0
    %3921 = vmatpush1.msra.mxu0 0.0
    %3922 = vmatprep.subr.mxu0 0.0
    %3923 = vmatpush1.msra.mxu0 0.0
    %3924 = vmatprep.subr.mxu0 0.0
    %3925 = vmatpush1.msra.mxu0 0.0
    %3926 = vmatprep.subr.mxu0 0.0
    %3927 = vmatpush1.msra.mxu0 0.0
    %3928 = vmatprep.subr.mxu0 0.0
    %3929 = vmatpush1.msra.mxu0 0.0
    %3930 = vmatprep.subr.mxu0 0.0
    %3931 = vmatpush1.msra.mxu0 0.0
    %3932 = vmatprep.subr.mxu0 0.0
    %3933 = vmatpush1.msra.mxu0 0.0
    %3934 = vmatprep.subr.mxu0 0.0
    %3935 = vmatpush1.msra.mxu0 0.0
    %3936 = vmatprep.subr.mxu0 0.0
    %3937 = vmatpush1.msra.mxu0 0.0
    %3938 = vmatprep.subr.mxu0 0.0
    %3939 = vmatpush1.msra.mxu0 0.0
    %3940 = vmatprep.subr.mxu0 0.0
    %3941 = vmatpush1.msra.mxu0 0.0
    %3942 = vmatprep.subr.mxu0 0.0
    %3943 = vmatpush1.msra.mxu0 0.0
    %3944 = vmatprep.subr.mxu0 0.0
    %3945 = vmatpush1.msra.mxu0 0.0
    %3946 = vmatprep.subr.mxu0 0.0
    %3947 = vmatpush1.msra.mxu0 0.0
    %3948 = vmatprep.subr.mxu0 0.0
    %3949 = vmatpush1.msra.mxu0 0.0
    %3950 = vmatprep.subr.mxu0 0.0
    %3951 = vmatpush1.msra.mxu0 0.0
    %3952 = vmatprep.subr.mxu0 0.0
    %3953 = vmatpush1.msra.mxu0 0.0
    %3954 = vmatprep.subr.mxu0 0.0
    %3955 = vmatpush1.msra.mxu0 0.0
    %3956 = vmatprep.subr.mxu0 0.0
    %3957 = vmatpush1.msra.mxu0 0.0
    %3958 = vmatprep.subr.mxu0 0.0
    %3959 = vmatpush1.msra.mxu0 0.0
    %3960 = vmatprep.subr.mxu0 0.0
    %3961 = vmatpush1.msra.mxu0 0.0
    %3962 = vmatprep.subr.mxu0 0.0
    %3963 = vmatpush1.msra.mxu0 0.0
    %3964 = vmatprep.subr.mxu0 0.0
    %3965 = vmatpush1.msra.mxu0 0.0
    %3966 = vmatprep.subr.mxu0 0.0
    %3967 = vmatpush1.msra.mxu0 0.0
    %3968 = vmatprep.subr.mxu0 0.0
    %3969 = vmatpush1.msra.mxu0 0.0
    %3970 = vmatprep.subr.mxu0 0.0
    %3971 = vmatpush1.msra.mxu0 0.0
    %3972 = vmatprep.mubr.f32.mxu0 0.0
    %v3973 = vand.u32 %v2530, 4294901760
    %3974 = vmatmul.mubr.f32.gmra.mrb[0].mxu0 %v3973
    %v3975 = vpop.f32.mrb[0].mxu0
    %v3976 = vadd.f32 %v3855, %v3975
    %v3977 = vpop.f32.mrb[0].mxu0
    %3978 = vmatprep.mubr.f32.mxu0 0.0
    %v3979 = vand.u32 %v2533, 4294901760
    %3980 = vmatmul.mubr.f32.gmra.mrb[0].mxu0 %v3979
    %v3981 = vpop.f32.mrb[0].mxu0
    %v3982 = vadd.f32 %v3865, %v3981
    %v3983 = vpop.f32.mrb[0].mxu0
    %3984 = vmatprep.mubr.f32.mxu0 0.0
    %v3985 = vand.u32 %v2536, 4294901760
    %3986 = vmatmul.mubr.f32.gmra.mrb[0].mxu0 %v3985
    %v3987 = vpop.f32.mrb[0].mxu0
    %v3988 = vadd.f32 %v3875, %v3987
    %v3989 = vpop.f32.mrb[0].mxu0
    %3990 = vmatprep.mubr.f32.mxu0 0.0
    %v3991 = vand.u32 %v2539, 4294901760
    %3992 = vmatmul.mubr.f32.gmra.mrb[0].mxu0 %v3991
    %v3993 = vpop.f32.mrb[0].mxu0
    %v3994 = vadd.f32 %v3885, %v3993
    %v3995 = vpop.f32.mrb[0].mxu0
    %3996 = vdwg.mxu0
    %3997 = vmatprep.subr.mxu0 0.0
    %v3998 = vand.u32 %v22, 4294901760
    %v3999 = vsub.f32 %v22, %v3998
    %4000 = vmatpush1.msra.mxu0 %v3999
    %4001 = vmatprep.subr.mxu0 0.0
    %v4002 = vand.u32 %v23, 4294901760
    %v4003 = vsub.f32 %v23, %v4002
    %4004 = vmatpush1.msra.mxu0 %v4003
    %4005 = vmatprep.subr.mxu0 0.0
    %v4006 = vand.u32 %v24, 4294901760
    %v4007 = vsub.f32 %v24, %v4006
    %4008 = vmatpush1.msra.mxu0 %v4007
    %4009 = vmatprep.subr.mxu0 0.0
    %v4010 = vand.u32 %v25, 4294901760
    %v4011 = vsub.f32 %v25, %v4010
    %4012 = vmatpush1.msra.mxu0 %v4011
    %4013 = vmatprep.subr.mxu0 0.0
    %4014 = vmatpush1.msra.mxu0 0.0
    %4015 = vmatprep.subr.mxu0 0.0
    %4016 = vmatpush1.msra.mxu0 0.0
    %4017 = vmatprep.subr.mxu0 0.0
    %4018 = vmatpush1.msra.mxu0 0.0
    %4019 = vmatprep.subr.mxu0 0.0
    %4020 = vmatpush1.msra.mxu0 0.0
    %4021 = vmatprep.subr.mxu0 0.0
    %4022 = vmatpush1.msra.mxu0 0.0
    %4023 = vmatprep.subr.mxu0 0.0
    %4024 = vmatpush1.msra.mxu0 0.0
    %4025 = vmatprep.subr.mxu0 0.0
    %4026 = vmatpush1.msra.mxu0 0.0
    %4027 = vmatprep.subr.mxu0 0.0
    %4028 = vmatpush1.msra.mxu0 0.0
    %4029 = vmatprep.subr.mxu0 0.0
    %4030 = vmatpush1.msra.mxu0 0.0
    %4031 = vmatprep.subr.mxu0 0.0
    %4032 = vmatpush1.msra.mxu0 0.0
    %4033 = vmatprep.subr.mxu0 0.0
    %4034 = vmatpush1.msra.mxu0 0.0
    %4035 = vmatprep.subr.mxu0 0.0
    %4036 = vmatpush1.msra.mxu0 0.0
    %4037 = vmatprep.subr.mxu0 0.0
    %4038 = vmatpush1.msra.mxu0 0.0
    %4039 = vmatprep.subr.mxu0 0.0
    %4040 = vmatpush1.msra.mxu0 0.0
    %4041 = vmatprep.subr.mxu0 0.0
    %4042 = vmatpush1.msra.mxu0 0.0
    %4043 = vmatprep.subr.mxu0 0.0
    %4044 = vmatpush1.msra.mxu0 0.0
    %4045 = vmatprep.subr.mxu0 0.0
    %4046 = vmatpush1.msra.mxu0 0.0
    %4047 = vmatprep.subr.mxu0 0.0
    %4048 = vmatpush1.msra.mxu0 0.0
    %4049 = vmatprep.subr.mxu0 0.0
    %4050 = vmatpush1.msra.mxu0 0.0
    %4051 = vmatprep.subr.mxu0 0.0
    %4052 = vmatpush1.msra.mxu0 0.0
    %4053 = vmatprep.subr.mxu0 0.0
    %4054 = vmatpush1.msra.mxu0 0.0
    %4055 = vmatprep.subr.mxu0 0.0
    %4056 = vmatpush1.msra.mxu0 0.0
    %4057 = vmatprep.subr.mxu0 0.0
    %4058 = vmatpush1.msra.mxu0 0.0
    %4059 = vmatprep.subr.mxu0 0.0
    %4060 = vmatpush1.msra.mxu0 0.0
    %4061 = vmatprep.subr.mxu0 0.0
    %4062 = vmatpush1.msra.mxu0 0.0
    %4063 = vmatprep.subr.mxu0 0.0
    %4064 = vmatpush1.msra.mxu0 0.0
    %4065 = vmatprep.subr.mxu0 0.0
    %4066 = vmatpush1.msra.mxu0 0.0
    %4067 = vmatprep.subr.mxu0 0.0
    %4068 = vmatpush1.msra.mxu0 0.0
    %4069 = vmatprep.mubr.f32.mxu0 0.0
    %v4070 = vand.u32 %v2530, 4294901760
    %v4071 = vsub.f32 %v2530, %v4070
    %4072 = vmatmul.mubr.f32.gmra.mrb[0].mxu0 %v4071
    %v4073 = vpop.f32.mrb[0].mxu0
    %v4074 = vadd.f32 %v3976, %v4073
    %v4075 = vpop.f32.mrb[0].mxu0
    %4076 = vmatprep.mubr.f32.mxu0 0.0
    %v4077 = vand.u32 %v2533, 4294901760
    %v4078 = vsub.f32 %v2533, %v4077
    %4079 = vmatmul.mubr.f32.gmra.mrb[0].mxu0 %v4078
    %v4080 = vpop.f32.mrb[0].mxu0
    %v4081 = vadd.f32 %v3982, %v4080
    %v4082 = vpop.f32.mrb[0].mxu0
    %4083 = vmatprep.mubr.f32.mxu0 0.0
    %v4084 = vand.u32 %v2536, 4294901760
    %v4085 = vsub.f32 %v2536, %v4084
    %4086 = vmatmul.mubr.f32.gmra.mrb[0].mxu0 %v4085
    %v4087 = vpop.f32.mrb[0].mxu0
    %v4088 = vadd.f32 %v3988, %v4087
    %v4089 = vpop.f32.mrb[0].mxu0
    %4090 = vmatprep.mubr.f32.mxu0 0.0
    %v4091 = vand.u32 %v2539, 4294901760
    %v4092 = vsub.f32 %v2539, %v4091
    %4093 = vmatmul.mubr.f32.gmra.mrb[0].mxu0 %v4092
    %v4094 = vpop.f32.mrb[0].mxu0
    %v4095 = vadd.f32 %v3994, %v4094
    %v4096 = vpop.f32.mrb[0].mxu0
    %4097 = vdwg.mxu0
    %4098 = vmatprep.subr.mxu0 0.0
    %v4099 = vand.u32 %v22, 4294901760
    %4100 = vmatpush1.msra.mxu0 %v4099
    %4101 = vmatprep.subr.mxu0 0.0
    %v4102 = vand.u32 %v23, 4294901760
    %4103 = vmatpush1.msra.mxu0 %v4102
    %4104 = vmatprep.subr.mxu0 0.0
    %v4105 = vand.u32 %v24, 4294901760
    %4106 = vmatpush1.msra.mxu0 %v4105
    %4107 = vmatprep.subr.mxu0 0.0
    %v4108 = vand.u32 %v25, 4294901760
    %4109 = vmatpush1.msra.mxu0 %v4108
    %4110 = vmatprep.subr.mxu0 0.0
    %4111 = vmatpush1.msra.mxu0 0.0
    %4112 = vmatprep.subr.mxu0 0.0
    %4113 = vmatpush1.msra.mxu0 0.0
    %4114 = vmatprep.subr.mxu0 0.0
    %4115 = vmatpush1.msra.mxu0 0.0
    %4116 = vmatprep.subr.mxu0 0.0
    %4117 = vmatpush1.msra.mxu0 0.0
    %4118 = vmatprep.subr.mxu0 0.0
    %4119 = vmatpush1.msra.mxu0 0.0
    %4120 = vmatprep.subr.mxu0 0.0
    %4121 = vmatpush1.msra.mxu0 0.0
    %4122 = vmatprep.subr.mxu0 0.0
    %4123 = vmatpush1.msra.mxu0 0.0
    %4124 = vmatprep.subr.mxu0 0.0
    %4125 = vmatpush1.msra.mxu0 0.0
    %4126 = vmatprep.subr.mxu0 0.0
    %4127 = vmatpush1.msra.mxu0 0.0
    %4128 = vmatprep.subr.mxu0 0.0
    %4129 = vmatpush1.msra.mxu0 0.0
    %4130 = vmatprep.subr.mxu0 0.0
    %4131 = vmatpush1.msra.mxu0 0.0
    %4132 = vmatprep.subr.mxu0 0.0
    %4133 = vmatpush1.msra.mxu0 0.0
    %4134 = vmatprep.subr.mxu0 0.0
    %4135 = vmatpush1.msra.mxu0 0.0
    %4136 = vmatprep.subr.mxu0 0.0
    %4137 = vmatpush1.msra.mxu0 0.0
    %4138 = vmatprep.subr.mxu0 0.0
    %4139 = vmatpush1.msra.mxu0 0.0
    %4140 = vmatprep.subr.mxu0 0.0
    %4141 = vmatpush1.msra.mxu0 0.0
    %4142 = vmatprep.subr.mxu0 0.0
    %4143 = vmatpush1.msra.mxu0 0.0
    %4144 = vmatprep.subr.mxu0 0.0
    %4145 = vmatpush1.msra.mxu0 0.0
    %4146 = vmatprep.subr.mxu0 0.0
    %4147 = vmatpush1.msra.mxu0 0.0
    %4148 = vmatprep.subr.mxu0 0.0
    %4149 = vmatpush1.msra.mxu0 0.0
    %4150 = vmatprep.subr.mxu0 0.0
    %4151 = vmatpush1.msra.mxu0 0.0
    %4152 = vmatprep.subr.mxu0 0.0
    %4153 = vmatpush1.msra.mxu0 0.0
    %4154 = vmatprep.subr.mxu0 0.0
    %4155 = vmatpush1.msra.mxu0 0.0
    %4156 = vmatprep.subr.mxu0 0.0
    %4157 = vmatpush1.msra.mxu0 0.0
    %4158 = vmatprep.subr.mxu0 0.0
    %4159 = vmatpush1.msra.mxu0 0.0
    %4160 = vmatprep.subr.mxu0 0.0
    %4161 = vmatpush1.msra.mxu0 0.0
    %4162 = vmatprep.subr.mxu0 0.0
    %4163 = vmatpush1.msra.mxu0 0.0
    %4164 = vmatprep.subr.mxu0 0.0
    %4165 = vmatpush1.msra.mxu0 0.0
    %4166 = vmatprep.mubr.f32.mxu0 0.0
    %v4167 = vand.u32 %v2530, 4294901760
    %v4168 = vsub.f32 %v2530, %v4167
    %v4169 = vand.u32 %v4168, 4294901760
    %4170 = vmatmul.mubr.f32.gmra.mrb[0].mxu0 %v4169
    %v4171 = vpop.f32.mrb[0].mxu0
    %v4172 = vadd.f32 %v4074, %v4171
    %v4173 = vpop.f32.mrb[0].mxu0
    %4174 = vmatprep.mubr.f32.mxu0 0.0
    %v4175 = vand.u32 %v2533, 4294901760
    %v4176 = vsub.f32 %v2533, %v4175
    %v4177 = vand.u32 %v4176, 4294901760
    %4178 = vmatmul.mubr.f32.gmra.mrb[0].mxu0 %v4177
    %v4179 = vpop.f32.mrb[0].mxu0
    %v4180 = vadd.f32 %v4081, %v4179
    %v4181 = vpop.f32.mrb[0].mxu0
    %4182 = vmatprep.mubr.f32.mxu0 0.0
    %v4183 = vand.u32 %v2536, 4294901760
    %v4184 = vsub.f32 %v2536, %v4183
    %v4185 = vand.u32 %v4184, 4294901760
    %4186 = vmatmul.mubr.f32.gmra.mrb[0].mxu0 %v4185
    %v4187 = vpop.f32.mrb[0].mxu0
    %v4188 = vadd.f32 %v4088, %v4187
    %v4189 = vpop.f32.mrb[0].mxu0
    %4190 = vmatprep.mubr.f32.mxu0 0.0
    %v4191 = vand.u32 %v2539, 4294901760
    %v4192 = vsub.f32 %v2539, %v4191
    %v4193 = vand.u32 %v4192, 4294901760
    %4194 = vmatmul.mubr.f32.gmra.mrb[0].mxu0 %v4193
    %v4195 = vpop.f32.mrb[0].mxu0
    %v4196 = vadd.f32 %v4095, %v4195
    %v4197 = vpop.f32.mrb[0].mxu0
    %4198 = vdwg.mxu0
    %4199 = vmatprep.subr.mxu0 0.0
    %v4200 = vand.u32 %v22, 4294901760
    %v4201 = vsub.f32 %v22, %v4200
    %v4202 = vand.u32 %v4201, 4294901760
    %4203 = vmatpush1.msra.mxu0 %v4202
    %4204 = vmatprep.subr.mxu0 0.0
    %v4205 = vand.u32 %v23, 4294901760
    %v4206 = vsub.f32 %v23, %v4205
    %v4207 = vand.u32 %v4206, 4294901760
    %4208 = vmatpush1.msra.mxu0 %v4207
    %4209 = vmatprep.subr.mxu0 0.0
    %v4210 = vand.u32 %v24, 4294901760
    %v4211 = vsub.f32 %v24, %v4210
    %v4212 = vand.u32 %v4211, 4294901760
    %4213 = vmatpush1.msra.mxu0 %v4212
    %4214 = vmatprep.subr.mxu0 0.0
    %v4215 = vand.u32 %v25, 4294901760
    %v4216 = vsub.f32 %v25, %v4215
    %v4217 = vand.u32 %v4216, 4294901760
    %4218 = vmatpush1.msra.mxu0 %v4217
    %4219 = vmatprep.subr.mxu0 0.0
    %4220 = vmatpush1.msra.mxu0 0.0
    %4221 = vmatprep.subr.mxu0 0.0
    %4222 = vmatpush1.msra.mxu0 0.0
    %4223 = vmatprep.subr.mxu0 0.0
    %4224 = vmatpush1.msra.mxu0 0.0
    %4225 = vmatprep.subr.mxu0 0.0
    %4226 = vmatpush1.msra.mxu0 0.0
    %4227 = vmatprep.subr.mxu0 0.0
    %4228 = vmatpush1.msra.mxu0 0.0
    %4229 = vmatprep.subr.mxu0 0.0
    %4230 = vmatpush1.msra.mxu0 0.0
    %4231 = vmatprep.subr.mxu0 0.0
    %4232 = vmatpush1.msra.mxu0 0.0
    %4233 = vmatprep.subr.mxu0 0.0
    %4234 = vmatpush1.msra.mxu0 0.0
    %4235 = vmatprep.subr.mxu0 0.0
    %4236 = vmatpush1.msra.mxu0 0.0
    %4237 = vmatprep.subr.mxu0 0.0
    %4238 = vmatpush1.msra.mxu0 0.0
    %4239 = vmatprep.subr.mxu0 0.0
    %4240 = vmatpush1.msra.mxu0 0.0
    %4241 = vmatprep.subr.mxu0 0.0
    %4242 = vmatpush1.msra.mxu0 0.0
    %4243 = vmatprep.subr.mxu0 0.0
    %4244 = vmatpush1.msra.mxu0 0.0
    %4245 = vmatprep.subr.mxu0 0.0
    %4246 = vmatpush1.msra.mxu0 0.0
    %4247 = vmatprep.subr.mxu0 0.0
    %4248 = vmatpush1.msra.mxu0 0.0
    %4249 = vmatprep.subr.mxu0 0.0
    %4250 = vmatpush1.msra.mxu0 0.0
    %4251 = vmatprep.subr.mxu0 0.0
    %4252 = vmatpush1.msra.mxu0 0.0
    %4253 = vmatprep.subr.mxu0 0.0
    %4254 = vmatpush1.msra.mxu0 0.0
    %4255 = vmatprep.subr.mxu0 0.0
    %4256 = vmatpush1.msra.mxu0 0.0
    %4257 = vmatprep.subr.mxu0 0.0
    %4258 = vmatpush1.msra.mxu0 0.0
    %4259 = vmatprep.subr.mxu0 0.0
    %4260 = vmatpush1.msra.mxu0 0.0
    %4261 = vmatprep.subr.mxu0 0.0
    %4262 = vmatpush1.msra.mxu0 0.0
    %4263 = vmatprep.subr.mxu0 0.0
    %4264 = vmatpush1.msra.mxu0 0.0
    %4265 = vmatprep.subr.mxu0 0.0
    %4266 = vmatpush1.msra.mxu0 0.0
    %4267 = vmatprep.subr.mxu0 0.0
    %4268 = vmatpush1.msra.mxu0 0.0
    %4269 = vmatprep.subr.mxu0 0.0
    %4270 = vmatpush1.msra.mxu0 0.0
    %4271 = vmatprep.subr.mxu0 0.0
    %4272 = vmatpush1.msra.mxu0 0.0
    %4273 = vmatprep.subr.mxu0 0.0
    %4274 = vmatpush1.msra.mxu0 0.0
    %4275 = vmatprep.mubr.f32.mxu0 0.0
    %v4276 = vand.u32 %v2530, 4294901760
    %4277 = vmatmul.mubr.f32.gmra.mrb[0].mxu0 %v4276
    %v4278 = vpop.f32.mrb[0].mxu0
    %v4279 = vadd.f32 %v4172, %v4278
    %v4280 = vpop.f32.mrb[0].mxu0
    %4281 = vmatprep.mubr.f32.mxu0 0.0
    %v4282 = vand.u32 %v2533, 4294901760
    %4283 = vmatmul.mubr.f32.gmra.mrb[0].mxu0 %v4282
    %v4284 = vpop.f32.mrb[0].mxu0
    %v4285 = vadd.f32 %v4180, %v4284
    %v4286 = vpop.f32.mrb[0].mxu0
    %4287 = vmatprep.mubr.f32.mxu0 0.0
    %v4288 = vand.u32 %v2536, 4294901760
    %4289 = vmatmul.mubr.f32.gmra.mrb[0].mxu0 %v4288
    %v4290 = vpop.f32.mrb[0].mxu0
    %v4291 = vadd.f32 %v4188, %v4290
    %v4292 = vpop.f32.mrb[0].mxu0
    %4293 = vmatprep.mubr.f32.mxu0 0.0
    %v4294 = vand.u32 %v2539, 4294901760
    %4295 = vmatmul.mubr.f32.gmra.mrb[0].mxu0 %v4294
    %v4296 = vpop.f32.mrb[0].mxu0
    %v4297 = vadd.f32 %v4196, %v4296
    %v4298 = vpop.f32.mrb[0].mxu0
    %4299 = vdwg.mxu0
    %4300 = vmatprep.subr.mxu0 0.0
    %v4301 = vand.u32 %v22, 4294901760
    %4302 = vmatpush1.msra.mxu0 %v4301
    %4303 = vmatprep.subr.mxu0 0.0
    %v4304 = vand.u32 %v23, 4294901760
    %4305 = vmatpush1.msra.mxu0 %v4304
    %4306 = vmatprep.subr.mxu0 0.0
    %v4307 = vand.u32 %v24, 4294901760
    %4308 = vmatpush1.msra.mxu0 %v4307
    %4309 = vmatprep.subr.mxu0 0.0
    %v4310 = vand.u32 %v25, 4294901760
    %4311 = vmatpush1.msra.mxu0 %v4310
    %4312 = vmatprep.subr.mxu0 0.0
    %4313 = vmatpush1.msra.mxu0 0.0
    %4314 = vmatprep.subr.mxu0 0.0
    %4315 = vmatpush1.msra.mxu0 0.0
    %4316 = vmatprep.subr.mxu0 0.0
    %4317 = vmatpush1.msra.mxu0 0.0
    %4318 = vmatprep.subr.mxu0 0.0
    %4319 = vmatpush1.msra.mxu0 0.0
    %4320 = vmatprep.subr.mxu0 0.0
    %4321 = vmatpush1.msra.mxu0 0.0
    %4322 = vmatprep.subr.mxu0 0.0
    %4323 = vmatpush1.msra.mxu0 0.0
    %4324 = vmatprep.subr.mxu0 0.0
    %4325 = vmatpush1.msra.mxu0 0.0
    %4326 = vmatprep.subr.mxu0 0.0
    %4327 = vmatpush1.msra.mxu0 0.0
    %4328 = vmatprep.subr.mxu0 0.0
    %4329 = vmatpush1.msra.mxu0 0.0
    %4330 = vmatprep.subr.mxu0 0.0
    %4331 = vmatpush1.msra.mxu0 0.0
    %4332 = vmatprep.subr.mxu0 0.0
    %4333 = vmatpush1.msra.mxu0 0.0
    %4334 = vmatprep.subr.mxu0 0.0
    %4335 = vmatpush1.msra.mxu0 0.0
    %4336 = vmatprep.subr.mxu0 0.0
    %4337 = vmatpush1.msra.mxu0 0.0
    %4338 = vmatprep.subr.mxu0 0.0
    %4339 = vmatpush1.msra.mxu0 0.0
    %4340 = vmatprep.subr.mxu0 0.0
    %4341 = vmatpush1.msra.mxu0 0.0
    %4342 = vmatprep.subr.mxu0 0.0
    %4343 = vmatpush1.msra.mxu0 0.0
    %4344 = vmatprep.subr.mxu0 0.0
    %4345 = vmatpush1.msra.mxu0 0.0
    %4346 = vmatprep.subr.mxu0 0.0
    %4347 = vmatpush1.msra.mxu0 0.0
    %4348 = vmatprep.subr.mxu0 0.0
    %4349 = vmatpush1.msra.mxu0 0.0
    %4350 = vmatprep.subr.mxu0 0.0
    %4351 = vmatpush1.msra.mxu0 0.0
    %4352 = vmatprep.subr.mxu0 0.0
    %4353 = vmatpush1.msra.mxu0 0.0
    %4354 = vmatprep.subr.mxu0 0.0
    %4355 = vmatpush1.msra.mxu0 0.0
    %4356 = vmatprep.subr.mxu0 0.0
    %4357 = vmatpush1.msra.mxu0 0.0
    %4358 = vmatprep.subr.mxu0 0.0
    %4359 = vmatpush1.msra.mxu0 0.0
    %4360 = vmatprep.subr.mxu0 0.0
    %4361 = vmatpush1.msra.mxu0 0.0
    %4362 = vmatprep.subr.mxu0 0.0
    %4363 = vmatpush1.msra.mxu0 0.0
    %4364 = vmatprep.subr.mxu0 0.0
    %4365 = vmatpush1.msra.mxu0 0.0
    %4366 = vmatprep.subr.mxu0 0.0
    %4367 = vmatpush1.msra.mxu0 0.0
    %4368 = vmatprep.mubr.f32.mxu0 0.0
    %v4369 = vand.u32 %v2530, 4294901760
    %4370 = vmatmul.mubr.f32.gmra.mrb[0].mxu0 %v4369
    %v4371 = vpop.f32.mrb[0].mxu0
    %v4372 = vadd.f32 %v4279, %v4371
    %v4373 = vpop.f32.mrb[0].mxu0
    %4374 = vmatprep.mubr.f32.mxu0 0.0
    %v4375 = vand.u32 %v2533, 4294901760
    %4376 = vmatmul.mubr.f32.gmra.mrb[0].mxu0 %v4375
    %v4377 = vpop.f32.mrb[0].mxu0
    %v4378 = vadd.f32 %v4285, %v4377
    %v4379 = vpop.f32.mrb[0].mxu0
    %4380 = vmatprep.mubr.f32.mxu0 0.0
    %v4381 = vand.u32 %v2536, 4294901760
    %4382 = vmatmul.mubr.f32.gmra.mrb[0].mxu0 %v4381
    %v4383 = vpop.f32.mrb[0].mxu0
    %v4384 = vadd.f32 %v4291, %v4383
    %v4385 = vpop.f32.mrb[0].mxu0
    %4386 = vmatprep.mubr.f32.mxu0 0.0
    %v4387 = vand.u32 %v2539, 4294901760
    %4388 = vmatmul.mubr.f32.gmra.mrb[0].mxu0 %v4387
    %v4389 = vpop.f32.mrb[0].mxu0
    %v4390 = vadd.f32 %v4297, %v4389
    %v4391 = vpop.f32.mrb[0].mxu0
    %4392 = vdwg.mxu0
    %s4393 = scalar_lea.vmem [#allocation2], 144
    %4394 = vst.msk [vmem:[%s4393] sm:$0xff] %vm662, %v4372
    %4395 = vst.msk [vmem:[%s4393 + $0x20] sm:$0xff] %vm662, %v4378
    %4396 = vst.msk [vmem:[%s4393 + $0x40] sm:$0xff] %vm662, %v4384
    %4397 = vst.msk [vmem:[%s4393 + $0x60] sm:$0xff] %vm662, %v4390
    %4398 = vmatprep.subr.mxu0 0.0
    %v4399 = vand.u32 %v27, 4294901760
    %4400 = vmatpush1.msra.mxu0 %v4399
    %4401 = vmatprep.subr.mxu0 0.0
    %v4402 = vand.u32 %v28, 4294901760
    %4403 = vmatpush1.msra.mxu0 %v4402
    %4404 = vmatprep.subr.mxu0 0.0
    %v4405 = vand.u32 %v29, 4294901760
    %4406 = vmatpush1.msra.mxu0 %v4405
    %4407 = vmatprep.subr.mxu0 0.0
    %v4408 = vand.u32 %v30, 4294901760
    %4409 = vmatpush1.msra.mxu0 %v4408
    %4410 = vmatprep.subr.mxu0 0.0
    %4411 = vmatpush1.msra.mxu0 0.0
    %4412 = vmatprep.subr.mxu0 0.0
    %4413 = vmatpush1.msra.mxu0 0.0
    %4414 = vmatprep.subr.mxu0 0.0
    %4415 = vmatpush1.msra.mxu0 0.0
    %4416 = vmatprep.subr.mxu0 0.0
    %4417 = vmatpush1.msra.mxu0 0.0
    %4418 = vmatprep.subr.mxu0 0.0
    %4419 = vmatpush1.msra.mxu0 0.0
    %4420 = vmatprep.subr.mxu0 0.0
    %4421 = vmatpush1.msra.mxu0 0.0
    %4422 = vmatprep.subr.mxu0 0.0
    %4423 = vmatpush1.msra.mxu0 0.0
    %4424 = vmatprep.subr.mxu0 0.0
    %4425 = vmatpush1.msra.mxu0 0.0
    %4426 = vmatprep.subr.mxu0 0.0
    %4427 = vmatpush1.msra.mxu0 0.0
    %4428 = vmatprep.subr.mxu0 0.0
    %4429 = vmatpush1.msra.mxu0 0.0
    %4430 = vmatprep.subr.mxu0 0.0
    %4431 = vmatpush1.msra.mxu0 0.0
    %4432 = vmatprep.subr.mxu0 0.0
    %4433 = vmatpush1.msra.mxu0 0.0
    %4434 = vmatprep.subr.mxu0 0.0
    %4435 = vmatpush1.msra.mxu0 0.0
    %4436 = vmatprep.subr.mxu0 0.0
    %4437 = vmatpush1.msra.mxu0 0.0
    %4438 = vmatprep.subr.mxu0 0.0
    %4439 = vmatpush1.msra.mxu0 0.0
    %4440 = vmatprep.subr.mxu0 0.0
    %4441 = vmatpush1.msra.mxu0 0.0
    %4442 = vmatprep.subr.mxu0 0.0
    %4443 = vmatpush1.msra.mxu0 0.0
    %4444 = vmatprep.subr.mxu0 0.0
    %4445 = vmatpush1.msra.mxu0 0.0
    %4446 = vmatprep.subr.mxu0 0.0
    %4447 = vmatpush1.msra.mxu0 0.0
    %4448 = vmatprep.subr.mxu0 0.0
    %4449 = vmatpush1.msra.mxu0 0.0
    %4450 = vmatprep.subr.mxu0 0.0
    %4451 = vmatpush1.msra.mxu0 0.0
    %4452 = vmatprep.subr.mxu0 0.0
    %4453 = vmatpush1.msra.mxu0 0.0
    %4454 = vmatprep.subr.mxu0 0.0
    %4455 = vmatpush1.msra.mxu0 0.0
    %4456 = vmatprep.subr.mxu0 0.0
    %4457 = vmatpush1.msra.mxu0 0.0
    %4458 = vmatprep.subr.mxu0 0.0
    %4459 = vmatpush1.msra.mxu0 0.0
    %4460 = vmatprep.subr.mxu0 0.0
    %4461 = vmatpush1.msra.mxu0 0.0
    %4462 = vmatprep.subr.mxu0 0.0
    %4463 = vmatpush1.msra.mxu0 0.0
    %4464 = vmatprep.subr.mxu0 0.0
    %4465 = vmatpush1.msra.mxu0 0.0
    %4466 = vmatprep.mubr.f32.mxu0 0.0
    %v4467 = vand.u32 %v2530, 4294901760
    %v4468 = vsub.f32 %v2530, %v4467
    %v4469 = vand.u32 %v4468, 4294901760
    %v4470 = vsub.f32 %v4468, %v4469
    %v4471 = vand.u32 %v4470, 4294901760
    %4472 = vmatmul.mubr.f32.gmra.mrb[0].mxu0 %v4471
    %v4473 = vpop.f32.mrb[0].mxu0
    %v4474 = vadd.f32 0.0, %v4473
    %v4475 = vpop.f32.mrb[0].mxu0
    %4476 = vmatprep.mubr.f32.mxu0 0.0
    %v4477 = vand.u32 %v2533, 4294901760
    %v4478 = vsub.f32 %v2533, %v4477
    %v4479 = vand.u32 %v4478, 4294901760
    %v4480 = vsub.f32 %v4478, %v4479
    %v4481 = vand.u32 %v4480, 4294901760
    %4482 = vmatmul.mubr.f32.gmra.mrb[0].mxu0 %v4481
    %v4483 = vpop.f32.mrb[0].mxu0
    %v4484 = vadd.f32 0.0, %v4483
    %v4485 = vpop.f32.mrb[0].mxu0
    %4486 = vmatprep.mubr.f32.mxu0 0.0
    %v4487 = vand.u32 %v2536, 4294901760
    %v4488 = vsub.f32 %v2536, %v4487
    %v4489 = vand.u32 %v4488, 4294901760
    %v4490 = vsub.f32 %v4488, %v4489
    %v4491 = vand.u32 %v4490, 4294901760
    %4492 = vmatmul.mubr.f32.gmra.mrb[0].mxu0 %v4491
    %v4493 = vpop.f32.mrb[0].mxu0
    %v4494 = vadd.f32 0.0, %v4493
    %v4495 = vpop.f32.mrb[0].mxu0
    %4496 = vmatprep.mubr.f32.mxu0 0.0
    %v4497 = vand.u32 %v2539, 4294901760
    %v4498 = vsub.f32 %v2539, %v4497
    %v4499 = vand.u32 %v4498, 4294901760
    %v4500 = vsub.f32 %v4498, %v4499
    %v4501 = vand.u32 %v4500, 4294901760
    %4502 = vmatmul.mubr.f32.gmra.mrb[0].mxu0 %v4501
    %v4503 = vpop.f32.mrb[0].mxu0
    %v4504 = vadd.f32 0.0, %v4503
    %v4505 = vpop.f32.mrb[0].mxu0
    %4506 = vdwg.mxu0
    %4507 = vmatprep.subr.mxu0 0.0
    %v4508 = vand.u32 %v27, 4294901760
    %v4509 = vsub.f32 %v27, %v4508
    %v4510 = vand.u32 %v4509, 4294901760
    %v4511 = vsub.f32 %v4509, %v4510
    %v4512 = vand.u32 %v4511, 4294901760
    %4513 = vmatpush1.msra.mxu0 %v4512
    %4514 = vmatprep.subr.mxu0 0.0
    %v4515 = vand.u32 %v28, 4294901760
    %v4516 = vsub.f32 %v28, %v4515
    %v4517 = vand.u32 %v4516, 4294901760
    %v4518 = vsub.f32 %v4516, %v4517
    %v4519 = vand.u32 %v4518, 4294901760
    %4520 = vmatpush1.msra.mxu0 %v4519
    %4521 = vmatprep.subr.mxu0 0.0
    %v4522 = vand.u32 %v29, 4294901760
    %v4523 = vsub.f32 %v29, %v4522
    %v4524 = vand.u32 %v4523, 4294901760
    %v4525 = vsub.f32 %v4523, %v4524
    %v4526 = vand.u32 %v4525, 4294901760
    %4527 = vmatpush1.msra.mxu0 %v4526
    %4528 = vmatprep.subr.mxu0 0.0
    %v4529 = vand.u32 %v30, 4294901760
    %v4530 = vsub.f32 %v30, %v4529
    %v4531 = vand.u32 %v4530, 4294901760
    %v4532 = vsub.f32 %v4530, %v4531
    %v4533 = vand.u32 %v4532, 4294901760
    %4534 = vmatpush1.msra.mxu0 %v4533
    %4535 = vmatprep.subr.mxu0 0.0
    %4536 = vmatpush1.msra.mxu0 0.0
    %4537 = vmatprep.subr.mxu0 0.0
    %4538 = vmatpush1.msra.mxu0 0.0
    %4539 = vmatprep.subr.mxu0 0.0
    %4540 = vmatpush1.msra.mxu0 0.0
    %4541 = vmatprep.subr.mxu0 0.0
    %4542 = vmatpush1.msra.mxu0 0.0
    %4543 = vmatprep.subr.mxu0 0.0
    %4544 = vmatpush1.msra.mxu0 0.0
    %4545 = vmatprep.subr.mxu0 0.0
    %4546 = vmatpush1.msra.mxu0 0.0
    %4547 = vmatprep.subr.mxu0 0.0
    %4548 = vmatpush1.msra.mxu0 0.0
    %4549 = vmatprep.subr.mxu0 0.0
    %4550 = vmatpush1.msra.mxu0 0.0
    %4551 = vmatprep.subr.mxu0 0.0
    %4552 = vmatpush1.msra.mxu0 0.0
    %4553 = vmatprep.subr.mxu0 0.0
    %4554 = vmatpush1.msra.mxu0 0.0
    %4555 = vmatprep.subr.mxu0 0.0
    %4556 = vmatpush1.msra.mxu0 0.0
    %4557 = vmatprep.subr.mxu0 0.0
    %4558 = vmatpush1.msra.mxu0 0.0
    %4559 = vmatprep.subr.mxu0 0.0
    %4560 = vmatpush1.msra.mxu0 0.0
    %4561 = vmatprep.subr.mxu0 0.0
    %4562 = vmatpush1.msra.mxu0 0.0
    %4563 = vmatprep.subr.mxu0 0.0
    %4564 = vmatpush1.msra.mxu0 0.0
    %4565 = vmatprep.subr.mxu0 0.0
    %4566 = vmatpush1.msra.mxu0 0.0
    %4567 = vmatprep.subr.mxu0 0.0
    %4568 = vmatpush1.msra.mxu0 0.0
    %4569 = vmatprep.subr.mxu0 0.0
    %4570 = vmatpush1.msra.mxu0 0.0
    %4571 = vmatprep.subr.mxu0 0.0
    %4572 = vmatpush1.msra.mxu0 0.0
    %4573 = vmatprep.subr.mxu0 0.0
    %4574 = vmatpush1.msra.mxu0 0.0
    %4575 = vmatprep.subr.mxu0 0.0
    %4576 = vmatpush1.msra.mxu0 0.0
    %4577 = vmatprep.subr.mxu0 0.0
    %4578 = vmatpush1.msra.mxu0 0.0
    %4579 = vmatprep.subr.mxu0 0.0
    %4580 = vmatpush1.msra.mxu0 0.0
    %4581 = vmatprep.subr.mxu0 0.0
    %4582 = vmatpush1.msra.mxu0 0.0
    %4583 = vmatprep.subr.mxu0 0.0
    %4584 = vmatpush1.msra.mxu0 0.0
    %4585 = vmatprep.subr.mxu0 0.0
    %4586 = vmatpush1.msra.mxu0 0.0
    %4587 = vmatprep.subr.mxu0 0.0
    %4588 = vmatpush1.msra.mxu0 0.0
    %4589 = vmatprep.subr.mxu0 0.0
    %4590 = vmatpush1.msra.mxu0 0.0
    %4591 = vmatprep.mubr.f32.mxu0 0.0
    %v4592 = vand.u32 %v2530, 4294901760
    %4593 = vmatmul.mubr.f32.gmra.mrb[0].mxu0 %v4592
    %v4594 = vpop.f32.mrb[0].mxu0
    %v4595 = vadd.f32 %v4474, %v4594
    %v4596 = vpop.f32.mrb[0].mxu0
    %4597 = vmatprep.mubr.f32.mxu0 0.0
    %v4598 = vand.u32 %v2533, 4294901760
    %4599 = vmatmul.mubr.f32.gmra.mrb[0].mxu0 %v4598
    %v4600 = vpop.f32.mrb[0].mxu0
    %v4601 = vadd.f32 %v4484, %v4600
    %v4602 = vpop.f32.mrb[0].mxu0
    %4603 = vmatprep.mubr.f32.mxu0 0.0
    %v4604 = vand.u32 %v2536, 4294901760
    %4605 = vmatmul.mubr.f32.gmra.mrb[0].mxu0 %v4604
    %v4606 = vpop.f32.mrb[0].mxu0
    %v4607 = vadd.f32 %v4494, %v4606
    %v4608 = vpop.f32.mrb[0].mxu0
    %4609 = vmatprep.mubr.f32.mxu0 0.0
    %v4610 = vand.u32 %v2539, 4294901760
    %4611 = vmatmul.mubr.f32.gmra.mrb[0].mxu0 %v4610
    %v4612 = vpop.f32.mrb[0].mxu0
    %v4613 = vadd.f32 %v4504, %v4612
    %v4614 = vpop.f32.mrb[0].mxu0
    %4615 = vdwg.mxu0
    %4616 = vmatprep.subr.mxu0 0.0
    %v4617 = vand.u32 %v27, 4294901760
    %v4618 = vsub.f32 %v27, %v4617
    %4619 = vmatpush1.msra.mxu0 %v4618
    %4620 = vmatprep.subr.mxu0 0.0
    %v4621 = vand.u32 %v28, 4294901760
    %v4622 = vsub.f32 %v28, %v4621
    %4623 = vmatpush1.msra.mxu0 %v4622
    %4624 = vmatprep.subr.mxu0 0.0
    %v4625 = vand.u32 %v29, 4294901760
    %v4626 = vsub.f32 %v29, %v4625
    %4627 = vmatpush1.msra.mxu0 %v4626
    %4628 = vmatprep.subr.mxu0 0.0
    %v4629 = vand.u32 %v30, 4294901760
    %v4630 = vsub.f32 %v30, %v4629
    %4631 = vmatpush1.msra.mxu0 %v4630
    %4632 = vmatprep.subr.mxu0 0.0
    %4633 = vmatpush1.msra.mxu0 0.0
    %4634 = vmatprep.subr.mxu0 0.0
    %4635 = vmatpush1.msra.mxu0 0.0
    %4636 = vmatprep.subr.mxu0 0.0
    %4637 = vmatpush1.msra.mxu0 0.0
    %4638 = vmatprep.subr.mxu0 0.0
    %4639 = vmatpush1.msra.mxu0 0.0
    %4640 = vmatprep.subr.mxu0 0.0
    %4641 = vmatpush1.msra.mxu0 0.0
    %4642 = vmatprep.subr.mxu0 0.0
    %4643 = vmatpush1.msra.mxu0 0.0
    %4644 = vmatprep.subr.mxu0 0.0
    %4645 = vmatpush1.msra.mxu0 0.0
    %4646 = vmatprep.subr.mxu0 0.0
    %4647 = vmatpush1.msra.mxu0 0.0
    %4648 = vmatprep.subr.mxu0 0.0
    %4649 = vmatpush1.msra.mxu0 0.0
    %4650 = vmatprep.subr.mxu0 0.0
    %4651 = vmatpush1.msra.mxu0 0.0
    %4652 = vmatprep.subr.mxu0 0.0
    %4653 = vmatpush1.msra.mxu0 0.0
    %4654 = vmatprep.subr.mxu0 0.0
    %4655 = vmatpush1.msra.mxu0 0.0
    %4656 = vmatprep.subr.mxu0 0.0
    %4657 = vmatpush1.msra.mxu0 0.0
    %4658 = vmatprep.subr.mxu0 0.0
    %4659 = vmatpush1.msra.mxu0 0.0
    %4660 = vmatprep.subr.mxu0 0.0
    %4661 = vmatpush1.msra.mxu0 0.0
    %4662 = vmatprep.subr.mxu0 0.0
    %4663 = vmatpush1.msra.mxu0 0.0
    %4664 = vmatprep.subr.mxu0 0.0
    %4665 = vmatpush1.msra.mxu0 0.0
    %4666 = vmatprep.subr.mxu0 0.0
    %4667 = vmatpush1.msra.mxu0 0.0
    %4668 = vmatprep.subr.mxu0 0.0
    %4669 = vmatpush1.msra.mxu0 0.0
    %4670 = vmatprep.subr.mxu0 0.0
    %4671 = vmatpush1.msra.mxu0 0.0
    %4672 = vmatprep.subr.mxu0 0.0
    %4673 = vmatpush1.msra.mxu0 0.0
    %4674 = vmatprep.subr.mxu0 0.0
    %4675 = vmatpush1.msra.mxu0 0.0
    %4676 = vmatprep.subr.mxu0 0.0
    %4677 = vmatpush1.msra.mxu0 0.0
    %4678 = vmatprep.subr.mxu0 0.0
    %4679 = vmatpush1.msra.mxu0 0.0
    %4680 = vmatprep.subr.mxu0 0.0
    %4681 = vmatpush1.msra.mxu0 0.0
    %4682 = vmatprep.subr.mxu0 0.0
    %4683 = vmatpush1.msra.mxu0 0.0
    %4684 = vmatprep.subr.mxu0 0.0
    %4685 = vmatpush1.msra.mxu0 0.0
    %4686 = vmatprep.subr.mxu0 0.0
    %4687 = vmatpush1.msra.mxu0 0.0
    %4688 = vmatprep.mubr.f32.mxu0 0.0
    %v4689 = vand.u32 %v2530, 4294901760
    %v4690 = vsub.f32 %v2530, %v4689
    %4691 = vmatmul.mubr.f32.gmra.mrb[0].mxu0 %v4690
    %v4692 = vpop.f32.mrb[0].mxu0
    %v4693 = vadd.f32 %v4595, %v4692
    %v4694 = vpop.f32.mrb[0].mxu0
    %4695 = vmatprep.mubr.f32.mxu0 0.0
    %v4696 = vand.u32 %v2533, 4294901760
    %v4697 = vsub.f32 %v2533, %v4696
    %4698 = vmatmul.mubr.f32.gmra.mrb[0].mxu0 %v4697
    %v4699 = vpop.f32.mrb[0].mxu0
    %v4700 = vadd.f32 %v4601, %v4699
    %v4701 = vpop.f32.mrb[0].mxu0
    %4702 = vmatprep.mubr.f32.mxu0 0.0
    %v4703 = vand.u32 %v2536, 4294901760
    %v4704 = vsub.f32 %v2536, %v4703
    %4705 = vmatmul.mubr.f32.gmra.mrb[0].mxu0 %v4704
    %v4706 = vpop.f32.mrb[0].mxu0
    %v4707 = vadd.f32 %v4607, %v4706
    %v4708 = vpop.f32.mrb[0].mxu0
    %4709 = vmatprep.mubr.f32.mxu0 0.0
    %v4710 = vand.u32 %v2539, 4294901760
    %v4711 = vsub.f32 %v2539, %v4710
    %4712 = vmatmul.mubr.f32.gmra.mrb[0].mxu0 %v4711
    %v4713 = vpop.f32.mrb[0].mxu0
    %v4714 = vadd.f32 %v4613, %v4713
    %v4715 = vpop.f32.mrb[0].mxu0
    %4716 = vdwg.mxu0
    %4717 = vmatprep.subr.mxu0 0.0
    %v4718 = vand.u32 %v27, 4294901760
    %4719 = vmatpush1.msra.mxu0 %v4718
    %4720 = vmatprep.subr.mxu0 0.0
    %v4721 = vand.u32 %v28, 4294901760
    %4722 = vmatpush1.msra.mxu0 %v4721
    %4723 = vmatprep.subr.mxu0 0.0
    %v4724 = vand.u32 %v29, 4294901760
    %4725 = vmatpush1.msra.mxu0 %v4724
    %4726 = vmatprep.subr.mxu0 0.0
    %v4727 = vand.u32 %v30, 4294901760
    %4728 = vmatpush1.msra.mxu0 %v4727
    %4729 = vmatprep.subr.mxu0 0.0
    %4730 = vmatpush1.msra.mxu0 0.0
    %4731 = vmatprep.subr.mxu0 0.0
    %4732 = vmatpush1.msra.mxu0 0.0
    %4733 = vmatprep.subr.mxu0 0.0
    %4734 = vmatpush1.msra.mxu0 0.0
    %4735 = vmatprep.subr.mxu0 0.0
    %4736 = vmatpush1.msra.mxu0 0.0
    %4737 = vmatprep.subr.mxu0 0.0
    %4738 = vmatpush1.msra.mxu0 0.0
    %4739 = vmatprep.subr.mxu0 0.0
    %4740 = vmatpush1.msra.mxu0 0.0
    %4741 = vmatprep.subr.mxu0 0.0
    %4742 = vmatpush1.msra.mxu0 0.0
    %4743 = vmatprep.subr.mxu0 0.0
    %4744 = vmatpush1.msra.mxu0 0.0
    %4745 = vmatprep.subr.mxu0 0.0
    %4746 = vmatpush1.msra.mxu0 0.0
    %4747 = vmatprep.subr.mxu0 0.0
    %4748 = vmatpush1.msra.mxu0 0.0
    %4749 = vmatprep.subr.mxu0 0.0
    %4750 = vmatpush1.msra.mxu0 0.0
    %4751 = vmatprep.subr.mxu0 0.0
    %4752 = vmatpush1.msra.mxu0 0.0
    %4753 = vmatprep.subr.mxu0 0.0
    %4754 = vmatpush1.msra.mxu0 0.0
    %4755 = vmatprep.subr.mxu0 0.0
    %4756 = vmatpush1.msra.mxu0 0.0
    %4757 = vmatprep.subr.mxu0 0.0
    %4758 = vmatpush1.msra.mxu0 0.0
    %4759 = vmatprep.subr.mxu0 0.0
    %4760 = vmatpush1.msra.mxu0 0.0
    %4761 = vmatprep.subr.mxu0 0.0
    %4762 = vmatpush1.msra.mxu0 0.0
    %4763 = vmatprep.subr.mxu0 0.0
    %4764 = vmatpush1.msra.mxu0 0.0
    %4765 = vmatprep.subr.mxu0 0.0
    %4766 = vmatpush1.msra.mxu0 0.0
    %4767 = vmatprep.subr.mxu0 0.0
    %4768 = vmatpush1.msra.mxu0 0.0
    %4769 = vmatprep.subr.mxu0 0.0
    %4770 = vmatpush1.msra.mxu0 0.0
    %4771 = vmatprep.subr.mxu0 0.0
    %4772 = vmatpush1.msra.mxu0 0.0
    %4773 = vmatprep.subr.mxu0 0.0
    %4774 = vmatpush1.msra.mxu0 0.0
    %4775 = vmatprep.subr.mxu0 0.0
    %4776 = vmatpush1.msra.mxu0 0.0
    %4777 = vmatprep.subr.mxu0 0.0
    %4778 = vmatpush1.msra.mxu0 0.0
    %4779 = vmatprep.subr.mxu0 0.0
    %4780 = vmatpush1.msra.mxu0 0.0
    %4781 = vmatprep.subr.mxu0 0.0
    %4782 = vmatpush1.msra.mxu0 0.0
    %4783 = vmatprep.subr.mxu0 0.0
    %4784 = vmatpush1.msra.mxu0 0.0
    %4785 = vmatprep.mubr.f32.mxu0 0.0
    %v4786 = vand.u32 %v2530, 4294901760
    %v4787 = vsub.f32 %v2530, %v4786
    %v4788 = vand.u32 %v4787, 4294901760
    %4789 = vmatmul.mubr.f32.gmra.mrb[0].mxu0 %v4788
    %v4790 = vpop.f32.mrb[0].mxu0
    %v4791 = vadd.f32 %v4693, %v4790
    %v4792 = vpop.f32.mrb[0].mxu0
    %4793 = vmatprep.mubr.f32.mxu0 0.0
    %v4794 = vand.u32 %v2533, 4294901760
    %v4795 = vsub.f32 %v2533, %v4794
    %v4796 = vand.u32 %v4795, 4294901760
    %4797 = vmatmul.mubr.f32.gmra.mrb[0].mxu0 %v4796
    %v4798 = vpop.f32.mrb[0].mxu0
    %v4799 = vadd.f32 %v4700, %v4798
    %v4800 = vpop.f32.mrb[0].mxu0
    %4801 = vmatprep.mubr.f32.mxu0 0.0
    %v4802 = vand.u32 %v2536, 4294901760
    %v4803 = vsub.f32 %v2536, %v4802
    %v4804 = vand.u32 %v4803, 4294901760
    %4805 = vmatmul.mubr.f32.gmra.mrb[0].mxu0 %v4804
    %v4806 = vpop.f32.mrb[0].mxu0
    %v4807 = vadd.f32 %v4707, %v4806
    %v4808 = vpop.f32.mrb[0].mxu0
    %4809 = vmatprep.mubr.f32.mxu0 0.0
    %v4810 = vand.u32 %v2539, 4294901760
    %v4811 = vsub.f32 %v2539, %v4810
    %v4812 = vand.u32 %v4811, 4294901760
    %4813 = vmatmul.mubr.f32.gmra.mrb[0].mxu0 %v4812
    %v4814 = vpop.f32.mrb[0].mxu0
    %v4815 = vadd.f32 %v4714, %v4814
    %v4816 = vpop.f32.mrb[0].mxu0
    %4817 = vdwg.mxu0
    %4818 = vmatprep.subr.mxu0 0.0
    %v4819 = vand.u32 %v27, 4294901760
    %v4820 = vsub.f32 %v27, %v4819
    %v4821 = vand.u32 %v4820, 4294901760
    %4822 = vmatpush1.msra.mxu0 %v4821
    %4823 = vmatprep.subr.mxu0 0.0
    %v4824 = vand.u32 %v28, 4294901760
    %v4825 = vsub.f32 %v28, %v4824
    %v4826 = vand.u32 %v4825, 4294901760
    %4827 = vmatpush1.msra.mxu0 %v4826
    %4828 = vmatprep.subr.mxu0 0.0
    %v4829 = vand.u32 %v29, 4294901760
    %v4830 = vsub.f32 %v29, %v4829
    %v4831 = vand.u32 %v4830, 4294901760
    %4832 = vmatpush1.msra.mxu0 %v4831
    %4833 = vmatprep.subr.mxu0 0.0
    %v4834 = vand.u32 %v30, 4294901760
    %v4835 = vsub.f32 %v30, %v4834
    %v4836 = vand.u32 %v4835, 4294901760
    %4837 = vmatpush1.msra.mxu0 %v4836
    %4838 = vmatprep.subr.mxu0 0.0
    %4839 = vmatpush1.msra.mxu0 0.0
    %4840 = vmatprep.subr.mxu0 0.0
    %4841 = vmatpush1.msra.mxu0 0.0
    %4842 = vmatprep.subr.mxu0 0.0
    %4843 = vmatpush1.msra.mxu0 0.0
    %4844 = vmatprep.subr.mxu0 0.0
    %4845 = vmatpush1.msra.mxu0 0.0
    %4846 = vmatprep.subr.mxu0 0.0
    %4847 = vmatpush1.msra.mxu0 0.0
    %4848 = vmatprep.subr.mxu0 0.0
    %4849 = vmatpush1.msra.mxu0 0.0
    %4850 = vmatprep.subr.mxu0 0.0
    %4851 = vmatpush1.msra.mxu0 0.0
    %4852 = vmatprep.subr.mxu0 0.0
    %4853 = vmatpush1.msra.mxu0 0.0
    %4854 = vmatprep.subr.mxu0 0.0
    %4855 = vmatpush1.msra.mxu0 0.0
    %4856 = vmatprep.subr.mxu0 0.0
    %4857 = vmatpush1.msra.mxu0 0.0
    %4858 = vmatprep.subr.mxu0 0.0
    %4859 = vmatpush1.msra.mxu0 0.0
    %4860 = vmatprep.subr.mxu0 0.0
    %4861 = vmatpush1.msra.mxu0 0.0
    %4862 = vmatprep.subr.mxu0 0.0
    %4863 = vmatpush1.msra.mxu0 0.0
    %4864 = vmatprep.subr.mxu0 0.0
    %4865 = vmatpush1.msra.mxu0 0.0
    %4866 = vmatprep.subr.mxu0 0.0
    %4867 = vmatpush1.msra.mxu0 0.0
    %4868 = vmatprep.subr.mxu0 0.0
    %4869 = vmatpush1.msra.mxu0 0.0
    %4870 = vmatprep.subr.mxu0 0.0
    %4871 = vmatpush1.msra.mxu0 0.0
    %4872 = vmatprep.subr.mxu0 0.0
    %4873 = vmatpush1.msra.mxu0 0.0
    %4874 = vmatprep.subr.mxu0 0.0
    %4875 = vmatpush1.msra.mxu0 0.0
    %4876 = vmatprep.subr.mxu0 0.0
    %4877 = vmatpush1.msra.mxu0 0.0
    %4878 = vmatprep.subr.mxu0 0.0
    %4879 = vmatpush1.msra.mxu0 0.0
    %4880 = vmatprep.subr.mxu0 0.0
    %4881 = vmatpush1.msra.mxu0 0.0
    %4882 = vmatprep.subr.mxu0 0.0
    %4883 = vmatpush1.msra.mxu0 0.0
    %4884 = vmatprep.subr.mxu0 0.0
    %4885 = vmatpush1.msra.mxu0 0.0
    %4886 = vmatprep.subr.mxu0 0.0
    %4887 = vmatpush1.msra.mxu0 0.0
    %4888 = vmatprep.subr.mxu0 0.0
    %4889 = vmatpush1.msra.mxu0 0.0
    %4890 = vmatprep.subr.mxu0 0.0
    %4891 = vmatpush1.msra.mxu0 0.0
    %4892 = vmatprep.subr.mxu0 0.0
    %4893 = vmatpush1.msra.mxu0 0.0
    %4894 = vmatprep.mubr.f32.mxu0 0.0
    %v4895 = vand.u32 %v2530, 4294901760
    %4896 = vmatmul.mubr.f32.gmra.mrb[0].mxu0 %v4895
    %v4897 = vpop.f32.mrb[0].mxu0
    %v4898 = vadd.f32 %v4791, %v4897
    %v4899 = vpop.f32.mrb[0].mxu0
    %4900 = vmatprep.mubr.f32.mxu0 0.0
    %v4901 = vand.u32 %v2533, 4294901760
    %4902 = vmatmul.mubr.f32.gmra.mrb[0].mxu0 %v4901
    %v4903 = vpop.f32.mrb[0].mxu0
    %v4904 = vadd.f32 %v4799, %v4903
    %v4905 = vpop.f32.mrb[0].mxu0
    %4906 = vmatprep.mubr.f32.mxu0 0.0
    %v4907 = vand.u32 %v2536, 4294901760
    %4908 = vmatmul.mubr.f32.gmra.mrb[0].mxu0 %v4907
    %v4909 = vpop.f32.mrb[0].mxu0
    %v4910 = vadd.f32 %v4807, %v4909
    %v4911 = vpop.f32.mrb[0].mxu0
    %4912 = vmatprep.mubr.f32.mxu0 0.0
    %v4913 = vand.u32 %v2539, 4294901760
    %4914 = vmatmul.mubr.f32.gmra.mrb[0].mxu0 %v4913
    %v4915 = vpop.f32.mrb[0].mxu0
    %v4916 = vadd.f32 %v4815, %v4915
    %v4917 = vpop.f32.mrb[0].mxu0
    %4918 = vdwg.mxu0
    %4919 = vmatprep.subr.mxu0 0.0
    %v4920 = vand.u32 %v27, 4294901760
    %4921 = vmatpush1.msra.mxu0 %v4920
    %4922 = vmatprep.subr.mxu0 0.0
    %v4923 = vand.u32 %v28, 4294901760
    %4924 = vmatpush1.msra.mxu0 %v4923
    %4925 = vmatprep.subr.mxu0 0.0
    %v4926 = vand.u32 %v29, 4294901760
    %4927 = vmatpush1.msra.mxu0 %v4926
    %4928 = vmatprep.subr.mxu0 0.0
    %v4929 = vand.u32 %v30, 4294901760
    %4930 = vmatpush1.msra.mxu0 %v4929
    %4931 = vmatprep.subr.mxu0 0.0
    %4932 = vmatpush1.msra.mxu0 0.0
    %4933 = vmatprep.subr.mxu0 0.0
    %4934 = vmatpush1.msra.mxu0 0.0
    %4935 = vmatprep.subr.mxu0 0.0
    %4936 = vmatpush1.msra.mxu0 0.0
    %4937 = vmatprep.subr.mxu0 0.0
    %4938 = vmatpush1.msra.mxu0 0.0
    %4939 = vmatprep.subr.mxu0 0.0
    %4940 = vmatpush1.msra.mxu0 0.0
    %4941 = vmatprep.subr.mxu0 0.0
    %4942 = vmatpush1.msra.mxu0 0.0
    %4943 = vmatprep.subr.mxu0 0.0
    %4944 = vmatpush1.msra.mxu0 0.0
    %4945 = vmatprep.subr.mxu0 0.0
    %4946 = vmatpush1.msra.mxu0 0.0
    %4947 = vmatprep.subr.mxu0 0.0
    %4948 = vmatpush1.msra.mxu0 0.0
    %4949 = vmatprep.subr.mxu0 0.0
    %4950 = vmatpush1.msra.mxu0 0.0
    %4951 = vmatprep.subr.mxu0 0.0
    %4952 = vmatpush1.msra.mxu0 0.0
    %4953 = vmatprep.subr.mxu0 0.0
    %4954 = vmatpush1.msra.mxu0 0.0
    %4955 = vmatprep.subr.mxu0 0.0
    %4956 = vmatpush1.msra.mxu0 0.0
    %4957 = vmatprep.subr.mxu0 0.0
    %4958 = vmatpush1.msra.mxu0 0.0
    %4959 = vmatprep.subr.mxu0 0.0
    %4960 = vmatpush1.msra.mxu0 0.0
    %4961 = vmatprep.subr.mxu0 0.0
    %4962 = vmatpush1.msra.mxu0 0.0
    %4963 = vmatprep.subr.mxu0 0.0
    %4964 = vmatpush1.msra.mxu0 0.0
    %4965 = vmatprep.subr.mxu0 0.0
    %4966 = vmatpush1.msra.mxu0 0.0
    %4967 = vmatprep.subr.mxu0 0.0
    %4968 = vmatpush1.msra.mxu0 0.0
    %4969 = vmatprep.subr.mxu0 0.0
    %4970 = vmatpush1.msra.mxu0 0.0
    %4971 = vmatprep.subr.mxu0 0.0
    %4972 = vmatpush1.msra.mxu0 0.0
    %4973 = vmatprep.subr.mxu0 0.0
    %4974 = vmatpush1.msra.mxu0 0.0
    %4975 = vmatprep.subr.mxu0 0.0
    %4976 = vmatpush1.msra.mxu0 0.0
    %4977 = vmatprep.subr.mxu0 0.0
    %4978 = vmatpush1.msra.mxu0 0.0
    %4979 = vmatprep.subr.mxu0 0.0
    %4980 = vmatpush1.msra.mxu0 0.0
    %4981 = vmatprep.subr.mxu0 0.0
    %4982 = vmatpush1.msra.mxu0 0.0
    %4983 = vmatprep.subr.mxu0 0.0
    %4984 = vmatpush1.msra.mxu0 0.0
    %4985 = vmatprep.subr.mxu0 0.0
    %4986 = vmatpush1.msra.mxu0 0.0
    %4987 = vmatprep.mubr.f32.mxu0 0.0
    %v4988 = vand.u32 %v2530, 4294901760
    %4989 = vmatmul.mubr.f32.gmra.mrb[0].mxu0 %v4988
    %v4990 = vpop.f32.mrb[0].mxu0
    %v4991 = vadd.f32 %v4898, %v4990
    %v4992 = vpop.f32.mrb[0].mxu0
    %4993 = vmatprep.mubr.f32.mxu0 0.0
    %v4994 = vand.u32 %v2533, 4294901760
    %4995 = vmatmul.mubr.f32.gmra.mrb[0].mxu0 %v4994
    %v4996 = vpop.f32.mrb[0].mxu0
    %v4997 = vadd.f32 %v4904, %v4996
    %v4998 = vpop.f32.mrb[0].mxu0
    %4999 = vmatprep.mubr.f32.mxu0 0.0
    %v5000 = vand.u32 %v2536, 4294901760
    %5001 = vmatmul.mubr.f32.gmra.mrb[0].mxu0 %v5000
    %v5002 = vpop.f32.mrb[0].mxu0
    %v5003 = vadd.f32 %v4910, %v5002
    %v5004 = vpop.f32.mrb[0].mxu0
    %5005 = vmatprep.mubr.f32.mxu0 0.0
    %v5006 = vand.u32 %v2539, 4294901760
    %5007 = vmatmul.mubr.f32.gmra.mrb[0].mxu0 %v5006
    %v5008 = vpop.f32.mrb[0].mxu0
    %v5009 = vadd.f32 %v4916, %v5008
    %v5010 = vpop.f32.mrb[0].mxu0
    %5011 = vdwg.mxu0
    %s5012 = scalar_lea.vmem [#allocation2], 152
    %5013 = vst.msk [vmem:[%s5012] sm:$0xff] %vm662, %v4991
    %5014 = vst.msk [vmem:[%s5012 + $0x20] sm:$0xff] %vm662, %v4997
    %5015 = vst.msk [vmem:[%s5012 + $0x40] sm:$0xff] %vm662, %v5003
    %5016 = vst.msk [vmem:[%s5012 + $0x60] sm:$0xff] %vm662, %v5009
    // Predicated region
    $region10: #{tpu_custom_call.1} parent=1 // pred_check
      _
    $region11: #{tpu_custom_call.1} parent=1 // pred_check_branch
      %5018 = sbr.rel (0) target = $region13
    $region12: #{tpu_custom_call.1} parent=1 // pred_region
      %s5020 = ssub.s32 4096, 4096
      %5021 = vsyncadd [#allocation3], %s5020
      %s5022 = sshll.u32 [#allocation2], 4
      %s5023 = int_to_ptr.vmem [resolvable:$true] %s5022
      %5028 = dma.vmem_to_hbm [thread:$0]  %s5023, 4096, %s2, [#allocation3], 128, 128, 8
    $region13: #{tpu_custom_call.1} parent=1 // pred_fallthru
      _
    // Predicated region
    $region14: #{tpu_custom_call.1} parent=1 // pred_check
      _
    $region15: #{tpu_custom_call.1} parent=1 // pred_check_branch
      %5030 = sbr.rel (0) target = $region17
    $region16: #{tpu_custom_call.1} parent=1 // pred_region
      %5031 = dma.done [#allocation3], 4096
    $region17: #{tpu_custom_call.1} parent=1 // pred_fallthru
      _
    %5032 = vsyncpa [#allocation3], 1

</llo_original>
